<compile_context>
chip_gen: v7x
topology: tpu7x:2x2x1
jax: 0.10.0
libtpu: 0.0.40
codegen_flags: <defaults>
</compile_context>

<pallas_src>
import functools
import math

import jax
import jax.numpy as jnp
from jax.experimental import pallas as pl
from jax.experimental.pallas import tpu as pltpu


def _src_indices(in_size: int, out_size: int):
    # PyTorch 'nearest': src = floor(dst * in / out), clamped to [0, in-1].
    # TODO(synk): exact-integer floor can differ by one index from PyTorch's float
    # floor(dst * (in / out)) for rare size combinations.
    return [min((d * in_size) // out_size, in_size - 1) for d in range(out_size)]


def _padded_plane_bytes(h: int, w: int, itemsize: int) -> int:
    # VMEM footprint of one (h, w) plane: sublane pad (8 for f32, 16 for bf16, ...),
    # lane pad to 128.
    sub = max(8, 32 // max(1, itemsize))
    return (-(-h // sub) * sub) * (-(-w // 128) * 128) * itemsize


def _vmem_capacity_bytes() -> int:
    try:
        cap = int(pltpu.get_tpu_info().vmem_capacity_bytes)
        if cap > 0:
            return cap
    except Exception:
        pass
    return 64 * 1024 * 1024  # conservative: v7x per-TensorCore VMEM


def _make_nearest_kernel(row_plan, compute_dtype):
    # row_plan: static tuple of (src_input_row, (output_rows...,)) for every USED
    # input row.  H_in/H_out/W_in/W_out are compile-time constants, so the loops
    # below unroll into a short static schedule (one small matmul per used input
    # row + one strided VMEM store per output row).
    def kernel(rw_ref, x_ref, o_ref):
        # rw_ref: (W_in, W_out)  one-hot column-gather matrix (resident, ~KiB)
        # x_ref : (Bp, H_in, W_in)   input planes
        # o_ref : (Bp, H_out, W_out) output planes
        rw = rw_ref[...]
        for r, out_rows in row_plan:
            col = jnp.dot(
                x_ref[:, r, :].astype(compute_dtype), rw,
                preferred_element_type=jnp.float32,
            ).astype(o_ref.dtype)
            for i in out_rows:
                o_ref[:, i, :] = col
    return kernel


@functools.partial(jax.jit, static_argnames=("size", "scale_factor", "mode", "align_corners"))
def interpolate(x, *, size=None, scale_factor=None, mode="nearest", align_corners=False):
    """Pallas equivalent of Interpolate.forward(x) for 4-D NCHW inputs, mode='nearest'."""
    assert mode == "nearest", "only mode='nearest' is implemented"
    # TODO(synk): 'bilinear'/'bicubic' modes (align_corners handling) not implemented.
    del align_corners  # ignored by nearest
    N, C, H_in, W_in = x.shape
    if size is not None:
        H_out, W_out = (size, size) if isinstance(size, int) else tuple(size)
    else:
        if isinstance(scale_factor, (tuple, list)):
            sf_h, sf_w = scale_factor
        else:
            sf_h = sf_w = scale_factor
        # PyTorch: output_size = floor(input_size * scale_factor)
        H_out = int(math.floor(H_in * float(sf_h)))
        W_out = int(math.floor(W_in * float(sf_w)))

    NC = N * C
    itemsize = jnp.dtype(x.dtype).itemsize
    # Float inputs compute in their own dtype (one-hot matmul is exact); integer
    # inputs are cast to f32 INSIDE the kernel (no wrapper-side HBM copies).
    # TODO(synk): integer inputs with |v| > 2^24 lose exactness through the f32 MXU path.
    cdt = x.dtype if jnp.issubdtype(x.dtype, jnp.floating) else jnp.float32

    # Static nearest source indices (exact integer floor) and the row plan.
    src_r = _src_indices(H_in, H_out)
    src_c = _src_indices(W_in, W_out)
    rows_for = {}
    for i, r in enumerate(src_r):
        rows_for.setdefault(r, []).append(i)
    row_plan = tuple(sorted((r, tuple(v)) for r, v in rows_for.items()))

    # Tiny resident one-hot column-gather matrix (W_in, W_out).
    rw = (jnp.arange(W_in, dtype=jnp.int32)[:, None]
          == jnp.asarray(src_c, dtype=jnp.int32)[None, :]).astype(cdt)

    # --- Generation-aware VMEM budgeting and plane-batch sizing -------------------
    vmem_cap = _vmem_capacity_bytes()
    vmem_limit = min(int(vmem_cap * 0.85), 96 * 1024 * 1024)
    block_budget = min(int(vmem_cap * 0.60), 72 * 1024 * 1024)
    per_plane_vmem = 2 * (_padded_plane_bytes(H_in, W_in, itemsize)
                          + _padded_plane_bytes(H_out, W_out, itemsize))  # 2x = double buffering
    bp_vmem = max(1, block_budget // per_plane_vmem)

    # Aim for >=4 grid steps (2 per TensorCore on dual-TC chips), but never shrink a
    # step below ~2 MiB of HBM traffic (keeps the ~0.35 us/step overhead negligible).
    bytes_per_plane = (H_in * W_in + H_out * W_out) * itemsize
    min_planes_big_step = max(1, (2 * 1024 * 1024) // max(1, bytes_per_plane))
    bp_target = max(-(-NC // 4), min_planes_big_step)
    Bp = max(1, min(NC, bp_vmem, bp_target))
    if Bp < NC and Bp >= 8:
        Bp = (Bp // 8) * 8
    grid = (pl.cdiv(NC, Bp),)

    x3 = x.reshape(NC, H_in, W_in)  # free reshape, original dtype

    cost = pl.CostEstimate(
        flops=2 * NC * len(row_plan) * W_in * W_out,
        transcendentals=0,
        bytes_accessed=NC * bytes_per_plane + W_in * W_out * jnp.dtype(cdt).itemsize,
    )

    out3 = pl.pallas_call(
        _make_nearest_kernel(row_plan, cdt),
        out_shape=jax.ShapeDtypeStruct((NC, H_out, W_out), x.dtype),
        grid_spec=pltpu.PrefetchScalarGridSpec(
            num_scalar_prefetch=0,
            grid=grid,
            in_specs=[
                pl.BlockSpec((W_in, W_out), lambda i: (0, 0)),       # resident, fetched once
                pl.BlockSpec((Bp, H_in, W_in), lambda i: (i, 0, 0)),  # Bp full input planes
            ],
            out_specs=pl.BlockSpec((Bp, H_out, W_out), lambda i: (i, 0, 0)),
        ),
        compiler_params=pltpu.CompilerParams(
            dimension_semantics=("parallel",),
            vmem_limit_bytes=vmem_limit,
        ),
        cost_estimate=cost,
    )(rw, x3)

    return out3.reshape(N, C, H_out, W_out)


if __name__ == "__main__":
    key = jax.random.PRNGKey(0)
    x = jax.random.normal(key, (2, 4, 16, 16), dtype=jnp.float32)

    out = interpolate(x, scale_factor=2, mode="nearest")
    out = jax.block_until_ready(out)

    # Pure-JAX nearest reference (direct gather).
    rows = jnp.asarray([min((i * 16) // 32, 15) for i in range(32)], dtype=jnp.int32)
    cols = rows
    ref = x[:, :, rows, :][:, :, :, cols]
    assert out.shape == (2, 4, 32, 32)
    assert jnp.allclose(out, ref), "mismatch vs nearest reference (scale_factor=2)"

    # Non-integer resize + bf16 input, exercising the fully general nearest path.
    x2 = jax.random.normal(jax.random.PRNGKey(1), (1, 3, 7, 9), dtype=jnp.bfloat16)
    out2 = jax.block_until_ready(interpolate(x2, size=(13, 20), mode="nearest"))
    r2 = jnp.asarray([min((i * 7) // 13, 6) for i in range(13)], dtype=jnp.int32)
    c2 = jnp.asarray([min((j * 9) // 20, 8) for j in range(20)], dtype=jnp.int32)
    ref2 = x2[:, :, r2, :][:, :, :, c2]
    assert out2.shape == (1, 3, 13, 20)
    assert jnp.allclose(out2.astype(jnp.float32), ref2.astype(jnp.float32)), \
        "mismatch vs nearest reference (size=(13,20), bf16)"

    print("KERNEL_OK")
</pallas_src>

<mosaic_0001>
module attributes {stable_mosaic.version = 11 : i64} {
  func.func @kernel(%arg0: i32, %arg1: memref<16x32xf32, #tpu.memory_space<vmem>>, %arg2: memref<8x16x16xf32, #tpu.memory_space<vmem>>, %arg3: memref<8x32x32xf32, #tpu.memory_space<vmem>>) attributes {dimension_semantics = [#tpu.dimension_semantics<parallel>], iteration_bounds = array<i64: 1>, scalar_prefetch = 0 : i64, scratch_operands = 0 : i64, tpu.core_type = #tpu.core_type<tc>, window_params = [{pipeline_mode = #tpu.pipeline_mode<synchronous>, transform_indices = @transform_0, window_bounds = array<i64: 16, 32>}, {transform_indices = @transform_1, window_bounds = array<i64: 8, 16, 16>}, {transform_indices = @transform_2, window_bounds = array<i64: 8, 32, 32>}]} {
    %c0 = arith.constant 0 : index
    %c0_0 = arith.constant 0 : index
    %0 = vector.load %arg1[%c0, %c0_0] : memref<16x32xf32, #tpu.memory_space<vmem>>, vector<16x32xf32>
    %c0_1 = arith.constant 0 : index
    %c0_2 = arith.constant 0 : index
    %c0_3 = arith.constant 0 : index
    %1 = vector.load %arg2[%c0_1, %c0_2, %c0_3] : memref<8x16x16xf32, #tpu.memory_space<vmem>>, vector<8x1x16xf32>
    %2 = vector.shape_cast %1 : vector<8x1x16xf32> to vector<8x16xf32>
    %cst = arith.constant dense<0.000000e+00> : vector<8x32xf32>
    %3 = tpu.matmul %2, %0, %cst {dimension_numbers = #tpu.dot_dimension_numbers<[1], [0], [0], [1], [0, 0, 1, 1], [], []>} : vector<8x16xf32>, vector<16x32xf32>, vector<8x32xf32> -> vector<8x32xf32>
    %c0_4 = arith.constant 0 : index
    %c0_5 = arith.constant 0 : index
    %c0_6 = arith.constant 0 : index
    %4 = vector.load %arg3[%c0_4, %c0_5, %c0_6] : memref<8x32x32xf32, #tpu.memory_space<vmem>>, vector<8x1x32xf32>
    %5 = vector.shape_cast %4 : vector<8x1x32xf32> to vector<8x32xf32>
    %6 = vector.shape_cast %3 : vector<8x32xf32> to vector<8x1x32xf32>
    tpu.vector_store %arg3[%c0_4, %c0_5, %c0_6], %6 {strides = array<i32>} : memref<8x32x32xf32, #tpu.memory_space<vmem>>, vector<8x1x32xf32>,
    %c0_7 = arith.constant 0 : index
    %c1 = arith.constant 1 : index
    %c0_8 = arith.constant 0 : index
    %7 = vector.load %arg3[%c0_7, %c1, %c0_8] : memref<8x32x32xf32, #tpu.memory_space<vmem>>, vector<8x1x32xf32>
    %8 = vector.shape_cast %7 : vector<8x1x32xf32> to vector<8x32xf32>
    %9 = vector.shape_cast %3 : vector<8x32xf32> to vector<8x1x32xf32>
    tpu.vector_store %arg3[%c0_7, %c1, %c0_8], %9 {strides = array<i32>} : memref<8x32x32xf32, #tpu.memory_space<vmem>>, vector<8x1x32xf32>,
    %c0_9 = arith.constant 0 : index
    %c1_10 = arith.constant 1 : index
    %c0_11 = arith.constant 0 : index
    %10 = vector.load %arg2[%c0_9, %c1_10, %c0_11] : memref<8x16x16xf32, #tpu.memory_space<vmem>>, vector<8x1x16xf32>
    %11 = vector.shape_cast %10 : vector<8x1x16xf32> to vector<8x16xf32>
    %cst_12 = arith.constant dense<0.000000e+00> : vector<8x32xf32>
    %12 = tpu.matmul %11, %0, %cst_12 {dimension_numbers = #tpu.dot_dimension_numbers<[1], [0], [0], [1], [0, 0, 1, 1], [], []>} : vector<8x16xf32>, vector<16x32xf32>, vector<8x32xf32> -> vector<8x32xf32>
    %c0_13 = arith.constant 0 : index
    %c2 = arith.constant 2 : index
    %c0_14 = arith.constant 0 : index
    %13 = vector.load %arg3[%c0_13, %c2, %c0_14] : memref<8x32x32xf32, #tpu.memory_space<vmem>>, vector<8x1x32xf32>
    %14 = vector.shape_cast %13 : vector<8x1x32xf32> to vector<8x32xf32>
    %15 = vector.shape_cast %12 : vector<8x32xf32> to vector<8x1x32xf32>
    tpu.vector_store %arg3[%c0_13, %c2, %c0_14], %15 {strides = array<i32>} : memref<8x32x32xf32, #tpu.memory_space<vmem>>, vector<8x1x32xf32>,
    %c0_15 = arith.constant 0 : index
    %c3 = arith.constant 3 : index
    %c0_16 = arith.constant 0 : index
    %16 = vector.load %arg3[%c0_15, %c3, %c0_16] : memref<8x32x32xf32, #tpu.memory_space<vmem>>, vector<8x1x32xf32>
    %17 = vector.shape_cast %16 : vector<8x1x32xf32> to vector<8x32xf32>
    %18 = vector.shape_cast %12 : vector<8x32xf32> to vector<8x1x32xf32>
    tpu.vector_store %arg3[%c0_15, %c3, %c0_16], %18 {strides = array<i32>} : memref<8x32x32xf32, #tpu.memory_space<vmem>>, vector<8x1x32xf32>,
    %c0_17 = arith.constant 0 : index
    %c2_18 = arith.constant 2 : index
    %c0_19 = arith.constant 0 : index
    %19 = vector.load %arg2[%c0_17, %c2_18, %c0_19] : memref<8x16x16xf32, #tpu.memory_space<vmem>>, vector<8x1x16xf32>
    %20 = vector.shape_cast %19 : vector<8x1x16xf32> to vector<8x16xf32>
    %cst_20 = arith.constant dense<0.000000e+00> : vector<8x32xf32>
    %21 = tpu.matmul %20, %0, %cst_20 {dimension_numbers = #tpu.dot_dimension_numbers<[1], [0], [0], [1], [0, 0, 1, 1], [], []>} : vector<8x16xf32>, vector<16x32xf32>, vector<8x32xf32> -> vector<8x32xf32>
    %c0_21 = arith.constant 0 : index
    %c4 = arith.constant 4 : index
    %c0_22 = arith.constant 0 : index
    %22 = vector.load %arg3[%c0_21, %c4, %c0_22] : memref<8x32x32xf32, #tpu.memory_space<vmem>>, vector<8x1x32xf32>
    %23 = vector.shape_cast %22 : vector<8x1x32xf32> to vector<8x32xf32>
    %24 = vector.shape_cast %21 : vector<8x32xf32> to vector<8x1x32xf32>
    tpu.vector_store %arg3[%c0_21, %c4, %c0_22], %24 {strides = array<i32>} : memref<8x32x32xf32, #tpu.memory_space<vmem>>, vector<8x1x32xf32>,
    %c0_23 = arith.constant 0 : index
    %c5 = arith.constant 5 : index
    %c0_24 = arith.constant 0 : index
    %25 = vector.load %arg3[%c0_23, %c5, %c0_24] : memref<8x32x32xf32, #tpu.memory_space<vmem>>, vector<8x1x32xf32>
    %26 = vector.shape_cast %25 : vector<8x1x32xf32> to vector<8x32xf32>
    %27 = vector.shape_cast %21 : vector<8x32xf32> to vector<8x1x32xf32>
    tpu.vector_store %arg3[%c0_23, %c5, %c0_24], %27 {strides = array<i32>} : memref<8x32x32xf32, #tpu.memory_space<vmem>>, vector<8x1x32xf32>,
    %c0_25 = arith.constant 0 : index
    %c3_26 = arith.constant 3 : index
    %c0_27 = arith.constant 0 : index
    %28 = vector.load %arg2[%c0_25, %c3_26, %c0_27] : memref<8x16x16xf32, #tpu.memory_space<vmem>>, vector<8x1x16xf32>
    %29 = vector.shape_cast %28 : vector<8x1x16xf32> to vector<8x16xf32>
    %cst_28 = arith.constant dense<0.000000e+00> : vector<8x32xf32>
    %30 = tpu.matmul %29, %0, %cst_28 {dimension_numbers = #tpu.dot_dimension_numbers<[1], [0], [0], [1], [0, 0, 1, 1], [], []>} : vector<8x16xf32>, vector<16x32xf32>, vector<8x32xf32> -> vector<8x32xf32>
    %c0_29 = arith.constant 0 : index
    %c6 = arith.constant 6 : index
    %c0_30 = arith.constant 0 : index
    %31 = vector.load %arg3[%c0_29, %c6, %c0_30] : memref<8x32x32xf32, #tpu.memory_space<vmem>>, vector<8x1x32xf32>
    %32 = vector.shape_cast %31 : vector<8x1x32xf32> to vector<8x32xf32>
    %33 = vector.shape_cast %30 : vector<8x32xf32> to vector<8x1x32xf32>
    tpu.vector_store %arg3[%c0_29, %c6, %c0_30], %33 {strides = array<i32>} : memref<8x32x32xf32, #tpu.memory_space<vmem>>, vector<8x1x32xf32>,
    %c0_31 = arith.constant 0 : index
    %c7 = arith.constant 7 : index
    %c0_32 = arith.constant 0 : index
    %34 = vector.load %arg3[%c0_31, %c7, %c0_32] : memref<8x32x32xf32, #tpu.memory_space<vmem>>, vector<8x1x32xf32>
    %35 = vector.shape_cast %34 : vector<8x1x32xf32> to vector<8x32xf32>
    %36 = vector.shape_cast %30 : vector<8x32xf32> to vector<8x1x32xf32>
    tpu.vector_store %arg3[%c0_31, %c7, %c0_32], %36 {strides = array<i32>} : memref<8x32x32xf32, #tpu.memory_space<vmem>>, vector<8x1x32xf32>,
    %c0_33 = arith.constant 0 : index
    %c4_34 = arith.constant 4 : index
    %c0_35 = arith.constant 0 : index
    %37 = vector.load %arg2[%c0_33, %c4_34, %c0_35] : memref<8x16x16xf32, #tpu.memory_space<vmem>>, vector<8x1x16xf32>
    %38 = vector.shape_cast %37 : vector<8x1x16xf32> to vector<8x16xf32>
    %cst_36 = arith.constant dense<0.000000e+00> : vector<8x32xf32>
    %39 = tpu.matmul %38, %0, %cst_36 {dimension_numbers = #tpu.dot_dimension_numbers<[1], [0], [0], [1], [0, 0, 1, 1], [], []>} : vector<8x16xf32>, vector<16x32xf32>, vector<8x32xf32> -> vector<8x32xf32>
    %c0_37 = arith.constant 0 : index
    %c8 = arith.constant 8 : index
    %c0_38 = arith.constant 0 : index
    %40 = vector.load %arg3[%c0_37, %c8, %c0_38] : memref<8x32x32xf32, #tpu.memory_space<vmem>>, vector<8x1x32xf32>
    %41 = vector.shape_cast %40 : vector<8x1x32xf32> to vector<8x32xf32>
    %42 = vector.shape_cast %39 : vector<8x32xf32> to vector<8x1x32xf32>
    tpu.vector_store %arg3[%c0_37, %c8, %c0_38], %42 {strides = array<i32>} : memref<8x32x32xf32, #tpu.memory_space<vmem>>, vector<8x1x32xf32>,
    %c0_39 = arith.constant 0 : index
    %c9 = arith.constant 9 : index
    %c0_40 = arith.constant 0 : index
    %43 = vector.load %arg3[%c0_39, %c9, %c0_40] : memref<8x32x32xf32, #tpu.memory_space<vmem>>, vector<8x1x32xf32>
    %44 = vector.shape_cast %43 : vector<8x1x32xf32> to vector<8x32xf32>
    %45 = vector.shape_cast %39 : vector<8x32xf32> to vector<8x1x32xf32>
    tpu.vector_store %arg3[%c0_39, %c9, %c0_40], %45 {strides = array<i32>} : memref<8x32x32xf32, #tpu.memory_space<vmem>>, vector<8x1x32xf32>,
    %c0_41 = arith.constant 0 : index
    %c5_42 = arith.constant 5 : index
    %c0_43 = arith.constant 0 : index
    %46 = vector.load %arg2[%c0_41, %c5_42, %c0_43] : memref<8x16x16xf32, #tpu.memory_space<vmem>>, vector<8x1x16xf32>
    %47 = vector.shape_cast %46 : vector<8x1x16xf32> to vector<8x16xf32>
    %cst_44 = arith.constant dense<0.000000e+00> : vector<8x32xf32>
    %48 = tpu.matmul %47, %0, %cst_44 {dimension_numbers = #tpu.dot_dimension_numbers<[1], [0], [0], [1], [0, 0, 1, 1], [], []>} : vector<8x16xf32>, vector<16x32xf32>, vector<8x32xf32> -> vector<8x32xf32>
    %c0_45 = arith.constant 0 : index
    %c10 = arith.constant 10 : index
    %c0_46 = arith.constant 0 : index
    %49 = vector.load %arg3[%c0_45, %c10, %c0_46] : memref<8x32x32xf32, #tpu.memory_space<vmem>>, vector<8x1x32xf32>
    %50 = vector.shape_cast %49 : vector<8x1x32xf32> to vector<8x32xf32>
    %51 = vector.shape_cast %48 : vector<8x32xf32> to vector<8x1x32xf32>
    tpu.vector_store %arg3[%c0_45, %c10, %c0_46], %51 {strides = array<i32>} : memref<8x32x32xf32, #tpu.memory_space<vmem>>, vector<8x1x32xf32>,
    %c0_47 = arith.constant 0 : index
    %c11 = arith.constant 11 : index
    %c0_48 = arith.constant 0 : index
    %52 = vector.load %arg3[%c0_47, %c11, %c0_48] : memref<8x32x32xf32, #tpu.memory_space<vmem>>, vector<8x1x32xf32>
    %53 = vector.shape_cast %52 : vector<8x1x32xf32> to vector<8x32xf32>
    %54 = vector.shape_cast %48 : vector<8x32xf32> to vector<8x1x32xf32>
    tpu.vector_store %arg3[%c0_47, %c11, %c0_48], %54 {strides = array<i32>} : memref<8x32x32xf32, #tpu.memory_space<vmem>>, vector<8x1x32xf32>,
    %c0_49 = arith.constant 0 : index
    %c6_50 = arith.constant 6 : index
    %c0_51 = arith.constant 0 : index
    %55 = vector.load %arg2[%c0_49, %c6_50, %c0_51] : memref<8x16x16xf32, #tpu.memory_space<vmem>>, vector<8x1x16xf32>
    %56 = vector.shape_cast %55 : vector<8x1x16xf32> to vector<8x16xf32>
    %cst_52 = arith.constant dense<0.000000e+00> : vector<8x32xf32>
    %57 = tpu.matmul %56, %0, %cst_52 {dimension_numbers = #tpu.dot_dimension_numbers<[1], [0], [0], [1], [0, 0, 1, 1], [], []>} : vector<8x16xf32>, vector<16x32xf32>, vector<8x32xf32> -> vector<8x32xf32>
    %c0_53 = arith.constant 0 : index
    %c12 = arith.constant 12 : index
    %c0_54 = arith.constant 0 : index
    %58 = vector.load %arg3[%c0_53, %c12, %c0_54] : memref<8x32x32xf32, #tpu.memory_space<vmem>>, vector<8x1x32xf32>
    %59 = vector.shape_cast %58 : vector<8x1x32xf32> to vector<8x32xf32>
    %60 = vector.shape_cast %57 : vector<8x32xf32> to vector<8x1x32xf32>
    tpu.vector_store %arg3[%c0_53, %c12, %c0_54], %60 {strides = array<i32>} : memref<8x32x32xf32, #tpu.memory_space<vmem>>, vector<8x1x32xf32>,
    %c0_55 = arith.constant 0 : index
    %c13 = arith.constant 13 : index
    %c0_56 = arith.constant 0 : index
    %61 = vector.load %arg3[%c0_55, %c13, %c0_56] : memref<8x32x32xf32, #tpu.memory_space<vmem>>, vector<8x1x32xf32>
    %62 = vector.shape_cast %61 : vector<8x1x32xf32> to vector<8x32xf32>
    %63 = vector.shape_cast %57 : vector<8x32xf32> to vector<8x1x32xf32>
    tpu.vector_store %arg3[%c0_55, %c13, %c0_56], %63 {strides = array<i32>} : memref<8x32x32xf32, #tpu.memory_space<vmem>>, vector<8x1x32xf32>,
    %c0_57 = arith.constant 0 : index
    %c7_58 = arith.constant 7 : index
    %c0_59 = arith.constant 0 : index
    %64 = vector.load %arg2[%c0_57, %c7_58, %c0_59] : memref<8x16x16xf32, #tpu.memory_space<vmem>>, vector<8x1x16xf32>
    %65 = vector.shape_cast %64 : vector<8x1x16xf32> to vector<8x16xf32>
    %cst_60 = arith.constant dense<0.000000e+00> : vector<8x32xf32>
    %66 = tpu.matmul %65, %0, %cst_60 {dimension_numbers = #tpu.dot_dimension_numbers<[1], [0], [0], [1], [0, 0, 1, 1], [], []>} : vector<8x16xf32>, vector<16x32xf32>, vector<8x32xf32> -> vector<8x32xf32>
    %c0_61 = arith.constant 0 : index
    %c14 = arith.constant 14 : index
    %c0_62 = arith.constant 0 : index
    %67 = vector.load %arg3[%c0_61, %c14, %c0_62] : memref<8x32x32xf32, #tpu.memory_space<vmem>>, vector<8x1x32xf32>
    %68 = vector.shape_cast %67 : vector<8x1x32xf32> to vector<8x32xf32>
    %69 = vector.shape_cast %66 : vector<8x32xf32> to vector<8x1x32xf32>
    tpu.vector_store %arg3[%c0_61, %c14, %c0_62], %69 {strides = array<i32>} : memref<8x32x32xf32, #tpu.memory_space<vmem>>, vector<8x1x32xf32>,
    %c0_63 = arith.constant 0 : index
    %c15 = arith.constant 15 : index
    %c0_64 = arith.constant 0 : index
    %70 = vector.load %arg3[%c0_63, %c15, %c0_64] : memref<8x32x32xf32, #tpu.memory_space<vmem>>, vector<8x1x32xf32>
    %71 = vector.shape_cast %70 : vector<8x1x32xf32> to vector<8x32xf32>
    %72 = vector.shape_cast %66 : vector<8x32xf32> to vector<8x1x32xf32>
    tpu.vector_store %arg3[%c0_63, %c15, %c0_64], %72 {strides = array<i32>} : memref<8x32x32xf32, #tpu.memory_space<vmem>>, vector<8x1x32xf32>,
    %c0_65 = arith.constant 0 : index
    %c8_66 = arith.constant 8 : index
    %c0_67 = arith.constant 0 : index
    %73 = vector.load %arg2[%c0_65, %c8_66, %c0_67] : memref<8x16x16xf32, #tpu.memory_space<vmem>>, vector<8x1x16xf32>
    %74 = vector.shape_cast %73 : vector<8x1x16xf32> to vector<8x16xf32>
    %cst_68 = arith.constant dense<0.000000e+00> : vector<8x32xf32>
    %75 = tpu.matmul %74, %0, %cst_68 {dimension_numbers = #tpu.dot_dimension_numbers<[1], [0], [0], [1], [0, 0, 1, 1], [], []>} : vector<8x16xf32>, vector<16x32xf32>, vector<8x32xf32> -> vector<8x32xf32>
    %c0_69 = arith.constant 0 : index
    %c16 = arith.constant 16 : index
    %c0_70 = arith.constant 0 : index
    %76 = vector.load %arg3[%c0_69, %c16, %c0_70] : memref<8x32x32xf32, #tpu.memory_space<vmem>>, vector<8x1x32xf32>
    %77 = vector.shape_cast %76 : vector<8x1x32xf32> to vector<8x32xf32>
    %78 = vector.shape_cast %75 : vector<8x32xf32> to vector<8x1x32xf32>
    tpu.vector_store %arg3[%c0_69, %c16, %c0_70], %78 {strides = array<i32>} : memref<8x32x32xf32, #tpu.memory_space<vmem>>, vector<8x1x32xf32>,
    %c0_71 = arith.constant 0 : index
    %c17 = arith.constant 17 : index
    %c0_72 = arith.constant 0 : index
    %79 = vector.load %arg3[%c0_71, %c17, %c0_72] : memref<8x32x32xf32, #tpu.memory_space<vmem>>, vector<8x1x32xf32>
    %80 = vector.shape_cast %79 : vector<8x1x32xf32> to vector<8x32xf32>
    %81 = vector.shape_cast %75 : vector<8x32xf32> to vector<8x1x32xf32>
    tpu.vector_store %arg3[%c0_71, %c17, %c0_72], %81 {strides = array<i32>} : memref<8x32x32xf32, #tpu.memory_space<vmem>>, vector<8x1x32xf32>,
    %c0_73 = arith.constant 0 : index
    %c9_74 = arith.constant 9 : index
    %c0_75 = arith.constant 0 : index
    %82 = vector.load %arg2[%c0_73, %c9_74, %c0_75] : memref<8x16x16xf32, #tpu.memory_space<vmem>>, vector<8x1x16xf32>
    %83 = vector.shape_cast %82 : vector<8x1x16xf32> to vector<8x16xf32>
    %cst_76 = arith.constant dense<0.000000e+00> : vector<8x32xf32>
    %84 = tpu.matmul %83, %0, %cst_76 {dimension_numbers = #tpu.dot_dimension_numbers<[1], [0], [0], [1], [0, 0, 1, 1], [], []>} : vector<8x16xf32>, vector<16x32xf32>, vector<8x32xf32> -> vector<8x32xf32>
    %c0_77 = arith.constant 0 : index
    %c18 = arith.constant 18 : index
    %c0_78 = arith.constant 0 : index
    %85 = vector.load %arg3[%c0_77, %c18, %c0_78] : memref<8x32x32xf32, #tpu.memory_space<vmem>>, vector<8x1x32xf32>
    %86 = vector.shape_cast %85 : vector<8x1x32xf32> to vector<8x32xf32>
    %87 = vector.shape_cast %84 : vector<8x32xf32> to vector<8x1x32xf32>
    tpu.vector_store %arg3[%c0_77, %c18, %c0_78], %87 {strides = array<i32>} : memref<8x32x32xf32, #tpu.memory_space<vmem>>, vector<8x1x32xf32>,
    %c0_79 = arith.constant 0 : index
    %c19 = arith.constant 19 : index
    %c0_80 = arith.constant 0 : index
    %88 = vector.load %arg3[%c0_79, %c19, %c0_80] : memref<8x32x32xf32, #tpu.memory_space<vmem>>, vector<8x1x32xf32>
    %89 = vector.shape_cast %88 : vector<8x1x32xf32> to vector<8x32xf32>
    %90 = vector.shape_cast %84 : vector<8x32xf32> to vector<8x1x32xf32>
    tpu.vector_store %arg3[%c0_79, %c19, %c0_80], %90 {strides = array<i32>} : memref<8x32x32xf32, #tpu.memory_space<vmem>>, vector<8x1x32xf32>,
    %c0_81 = arith.constant 0 : index
    %c10_82 = arith.constant 10 : index
    %c0_83 = arith.constant 0 : index
    %91 = vector.load %arg2[%c0_81, %c10_82, %c0_83] : memref<8x16x16xf32, #tpu.memory_space<vmem>>, vector<8x1x16xf32>
    %92 = vector.shape_cast %91 : vector<8x1x16xf32> to vector<8x16xf32>
    %cst_84 = arith.constant dense<0.000000e+00> : vector<8x32xf32>
    %93 = tpu.matmul %92, %0, %cst_84 {dimension_numbers = #tpu.dot_dimension_numbers<[1], [0], [0], [1], [0, 0, 1, 1], [], []>} : vector<8x16xf32>, vector<16x32xf32>, vector<8x32xf32> -> vector<8x32xf32>
    %c0_85 = arith.constant 0 : index
    %c20 = arith.constant 20 : index
    %c0_86 = arith.constant 0 : index
    %94 = vector.load %arg3[%c0_85, %c20, %c0_86] : memref<8x32x32xf32, #tpu.memory_space<vmem>>, vector<8x1x32xf32>
    %95 = vector.shape_cast %94 : vector<8x1x32xf32> to vector<8x32xf32>
    %96 = vector.shape_cast %93 : vector<8x32xf32> to vector<8x1x32xf32>
    tpu.vector_store %arg3[%c0_85, %c20, %c0_86], %96 {strides = array<i32>} : memref<8x32x32xf32, #tpu.memory_space<vmem>>, vector<8x1x32xf32>,
    %c0_87 = arith.constant 0 : index
    %c21 = arith.constant 21 : index
    %c0_88 = arith.constant 0 : index
    %97 = vector.load %arg3[%c0_87, %c21, %c0_88] : memref<8x32x32xf32, #tpu.memory_space<vmem>>, vector<8x1x32xf32>
    %98 = vector.shape_cast %97 : vector<8x1x32xf32> to vector<8x32xf32>
    %99 = vector.shape_cast %93 : vector<8x32xf32> to vector<8x1x32xf32>
    tpu.vector_store %arg3[%c0_87, %c21, %c0_88], %99 {strides = array<i32>} : memref<8x32x32xf32, #tpu.memory_space<vmem>>, vector<8x1x32xf32>,
    %c0_89 = arith.constant 0 : index
    %c11_90 = arith.constant 11 : index
    %c0_91 = arith.constant 0 : index
    %100 = vector.load %arg2[%c0_89, %c11_90, %c0_91] : memref<8x16x16xf32, #tpu.memory_space<vmem>>, vector<8x1x16xf32>
    %101 = vector.shape_cast %100 : vector<8x1x16xf32> to vector<8x16xf32>
    %cst_92 = arith.constant dense<0.000000e+00> : vector<8x32xf32>
    %102 = tpu.matmul %101, %0, %cst_92 {dimension_numbers = #tpu.dot_dimension_numbers<[1], [0], [0], [1], [0, 0, 1, 1], [], []>} : vector<8x16xf32>, vector<16x32xf32>, vector<8x32xf32> -> vector<8x32xf32>
    %c0_93 = arith.constant 0 : index
    %c22 = arith.constant 22 : index
    %c0_94 = arith.constant 0 : index
    %103 = vector.load %arg3[%c0_93, %c22, %c0_94] : memref<8x32x32xf32, #tpu.memory_space<vmem>>, vector<8x1x32xf32>
    %104 = vector.shape_cast %103 : vector<8x1x32xf32> to vector<8x32xf32>
    %105 = vector.shape_cast %102 : vector<8x32xf32> to vector<8x1x32xf32>
    tpu.vector_store %arg3[%c0_93, %c22, %c0_94], %105 {strides = array<i32>} : memref<8x32x32xf32, #tpu.memory_space<vmem>>, vector<8x1x32xf32>,
    %c0_95 = arith.constant 0 : index
    %c23 = arith.constant 23 : index
    %c0_96 = arith.constant 0 : index
    %106 = vector.load %arg3[%c0_95, %c23, %c0_96] : memref<8x32x32xf32, #tpu.memory_space<vmem>>, vector<8x1x32xf32>
    %107 = vector.shape_cast %106 : vector<8x1x32xf32> to vector<8x32xf32>
    %108 = vector.shape_cast %102 : vector<8x32xf32> to vector<8x1x32xf32>
    tpu.vector_store %arg3[%c0_95, %c23, %c0_96], %108 {strides = array<i32>} : memref<8x32x32xf32, #tpu.memory_space<vmem>>, vector<8x1x32xf32>,
    %c0_97 = arith.constant 0 : index
    %c12_98 = arith.constant 12 : index
    %c0_99 = arith.constant 0 : index
    %109 = vector.load %arg2[%c0_97, %c12_98, %c0_99] : memref<8x16x16xf32, #tpu.memory_space<vmem>>, vector<8x1x16xf32>
    %110 = vector.shape_cast %109 : vector<8x1x16xf32> to vector<8x16xf32>
    %cst_100 = arith.constant dense<0.000000e+00> : vector<8x32xf32>
    %111 = tpu.matmul %110, %0, %cst_100 {dimension_numbers = #tpu.dot_dimension_numbers<[1], [0], [0], [1], [0, 0, 1, 1], [], []>} : vector<8x16xf32>, vector<16x32xf32>, vector<8x32xf32> -> vector<8x32xf32>
    %c0_101 = arith.constant 0 : index
    %c24 = arith.constant 24 : index
    %c0_102 = arith.constant 0 : index
    %112 = vector.load %arg3[%c0_101, %c24, %c0_102] : memref<8x32x32xf32, #tpu.memory_space<vmem>>, vector<8x1x32xf32>
    %113 = vector.shape_cast %112 : vector<8x1x32xf32> to vector<8x32xf32>
    %114 = vector.shape_cast %111 : vector<8x32xf32> to vector<8x1x32xf32>
    tpu.vector_store %arg3[%c0_101, %c24, %c0_102], %114 {strides = array<i32>} : memref<8x32x32xf32, #tpu.memory_space<vmem>>, vector<8x1x32xf32>,
    %c0_103 = arith.constant 0 : index
    %c25 = arith.constant 25 : index
    %c0_104 = arith.constant 0 : index
    %115 = vector.load %arg3[%c0_103, %c25, %c0_104] : memref<8x32x32xf32, #tpu.memory_space<vmem>>, vector<8x1x32xf32>
    %116 = vector.shape_cast %115 : vector<8x1x32xf32> to vector<8x32xf32>
    %117 = vector.shape_cast %111 : vector<8x32xf32> to vector<8x1x32xf32>
    tpu.vector_store %arg3[%c0_103, %c25, %c0_104], %117 {strides = array<i32>} : memref<8x32x32xf32, #tpu.memory_space<vmem>>, vector<8x1x32xf32>,
    %c0_105 = arith.constant 0 : index
    %c13_106 = arith.constant 13 : index
    %c0_107 = arith.constant 0 : index
    %118 = vector.load %arg2[%c0_105, %c13_106, %c0_107] : memref<8x16x16xf32, #tpu.memory_space<vmem>>, vector<8x1x16xf32>
    %119 = vector.shape_cast %118 : vector<8x1x16xf32> to vector<8x16xf32>
    %cst_108 = arith.constant dense<0.000000e+00> : vector<8x32xf32>
    %120 = tpu.matmul %119, %0, %cst_108 {dimension_numbers = #tpu.dot_dimension_numbers<[1], [0], [0], [1], [0, 0, 1, 1], [], []>} : vector<8x16xf32>, vector<16x32xf32>, vector<8x32xf32> -> vector<8x32xf32>
    %c0_109 = arith.constant 0 : index
    %c26 = arith.constant 26 : index
    %c0_110 = arith.constant 0 : index
    %121 = vector.load %arg3[%c0_109, %c26, %c0_110] : memref<8x32x32xf32, #tpu.memory_space<vmem>>, vector<8x1x32xf32>
    %122 = vector.shape_cast %121 : vector<8x1x32xf32> to vector<8x32xf32>
    %123 = vector.shape_cast %120 : vector<8x32xf32> to vector<8x1x32xf32>
    tpu.vector_store %arg3[%c0_109, %c26, %c0_110], %123 {strides = array<i32>} : memref<8x32x32xf32, #tpu.memory_space<vmem>>, vector<8x1x32xf32>,
    %c0_111 = arith.constant 0 : index
    %c27 = arith.constant 27 : index
    %c0_112 = arith.constant 0 : index
    %124 = vector.load %arg3[%c0_111, %c27, %c0_112] : memref<8x32x32xf32, #tpu.memory_space<vmem>>, vector<8x1x32xf32>
    %125 = vector.shape_cast %124 : vector<8x1x32xf32> to vector<8x32xf32>
    %126 = vector.shape_cast %120 : vector<8x32xf32> to vector<8x1x32xf32>
    tpu.vector_store %arg3[%c0_111, %c27, %c0_112], %126 {strides = array<i32>} : memref<8x32x32xf32, #tpu.memory_space<vmem>>, vector<8x1x32xf32>,
    %c0_113 = arith.constant 0 : index
    %c14_114 = arith.constant 14 : index
    %c0_115 = arith.constant 0 : index
    %127 = vector.load %arg2[%c0_113, %c14_114, %c0_115] : memref<8x16x16xf32, #tpu.memory_space<vmem>>, vector<8x1x16xf32>
    %128 = vector.shape_cast %127 : vector<8x1x16xf32> to vector<8x16xf32>
    %cst_116 = arith.constant dense<0.000000e+00> : vector<8x32xf32>
    %129 = tpu.matmul %128, %0, %cst_116 {dimension_numbers = #tpu.dot_dimension_numbers<[1], [0], [0], [1], [0, 0, 1, 1], [], []>} : vector<8x16xf32>, vector<16x32xf32>, vector<8x32xf32> -> vector<8x32xf32>
    %c0_117 = arith.constant 0 : index
    %c28 = arith.constant 28 : index
    %c0_118 = arith.constant 0 : index
    %130 = vector.load %arg3[%c0_117, %c28, %c0_118] : memref<8x32x32xf32, #tpu.memory_space<vmem>>, vector<8x1x32xf32>
    %131 = vector.shape_cast %130 : vector<8x1x32xf32> to vector<8x32xf32>
    %132 = vector.shape_cast %129 : vector<8x32xf32> to vector<8x1x32xf32>
    tpu.vector_store %arg3[%c0_117, %c28, %c0_118], %132 {strides = array<i32>} : memref<8x32x32xf32, #tpu.memory_space<vmem>>, vector<8x1x32xf32>,
    %c0_119 = arith.constant 0 : index
    %c29 = arith.constant 29 : index
    %c0_120 = arith.constant 0 : index
    %133 = vector.load %arg3[%c0_119, %c29, %c0_120] : memref<8x32x32xf32, #tpu.memory_space<vmem>>, vector<8x1x32xf32>
    %134 = vector.shape_cast %133 : vector<8x1x32xf32> to vector<8x32xf32>
    %135 = vector.shape_cast %129 : vector<8x32xf32> to vector<8x1x32xf32>
    tpu.vector_store %arg3[%c0_119, %c29, %c0_120], %135 {strides = array<i32>} : memref<8x32x32xf32, #tpu.memory_space<vmem>>, vector<8x1x32xf32>,
    %c0_121 = arith.constant 0 : index
    %c15_122 = arith.constant 15 : index
    %c0_123 = arith.constant 0 : index
    %136 = vector.load %arg2[%c0_121, %c15_122, %c0_123] : memref<8x16x16xf32, #tpu.memory_space<vmem>>, vector<8x1x16xf32>
    %137 = vector.shape_cast %136 : vector<8x1x16xf32> to vector<8x16xf32>
    %cst_124 = arith.constant dense<0.000000e+00> : vector<8x32xf32>
    %138 = tpu.matmul %137, %0, %cst_124 {dimension_numbers = #tpu.dot_dimension_numbers<[1], [0], [0], [1], [0, 0, 1, 1], [], []>} : vector<8x16xf32>, vector<16x32xf32>, vector<8x32xf32> -> vector<8x32xf32>
    %c0_125 = arith.constant 0 : index
    %c30 = arith.constant 30 : index
    %c0_126 = arith.constant 0 : index
    %139 = vector.load %arg3[%c0_125, %c30, %c0_126] : memref<8x32x32xf32, #tpu.memory_space<vmem>>, vector<8x1x32xf32>
    %140 = vector.shape_cast %139 : vector<8x1x32xf32> to vector<8x32xf32>
    %141 = vector.shape_cast %138 : vector<8x32xf32> to vector<8x1x32xf32>
    tpu.vector_store %arg3[%c0_125, %c30, %c0_126], %141 {strides = array<i32>} : memref<8x32x32xf32, #tpu.memory_space<vmem>>, vector<8x1x32xf32>,
    %c0_127 = arith.constant 0 : index
    %c31 = arith.constant 31 : index
    %c0_128 = arith.constant 0 : index
    %142 = vector.load %arg3[%c0_127, %c31, %c0_128] : memref<8x32x32xf32, #tpu.memory_space<vmem>>, vector<8x1x32xf32>
    %143 = vector.shape_cast %142 : vector<8x1x32xf32> to vector<8x32xf32>
    %144 = vector.shape_cast %138 : vector<8x32xf32> to vector<8x1x32xf32>
    tpu.vector_store %arg3[%c0_127, %c31, %c0_128], %144 {strides = array<i32>} : memref<8x32x32xf32, #tpu.memory_space<vmem>>, vector<8x1x32xf32>,
    return
  }
  func.func @transform_0(%arg0: i32) -> (i32, i32) {
    %c0_i32 = arith.constant 0 : i32
    %c0_i32_0 = arith.constant 0 : i32
    %c0_i32_1 = arith.constant 0 : i32
    return %c0_i32, %c0_i32_0 : i32, i32
  }
  func.func @transform_1(%arg0: i32) -> (i32, i32, i32) {
    %c0_i32 = arith.constant 0 : i32
    %c0_i32_0 = arith.constant 0 : i32
    %c0_i32_1 = arith.constant 0 : i32
    return %arg0, %c0_i32, %c0_i32_0 : i32, i32, i32
  }
  func.func @transform_2(%arg0: i32) -> (i32, i32, i32) {
    %c0_i32 = arith.constant 0 : i32
    %c0_i32_0 = arith.constant 0 : i32
    %c0_i32_1 = arith.constant 0 : i32
    return %arg0, %c0_i32, %c0_i32_0 : i32, i32, i32
  }
}

</mosaic_0001>

<llo_original>
// kernel: interpolate.1
$region0: #{interpolate.1}
  #allocation0 [shape = 'u32[]', space=smem, size = 0x4, offset = 0x4, fixed_abs, tag = 'smem constant byte address 0x4 - core index']
  #allocation1 [shape = 'u32[144,128]{1,0:T(1,128)}', space=vmem, size = 0x12000, scoped, tag = 'internal scratch']
  %s0 = inlined_call_operand.vmem [shape: f32[16,32], index: 0, kind: input, shape index: {}]
  %s1 = inlined_call_operand.hbm [shape: f32[8,16,16], index: 1, kind: input, shape index: {}]
  %s2 = inlined_call_operand.hbm [shape: f32[8,32,32], index: 2, kind: output, shape index: {}]
  %s3 = sld [smem:[#allocation0]]
  $region22: #{interpolate.1} parent=0
    _
  %s5 = ssub.s32 1, %s3
  %s6 = scalar_select 0, %s5, %s3
  $region1: #{interpolate.1} parent=0
    #allocation2 [shape = 'u8[65536]{0}', space=vmem, size = 0x10000, scoped, tag = 'input window, operand 1, single buffered']
    #allocation3 [shape = 's32[1]{0}', space=sflag, size = 0x4, scoped, tag = 'scoped memory for interpolate.1']
    #allocation4 [shape = 's32[1]{0}', space=sflag, size = 0x4, scoped, tag = 'scoped memory for interpolate.1']
    #allocation5 [shape = 'u8[131072]{0}', space=vmem, size = 0x20000, scoped, tag = 'output window, operand 0, single buffered']
    %7 = vsyncpa [#allocation3], 0
    %8 = vsyncpa [#allocation4], 0
    // Predicated region
    $region2: #{interpolate.1} parent=1 // pred_check
      _
    $region3: #{interpolate.1} parent=1 // pred_check_branch
      %10 = sbr.rel (0) target = $region5
    $region4: #{interpolate.1} parent=1 // pred_region
      _
    $region5: #{interpolate.1} parent=1 // pred_fallthru
      _
    // Predicated region
    $region6: #{interpolate.1} parent=1 // pred_check
      _
    $region7: #{interpolate.1} parent=1 // pred_check_branch
      %12 = sbr.rel (0) target = $region9
    $region8: #{interpolate.1} parent=1 // pred_region
      %s14 = ssub.s32 2048, 2048
      %15 = vsyncadd [#allocation3], %s14
      %s16 = sshll.u32 [#allocation2], 4
      %s17 = int_to_ptr.vmem [resolvable:$true] %s16
      %22 = dma.hbm_to_vmem [thread:$0]  %s1, 2048, %s17, [#allocation3], 128, 128, 8
    $region9: #{interpolate.1} parent=1 // pred_fallthru
      _
    // Predicated region
    $region10: #{interpolate.1} parent=1 // pred_check
      _
    $region11: #{interpolate.1} parent=1 // pred_check_branch
      %24 = sbr.rel (0) target = $region13
    $region12: #{interpolate.1} parent=1 // pred_region
      %25 = dma.done [#allocation3], 2048
    $region13: #{interpolate.1} parent=1 // pred_fallthru
      _
    %v26 = vld [vmem:[%s0] sm:$0xff]
    %v27 = vld [vmem:[%s0 + $0x8] sm:$0xff]
    %v28 = vld [vmem:[#allocation2] sm:$0x1]
    %v29 = vld [vmem:[#allocation2 + $0x10] sm:$0x1]
    %v30 = vld [vmem:[#allocation2 + $0x20] sm:$0x1]
    %v31 = vld [vmem:[#allocation2 + $0x30] sm:$0x1]
    %v32 = vld [vmem:[#allocation2 + $0x40] sm:$0x1]
    %v33 = vld [vmem:[#allocation2 + $0x50] sm:$0x1]
    %v34 = vld [vmem:[#allocation2 + $0x60] sm:$0x1]
    %v35 = vld [vmem:[#allocation2 + $0x70] sm:$0x1]
    %v44 = vrot.slane %v29, 7
    %vm45 = vcmask 1041409
    %v46 = vsel %vm45, %v44, %v28
    %v47 = vrot.slane %v30, 6
    %vm48 = vcmask 1042434
    %v49 = vsel %vm48, %v47, %v46
    %v50 = vrot.slane %v31, 5
    %vm51 = vcmask 1043459
    %v52 = vsel %vm51, %v50, %v49
    %v53 = vrot.slane %v32, 4
    %vm54 = vcmask 1044484
    %v55 = vsel %vm54, %v53, %v52
    %v56 = vrot.slane %v33, 3
    %vm57 = vcmask 1045509
    %v58 = vsel %vm57, %v56, %v55
    %v59 = vrot.slane %v34, 2
    %vm60 = vcmask 1046534
    %v61 = vsel %vm60, %v59, %v58
    %v62 = vrot.slane %v35, 1
    %vm63 = vcmask 1047559
    %v64 = vsel %vm63, %v62, %v61
    %vm65 = vcmask 130048
    %v66 = vsel %vm65, %v64, 0
    %68 = vmatprep.subr.mxu0 0.0
    %69 = vmatpush1.msra.mxu0 %v26
    %70 = vmatprep.subr.mxu0 0.0
    %71 = vmatpush1.msra.mxu0 %v27
    %72 = vmatprep.subr.mxu0 0.0
    %73 = vmatpush1.msra.mxu0 0.0
    %74 = vmatprep.subr.mxu0 0.0
    %75 = vmatpush1.msra.mxu0 0.0
    %76 = vmatprep.subr.mxu0 0.0
    %77 = vmatpush1.msra.mxu0 0.0
    %78 = vmatprep.subr.mxu0 0.0
    %79 = vmatpush1.msra.mxu0 0.0
    %80 = vmatprep.subr.mxu0 0.0
    %81 = vmatpush1.msra.mxu0 0.0
    %82 = vmatprep.subr.mxu0 0.0
    %83 = vmatpush1.msra.mxu0 0.0
    %84 = vmatprep.subr.mxu0 0.0
    %85 = vmatpush1.msra.mxu0 0.0
    %86 = vmatprep.subr.mxu0 0.0
    %87 = vmatpush1.msra.mxu0 0.0
    %88 = vmatprep.subr.mxu0 0.0
    %89 = vmatpush1.msra.mxu0 0.0
    %90 = vmatprep.subr.mxu0 0.0
    %91 = vmatpush1.msra.mxu0 0.0
    %92 = vmatprep.subr.mxu0 0.0
    %93 = vmatpush1.msra.mxu0 0.0
    %94 = vmatprep.subr.mxu0 0.0
    %95 = vmatpush1.msra.mxu0 0.0
    %96 = vmatprep.subr.mxu0 0.0
    %97 = vmatpush1.msra.mxu0 0.0
    %98 = vmatprep.subr.mxu0 0.0
    %99 = vmatpush1.msra.mxu0 0.0
    %100 = vmatprep.subr.mxu0 0.0
    %101 = vmatpush1.msra.mxu0 0.0
    %102 = vmatprep.subr.mxu0 0.0
    %103 = vmatpush1.msra.mxu0 0.0
    %104 = vmatprep.subr.mxu0 0.0
    %105 = vmatpush1.msra.mxu0 0.0
    %106 = vmatprep.subr.mxu0 0.0
    %107 = vmatpush1.msra.mxu0 0.0
    %108 = vmatprep.subr.mxu0 0.0
    %109 = vmatpush1.msra.mxu0 0.0
    %110 = vmatprep.subr.mxu0 0.0
    %111 = vmatpush1.msra.mxu0 0.0
    %112 = vmatprep.subr.mxu0 0.0
    %113 = vmatpush1.msra.mxu0 0.0
    %114 = vmatprep.subr.mxu0 0.0
    %115 = vmatpush1.msra.mxu0 0.0
    %116 = vmatprep.subr.mxu0 0.0
    %117 = vmatpush1.msra.mxu0 0.0
    %118 = vmatprep.subr.mxu0 0.0
    %119 = vmatpush1.msra.mxu0 0.0
    %120 = vmatprep.subr.mxu0 0.0
    %121 = vmatpush1.msra.mxu0 0.0
    %122 = vmatprep.subr.mxu0 0.0
    %123 = vmatpush1.msra.mxu0 0.0
    %124 = vmatprep.subr.mxu0 0.0
    %125 = vmatpush1.msra.mxu0 0.0
    %126 = vmatprep.subr.mxu0 0.0
    %127 = vmatpush1.msra.mxu0 0.0
    %128 = vmatprep.subr.mxu0 0.0
    %129 = vmatpush1.msra.mxu0 0.0
    %130 = vmatprep.subr.mxu0 0.0
    %131 = vmatpush1.msra.mxu0 0.0
    %132 = vmatprep.mubr.f32.mxu0 0.0
    %133 = vmatmul.mubr.f32.gmra.mrb[0].mxu0 %v66
    %v134 = vpop.f32.mrb[0].mxu0
    %v135 = vadd.f32 0.0, %v134
    %v136 = vpop.f32.mrb[0].mxu0
    %137 = vdwg.mxu0
    %v139 = vcombine.high %v135, %v135
    %v141 = vunpack.c.l.s4 1966171168
    %v142 = vunpack.c.0.s8 %v141
    %v143 = vlaneseq
    %v144 = vshrl.u32 %v143, 7
    %v145 = vsub.s32 %v142, %v144
    %v146 = vrot.slane %v135, %v145
    %v148 = vunpack.c.l.s4 1966171168
    %v149 = vunpack.c.0.s8 %v148
    %v150 = vlaneseq
    %v151 = vshrl.u32 %v150, 7
    %v152 = vsub.s32 %v149, %v151
    %v153 = vrot.slane %v139, %v152
    %v154 = vcombine.high %v146, %v146
    %v155 = vcombine.high %v153, %v153
    %v157 = vunpack.c.l.s4 1966171168
    %v158 = vunpack.c.0.s8 %v157
    %v159 = vlaneseq
    %v160 = vshrl.u32 %v159, 7
    %v161 = vsub.s32 %v158, %v160
    %v162 = vrot.slane %v146, %v161
    %v164 = vunpack.c.l.s4 1966171168
    %v165 = vunpack.c.0.s8 %v164
    %v166 = vlaneseq
    %v167 = vshrl.u32 %v166, 7
    %v168 = vsub.s32 %v165, %v167
    %v169 = vrot.slane %v153, %v168
    %v171 = vunpack.c.l.s4 1966171168
    %v172 = vunpack.c.0.s8 %v171
    %v173 = vlaneseq
    %v174 = vshrl.u32 %v173, 7
    %v175 = vsub.s32 %v172, %v174
    %v176 = vrot.slane %v154, %v175
    %v178 = vunpack.c.l.s4 1966171168
    %v179 = vunpack.c.0.s8 %v178
    %v180 = vlaneseq
    %v181 = vshrl.u32 %v180, 7
    %v182 = vsub.s32 %v179, %v181
    %v183 = vrot.slane %v155, %v182
    %v184 = vcombine.high %v162, %v162
    %v185 = vcombine.high %v169, %v169
    %v186 = vcombine.high %v176, %v176
    %v187 = vcombine.high %v183, %v183
    %vm196 = vcmask 253952
    %197 = vst.msk [vmem:[#allocation5] sm:$0x1] %vm196, %v162
    %198 = vst.msk [vmem:[#allocation5 + $0x20] sm:$0x1] %vm196, %v176
    %199 = vst.msk [vmem:[#allocation5 + $0x40] sm:$0x1] %vm196, %v184
    %200 = vst.msk [vmem:[#allocation5 + $0x60] sm:$0x1] %vm196, %v186
    %201 = vst.msk [vmem:[#allocation5 + $0x80] sm:$0x1] %vm196, %v169
    %202 = vst.msk [vmem:[#allocation5 + $0xa0] sm:$0x1] %vm196, %v183
    %203 = vst.msk [vmem:[#allocation5 + $0xc0] sm:$0x1] %vm196, %v185
    %204 = vst.msk [vmem:[#allocation5 + $0xe0] sm:$0x1] %vm196, %v187
    %205 = vst.msk [vmem:[#allocation5 + $0x1] sm:$0x1] %vm196, %v162
    %206 = vst.msk [vmem:[#allocation5 + $0x21] sm:$0x1] %vm196, %v176
    %207 = vst.msk [vmem:[#allocation5 + $0x41] sm:$0x1] %vm196, %v184
    %208 = vst.msk [vmem:[#allocation5 + $0x61] sm:$0x1] %vm196, %v186
    %209 = vst.msk [vmem:[#allocation5 + $0x81] sm:$0x1] %vm196, %v169
    %210 = vst.msk [vmem:[#allocation5 + $0xa1] sm:$0x1] %vm196, %v183
    %211 = vst.msk [vmem:[#allocation5 + $0xc1] sm:$0x1] %vm196, %v185
    %212 = vst.msk [vmem:[#allocation5 + $0xe1] sm:$0x1] %vm196, %v187
    %v213 = vld [vmem:[#allocation2 + $0x1] sm:$0x1]
    %v214 = vld [vmem:[#allocation2 + $0x11] sm:$0x1]
    %v215 = vld [vmem:[#allocation2 + $0x21] sm:$0x1]
    %v216 = vld [vmem:[#allocation2 + $0x31] sm:$0x1]
    %v217 = vld [vmem:[#allocation2 + $0x41] sm:$0x1]
    %v218 = vld [vmem:[#allocation2 + $0x51] sm:$0x1]
    %v219 = vld [vmem:[#allocation2 + $0x61] sm:$0x1]
    %v220 = vld [vmem:[#allocation2 + $0x71] sm:$0x1]
    %v229 = vrot.slane %v214, 7
    %v230 = vsel %vm45, %v229, %v213
    %v231 = vrot.slane %v215, 6
    %v232 = vsel %vm48, %v231, %v230
    %v233 = vrot.slane %v216, 5
    %v234 = vsel %vm51, %v233, %v232
    %v235 = vrot.slane %v217, 4
    %v236 = vsel %vm54, %v235, %v234
    %v237 = vrot.slane %v218, 3
    %v238 = vsel %vm57, %v237, %v236
    %v239 = vrot.slane %v219, 2
    %v240 = vsel %vm60, %v239, %v238
    %v241 = vrot.slane %v220, 1
    %v242 = vsel %vm63, %v241, %v240
    %v243 = vsel %vm65, %v242, 0
    %245 = vmatprep.subr.mxu0 0.0
    %246 = vmatpush1.msra.mxu0 %v26
    %247 = vmatprep.subr.mxu0 0.0
    %248 = vmatpush1.msra.mxu0 %v27
    %249 = vmatprep.subr.mxu0 0.0
    %250 = vmatpush1.msra.mxu0 0.0
    %251 = vmatprep.subr.mxu0 0.0
    %252 = vmatpush1.msra.mxu0 0.0
    %253 = vmatprep.subr.mxu0 0.0
    %254 = vmatpush1.msra.mxu0 0.0
    %255 = vmatprep.subr.mxu0 0.0
    %256 = vmatpush1.msra.mxu0 0.0
    %257 = vmatprep.subr.mxu0 0.0
    %258 = vmatpush1.msra.mxu0 0.0
    %259 = vmatprep.subr.mxu0 0.0
    %260 = vmatpush1.msra.mxu0 0.0
    %261 = vmatprep.subr.mxu0 0.0
    %262 = vmatpush1.msra.mxu0 0.0
    %263 = vmatprep.subr.mxu0 0.0
    %264 = vmatpush1.msra.mxu0 0.0
    %265 = vmatprep.subr.mxu0 0.0
    %266 = vmatpush1.msra.mxu0 0.0
    %267 = vmatprep.subr.mxu0 0.0
    %268 = vmatpush1.msra.mxu0 0.0
    %269 = vmatprep.subr.mxu0 0.0
    %270 = vmatpush1.msra.mxu0 0.0
    %271 = vmatprep.subr.mxu0 0.0
    %272 = vmatpush1.msra.mxu0 0.0
    %273 = vmatprep.subr.mxu0 0.0
    %274 = vmatpush1.msra.mxu0 0.0
    %275 = vmatprep.subr.mxu0 0.0
    %276 = vmatpush1.msra.mxu0 0.0
    %277 = vmatprep.subr.mxu0 0.0
    %278 = vmatpush1.msra.mxu0 0.0
    %279 = vmatprep.subr.mxu0 0.0
    %280 = vmatpush1.msra.mxu0 0.0
    %281 = vmatprep.subr.mxu0 0.0
    %282 = vmatpush1.msra.mxu0 0.0
    %283 = vmatprep.subr.mxu0 0.0
    %284 = vmatpush1.msra.mxu0 0.0
    %285 = vmatprep.subr.mxu0 0.0
    %286 = vmatpush1.msra.mxu0 0.0
    %287 = vmatprep.subr.mxu0 0.0
    %288 = vmatpush1.msra.mxu0 0.0
    %289 = vmatprep.subr.mxu0 0.0
    %290 = vmatpush1.msra.mxu0 0.0
    %291 = vmatprep.subr.mxu0 0.0
    %292 = vmatpush1.msra.mxu0 0.0
    %293 = vmatprep.subr.mxu0 0.0
    %294 = vmatpush1.msra.mxu0 0.0
    %295 = vmatprep.subr.mxu0 0.0
    %296 = vmatpush1.msra.mxu0 0.0
    %297 = vmatprep.subr.mxu0 0.0
    %298 = vmatpush1.msra.mxu0 0.0
    %299 = vmatprep.subr.mxu0 0.0
    %300 = vmatpush1.msra.mxu0 0.0
    %301 = vmatprep.subr.mxu0 0.0
    %302 = vmatpush1.msra.mxu0 0.0
    %303 = vmatprep.subr.mxu0 0.0
    %304 = vmatpush1.msra.mxu0 0.0
    %305 = vmatprep.subr.mxu0 0.0
    %306 = vmatpush1.msra.mxu0 0.0
    %307 = vmatprep.subr.mxu0 0.0
    %308 = vmatpush1.msra.mxu0 0.0
    %309 = vmatprep.mubr.f32.mxu0 0.0
    %310 = vmatmul.mubr.f32.gmra.mrb[0].mxu0 %v243
    %v311 = vpop.f32.mrb[0].mxu0
    %v312 = vadd.f32 0.0, %v311
    %v313 = vpop.f32.mrb[0].mxu0
    %314 = vdwg.mxu0
    %v316 = vcombine.high %v312, %v312
    %v318 = vunpack.c.l.s4 1966171168
    %v319 = vunpack.c.0.s8 %v318
    %v320 = vlaneseq
    %v321 = vshrl.u32 %v320, 7
    %v322 = vsub.s32 %v319, %v321
    %v323 = vrot.slane %v312, %v322
    %v325 = vunpack.c.l.s4 1966171168
    %v326 = vunpack.c.0.s8 %v325
    %v327 = vlaneseq
    %v328 = vshrl.u32 %v327, 7
    %v329 = vsub.s32 %v326, %v328
    %v330 = vrot.slane %v316, %v329
    %v331 = vcombine.high %v323, %v323
    %v332 = vcombine.high %v330, %v330
    %v334 = vunpack.c.l.s4 1966171168
    %v335 = vunpack.c.0.s8 %v334
    %v336 = vlaneseq
    %v337 = vshrl.u32 %v336, 7
    %v338 = vsub.s32 %v335, %v337
    %v339 = vrot.slane %v323, %v338
    %v341 = vunpack.c.l.s4 1966171168
    %v342 = vunpack.c.0.s8 %v341
    %v343 = vlaneseq
    %v344 = vshrl.u32 %v343, 7
    %v345 = vsub.s32 %v342, %v344
    %v346 = vrot.slane %v330, %v345
    %v348 = vunpack.c.l.s4 1966171168
    %v349 = vunpack.c.0.s8 %v348
    %v350 = vlaneseq
    %v351 = vshrl.u32 %v350, 7
    %v352 = vsub.s32 %v349, %v351
    %v353 = vrot.slane %v331, %v352
    %v355 = vunpack.c.l.s4 1966171168
    %v356 = vunpack.c.0.s8 %v355
    %v357 = vlaneseq
    %v358 = vshrl.u32 %v357, 7
    %v359 = vsub.s32 %v356, %v358
    %v360 = vrot.slane %v332, %v359
    %v361 = vcombine.high %v339, %v339
    %v362 = vcombine.high %v346, %v346
    %v363 = vcombine.high %v353, %v353
    %v364 = vcombine.high %v360, %v360
    %373 = vst.msk [vmem:[#allocation5 + $0x2] sm:$0x1] %vm196, %v339
    %374 = vst.msk [vmem:[#allocation5 + $0x22] sm:$0x1] %vm196, %v353
    %375 = vst.msk [vmem:[#allocation5 + $0x42] sm:$0x1] %vm196, %v361
    %376 = vst.msk [vmem:[#allocation5 + $0x62] sm:$0x1] %vm196, %v363
    %377 = vst.msk [vmem:[#allocation5 + $0x82] sm:$0x1] %vm196, %v346
    %378 = vst.msk [vmem:[#allocation5 + $0xa2] sm:$0x1] %vm196, %v360
    %379 = vst.msk [vmem:[#allocation5 + $0xc2] sm:$0x1] %vm196, %v362
    %380 = vst.msk [vmem:[#allocation5 + $0xe2] sm:$0x1] %vm196, %v364
    %381 = vst.msk [vmem:[#allocation5 + $0x3] sm:$0x1] %vm196, %v339
    %382 = vst.msk [vmem:[#allocation5 + $0x23] sm:$0x1] %vm196, %v353
    %383 = vst.msk [vmem:[#allocation5 + $0x43] sm:$0x1] %vm196, %v361
    %384 = vst.msk [vmem:[#allocation5 + $0x63] sm:$0x1] %vm196, %v363
    %385 = vst.msk [vmem:[#allocation5 + $0x83] sm:$0x1] %vm196, %v346
    %386 = vst.msk [vmem:[#allocation5 + $0xa3] sm:$0x1] %vm196, %v360
    %387 = vst.msk [vmem:[#allocation5 + $0xc3] sm:$0x1] %vm196, %v362
    %388 = vst.msk [vmem:[#allocation5 + $0xe3] sm:$0x1] %vm196, %v364
    %v389 = vld [vmem:[#allocation2 + $0x2] sm:$0x1]
    %v390 = vld [vmem:[#allocation2 + $0x12] sm:$0x1]
    %v391 = vld [vmem:[#allocation2 + $0x22] sm:$0x1]
    %v392 = vld [vmem:[#allocation2 + $0x32] sm:$0x1]
    %v393 = vld [vmem:[#allocation2 + $0x42] sm:$0x1]
    %v394 = vld [vmem:[#allocation2 + $0x52] sm:$0x1]
    %v395 = vld [vmem:[#allocation2 + $0x62] sm:$0x1]
    %v396 = vld [vmem:[#allocation2 + $0x72] sm:$0x1]
    %v405 = vrot.slane %v390, 7
    %v406 = vsel %vm45, %v405, %v389
    %v407 = vrot.slane %v391, 6
    %v408 = vsel %vm48, %v407, %v406
    %v409 = vrot.slane %v392, 5
    %v410 = vsel %vm51, %v409, %v408
    %v411 = vrot.slane %v393, 4
    %v412 = vsel %vm54, %v411, %v410
    %v413 = vrot.slane %v394, 3
    %v414 = vsel %vm57, %v413, %v412
    %v415 = vrot.slane %v395, 2
    %v416 = vsel %vm60, %v415, %v414
    %v417 = vrot.slane %v396, 1
    %v418 = vsel %vm63, %v417, %v416
    %v419 = vsel %vm65, %v418, 0
    %421 = vmatprep.subr.mxu0 0.0
    %422 = vmatpush1.msra.mxu0 %v26
    %423 = vmatprep.subr.mxu0 0.0
    %424 = vmatpush1.msra.mxu0 %v27
    %425 = vmatprep.subr.mxu0 0.0
    %426 = vmatpush1.msra.mxu0 0.0
    %427 = vmatprep.subr.mxu0 0.0
    %428 = vmatpush1.msra.mxu0 0.0
    %429 = vmatprep.subr.mxu0 0.0
    %430 = vmatpush1.msra.mxu0 0.0
    %431 = vmatprep.subr.mxu0 0.0
    %432 = vmatpush1.msra.mxu0 0.0
    %433 = vmatprep.subr.mxu0 0.0
    %434 = vmatpush1.msra.mxu0 0.0
    %435 = vmatprep.subr.mxu0 0.0
    %436 = vmatpush1.msra.mxu0 0.0
    %437 = vmatprep.subr.mxu0 0.0
    %438 = vmatpush1.msra.mxu0 0.0
    %439 = vmatprep.subr.mxu0 0.0
    %440 = vmatpush1.msra.mxu0 0.0
    %441 = vmatprep.subr.mxu0 0.0
    %442 = vmatpush1.msra.mxu0 0.0
    %443 = vmatprep.subr.mxu0 0.0
    %444 = vmatpush1.msra.mxu0 0.0
    %445 = vmatprep.subr.mxu0 0.0
    %446 = vmatpush1.msra.mxu0 0.0
    %447 = vmatprep.subr.mxu0 0.0
    %448 = vmatpush1.msra.mxu0 0.0
    %449 = vmatprep.subr.mxu0 0.0
    %450 = vmatpush1.msra.mxu0 0.0
    %451 = vmatprep.subr.mxu0 0.0
    %452 = vmatpush1.msra.mxu0 0.0
    %453 = vmatprep.subr.mxu0 0.0
    %454 = vmatpush1.msra.mxu0 0.0
    %455 = vmatprep.subr.mxu0 0.0
    %456 = vmatpush1.msra.mxu0 0.0
    %457 = vmatprep.subr.mxu0 0.0
    %458 = vmatpush1.msra.mxu0 0.0
    %459 = vmatprep.subr.mxu0 0.0
    %460 = vmatpush1.msra.mxu0 0.0
    %461 = vmatprep.subr.mxu0 0.0
    %462 = vmatpush1.msra.mxu0 0.0
    %463 = vmatprep.subr.mxu0 0.0
    %464 = vmatpush1.msra.mxu0 0.0
    %465 = vmatprep.subr.mxu0 0.0
    %466 = vmatpush1.msra.mxu0 0.0
    %467 = vmatprep.subr.mxu0 0.0
    %468 = vmatpush1.msra.mxu0 0.0
    %469 = vmatprep.subr.mxu0 0.0
    %470 = vmatpush1.msra.mxu0 0.0
    %471 = vmatprep.subr.mxu0 0.0
    %472 = vmatpush1.msra.mxu0 0.0
    %473 = vmatprep.subr.mxu0 0.0
    %474 = vmatpush1.msra.mxu0 0.0
    %475 = vmatprep.subr.mxu0 0.0
    %476 = vmatpush1.msra.mxu0 0.0
    %477 = vmatprep.subr.mxu0 0.0
    %478 = vmatpush1.msra.mxu0 0.0
    %479 = vmatprep.subr.mxu0 0.0
    %480 = vmatpush1.msra.mxu0 0.0
    %481 = vmatprep.subr.mxu0 0.0
    %482 = vmatpush1.msra.mxu0 0.0
    %483 = vmatprep.subr.mxu0 0.0
    %484 = vmatpush1.msra.mxu0 0.0
    %485 = vmatprep.mubr.f32.mxu0 0.0
    %486 = vmatmul.mubr.f32.gmra.mrb[0].mxu0 %v419
    %v487 = vpop.f32.mrb[0].mxu0
    %v488 = vadd.f32 0.0, %v487
    %v489 = vpop.f32.mrb[0].mxu0
    %490 = vdwg.mxu0
    %v492 = vcombine.high %v488, %v488
    %v494 = vunpack.c.l.s4 1966171168
    %v495 = vunpack.c.0.s8 %v494
    %v496 = vlaneseq
    %v497 = vshrl.u32 %v496, 7
    %v498 = vsub.s32 %v495, %v497
    %v499 = vrot.slane %v488, %v498
    %v501 = vunpack.c.l.s4 1966171168
    %v502 = vunpack.c.0.s8 %v501
    %v503 = vlaneseq
    %v504 = vshrl.u32 %v503, 7
    %v505 = vsub.s32 %v502, %v504
    %v506 = vrot.slane %v492, %v505
    %v507 = vcombine.high %v499, %v499
    %v508 = vcombine.high %v506, %v506
    %v510 = vunpack.c.l.s4 1966171168
    %v511 = vunpack.c.0.s8 %v510
    %v512 = vlaneseq
    %v513 = vshrl.u32 %v512, 7
    %v514 = vsub.s32 %v511, %v513
    %v515 = vrot.slane %v499, %v514
    %v517 = vunpack.c.l.s4 1966171168
    %v518 = vunpack.c.0.s8 %v517
    %v519 = vlaneseq
    %v520 = vshrl.u32 %v519, 7
    %v521 = vsub.s32 %v518, %v520
    %v522 = vrot.slane %v506, %v521
    %v524 = vunpack.c.l.s4 1966171168
    %v525 = vunpack.c.0.s8 %v524
    %v526 = vlaneseq
    %v527 = vshrl.u32 %v526, 7
    %v528 = vsub.s32 %v525, %v527
    %v529 = vrot.slane %v507, %v528
    %v531 = vunpack.c.l.s4 1966171168
    %v532 = vunpack.c.0.s8 %v531
    %v533 = vlaneseq
    %v534 = vshrl.u32 %v533, 7
    %v535 = vsub.s32 %v532, %v534
    %v536 = vrot.slane %v508, %v535
    %v537 = vcombine.high %v515, %v515
    %v538 = vcombine.high %v522, %v522
    %v539 = vcombine.high %v529, %v529
    %v540 = vcombine.high %v536, %v536
    %549 = vst.msk [vmem:[#allocation5 + $0x4] sm:$0x1] %vm196, %v515
    %550 = vst.msk [vmem:[#allocation5 + $0x24] sm:$0x1] %vm196, %v529
    %551 = vst.msk [vmem:[#allocation5 + $0x44] sm:$0x1] %vm196, %v537
    %552 = vst.msk [vmem:[#allocation5 + $0x64] sm:$0x1] %vm196, %v539
    %553 = vst.msk [vmem:[#allocation5 + $0x84] sm:$0x1] %vm196, %v522
    %554 = vst.msk [vmem:[#allocation5 + $0xa4] sm:$0x1] %vm196, %v536
    %555 = vst.msk [vmem:[#allocation5 + $0xc4] sm:$0x1] %vm196, %v538
    %556 = vst.msk [vmem:[#allocation5 + $0xe4] sm:$0x1] %vm196, %v540
    %557 = vst.msk [vmem:[#allocation5 + $0x5] sm:$0x1] %vm196, %v515
    %558 = vst.msk [vmem:[#allocation5 + $0x25] sm:$0x1] %vm196, %v529
    %559 = vst.msk [vmem:[#allocation5 + $0x45] sm:$0x1] %vm196, %v537
    %560 = vst.msk [vmem:[#allocation5 + $0x65] sm:$0x1] %vm196, %v539
    %561 = vst.msk [vmem:[#allocation5 + $0x85] sm:$0x1] %vm196, %v522
    %562 = vst.msk [vmem:[#allocation5 + $0xa5] sm:$0x1] %vm196, %v536
    %563 = vst.msk [vmem:[#allocation5 + $0xc5] sm:$0x1] %vm196, %v538
    %564 = vst.msk [vmem:[#allocation5 + $0xe5] sm:$0x1] %vm196, %v540
    %v565 = vld [vmem:[#allocation2 + $0x3] sm:$0x1]
    %v566 = vld [vmem:[#allocation2 + $0x13] sm:$0x1]
    %v567 = vld [vmem:[#allocation2 + $0x23] sm:$0x1]
    %v568 = vld [vmem:[#allocation2 + $0x33] sm:$0x1]
    %v569 = vld [vmem:[#allocation2 + $0x43] sm:$0x1]
    %v570 = vld [vmem:[#allocation2 + $0x53] sm:$0x1]
    %v571 = vld [vmem:[#allocation2 + $0x63] sm:$0x1]
    %v572 = vld [vmem:[#allocation2 + $0x73] sm:$0x1]
    %v581 = vrot.slane %v566, 7
    %v582 = vsel %vm45, %v581, %v565
    %v583 = vrot.slane %v567, 6
    %v584 = vsel %vm48, %v583, %v582
    %v585 = vrot.slane %v568, 5
    %v586 = vsel %vm51, %v585, %v584
    %v587 = vrot.slane %v569, 4
    %v588 = vsel %vm54, %v587, %v586
    %v589 = vrot.slane %v570, 3
    %v590 = vsel %vm57, %v589, %v588
    %v591 = vrot.slane %v571, 2
    %v592 = vsel %vm60, %v591, %v590
    %v593 = vrot.slane %v572, 1
    %v594 = vsel %vm63, %v593, %v592
    %v595 = vsel %vm65, %v594, 0
    %597 = vmatprep.subr.mxu0 0.0
    %598 = vmatpush1.msra.mxu0 %v26
    %599 = vmatprep.subr.mxu0 0.0
    %600 = vmatpush1.msra.mxu0 %v27
    %601 = vmatprep.subr.mxu0 0.0
    %602 = vmatpush1.msra.mxu0 0.0
    %603 = vmatprep.subr.mxu0 0.0
    %604 = vmatpush1.msra.mxu0 0.0
    %605 = vmatprep.subr.mxu0 0.0
    %606 = vmatpush1.msra.mxu0 0.0
    %607 = vmatprep.subr.mxu0 0.0
    %608 = vmatpush1.msra.mxu0 0.0
    %609 = vmatprep.subr.mxu0 0.0
    %610 = vmatpush1.msra.mxu0 0.0
    %611 = vmatprep.subr.mxu0 0.0
    %612 = vmatpush1.msra.mxu0 0.0
    %613 = vmatprep.subr.mxu0 0.0
    %614 = vmatpush1.msra.mxu0 0.0
    %615 = vmatprep.subr.mxu0 0.0
    %616 = vmatpush1.msra.mxu0 0.0
    %617 = vmatprep.subr.mxu0 0.0
    %618 = vmatpush1.msra.mxu0 0.0
    %619 = vmatprep.subr.mxu0 0.0
    %620 = vmatpush1.msra.mxu0 0.0
    %621 = vmatprep.subr.mxu0 0.0
    %622 = vmatpush1.msra.mxu0 0.0
    %623 = vmatprep.subr.mxu0 0.0
    %624 = vmatpush1.msra.mxu0 0.0
    %625 = vmatprep.subr.mxu0 0.0
    %626 = vmatpush1.msra.mxu0 0.0
    %627 = vmatprep.subr.mxu0 0.0
    %628 = vmatpush1.msra.mxu0 0.0
    %629 = vmatprep.subr.mxu0 0.0
    %630 = vmatpush1.msra.mxu0 0.0
    %631 = vmatprep.subr.mxu0 0.0
    %632 = vmatpush1.msra.mxu0 0.0
    %633 = vmatprep.subr.mxu0 0.0
    %634 = vmatpush1.msra.mxu0 0.0
    %635 = vmatprep.subr.mxu0 0.0
    %636 = vmatpush1.msra.mxu0 0.0
    %637 = vmatprep.subr.mxu0 0.0
    %638 = vmatpush1.msra.mxu0 0.0
    %639 = vmatprep.subr.mxu0 0.0
    %640 = vmatpush1.msra.mxu0 0.0
    %641 = vmatprep.subr.mxu0 0.0
    %642 = vmatpush1.msra.mxu0 0.0
    %643 = vmatprep.subr.mxu0 0.0
    %644 = vmatpush1.msra.mxu0 0.0
    %645 = vmatprep.subr.mxu0 0.0
    %646 = vmatpush1.msra.mxu0 0.0
    %647 = vmatprep.subr.mxu0 0.0
    %648 = vmatpush1.msra.mxu0 0.0
    %649 = vmatprep.subr.mxu0 0.0
    %650 = vmatpush1.msra.mxu0 0.0
    %651 = vmatprep.subr.mxu0 0.0
    %652 = vmatpush1.msra.mxu0 0.0
    %653 = vmatprep.subr.mxu0 0.0
    %654 = vmatpush1.msra.mxu0 0.0
    %655 = vmatprep.subr.mxu0 0.0
    %656 = vmatpush1.msra.mxu0 0.0
    %657 = vmatprep.subr.mxu0 0.0
    %658 = vmatpush1.msra.mxu0 0.0
    %659 = vmatprep.subr.mxu0 0.0
    %660 = vmatpush1.msra.mxu0 0.0
    %661 = vmatprep.mubr.f32.mxu0 0.0
    %662 = vmatmul.mubr.f32.gmra.mrb[0].mxu0 %v595
    %v663 = vpop.f32.mrb[0].mxu0
    %v664 = vadd.f32 0.0, %v663
    %v665 = vpop.f32.mrb[0].mxu0
    %666 = vdwg.mxu0
    %v668 = vcombine.high %v664, %v664
    %v670 = vunpack.c.l.s4 1966171168
    %v671 = vunpack.c.0.s8 %v670
    %v672 = vlaneseq
    %v673 = vshrl.u32 %v672, 7
    %v674 = vsub.s32 %v671, %v673
    %v675 = vrot.slane %v664, %v674
    %v677 = vunpack.c.l.s4 1966171168
    %v678 = vunpack.c.0.s8 %v677
    %v679 = vlaneseq
    %v680 = vshrl.u32 %v679, 7
    %v681 = vsub.s32 %v678, %v680
    %v682 = vrot.slane %v668, %v681
    %v683 = vcombine.high %v675, %v675
    %v684 = vcombine.high %v682, %v682
    %v686 = vunpack.c.l.s4 1966171168
    %v687 = vunpack.c.0.s8 %v686
    %v688 = vlaneseq
    %v689 = vshrl.u32 %v688, 7
    %v690 = vsub.s32 %v687, %v689
    %v691 = vrot.slane %v675, %v690
    %v693 = vunpack.c.l.s4 1966171168
    %v694 = vunpack.c.0.s8 %v693
    %v695 = vlaneseq
    %v696 = vshrl.u32 %v695, 7
    %v697 = vsub.s32 %v694, %v696
    %v698 = vrot.slane %v682, %v697
    %v700 = vunpack.c.l.s4 1966171168
    %v701 = vunpack.c.0.s8 %v700
    %v702 = vlaneseq
    %v703 = vshrl.u32 %v702, 7
    %v704 = vsub.s32 %v701, %v703
    %v705 = vrot.slane %v683, %v704
    %v707 = vunpack.c.l.s4 1966171168
    %v708 = vunpack.c.0.s8 %v707
    %v709 = vlaneseq
    %v710 = vshrl.u32 %v709, 7
    %v711 = vsub.s32 %v708, %v710
    %v712 = vrot.slane %v684, %v711
    %v713 = vcombine.high %v691, %v691
    %v714 = vcombine.high %v698, %v698
    %v715 = vcombine.high %v705, %v705
    %v716 = vcombine.high %v712, %v712
    %725 = vst.msk [vmem:[#allocation5 + $0x6] sm:$0x1] %vm196, %v691
    %726 = vst.msk [vmem:[#allocation5 + $0x26] sm:$0x1] %vm196, %v705
    %727 = vst.msk [vmem:[#allocation5 + $0x46] sm:$0x1] %vm196, %v713
    %728 = vst.msk [vmem:[#allocation5 + $0x66] sm:$0x1] %vm196, %v715
    %729 = vst.msk [vmem:[#allocation5 + $0x86] sm:$0x1] %vm196, %v698
    %730 = vst.msk [vmem:[#allocation5 + $0xa6] sm:$0x1] %vm196, %v712
    %731 = vst.msk [vmem:[#allocation5 + $0xc6] sm:$0x1] %vm196, %v714
    %732 = vst.msk [vmem:[#allocation5 + $0xe6] sm:$0x1] %vm196, %v716
    %733 = vst.msk [vmem:[#allocation5 + $0x7] sm:$0x1] %vm196, %v691
    %734 = vst.msk [vmem:[#allocation5 + $0x27] sm:$0x1] %vm196, %v705
    %735 = vst.msk [vmem:[#allocation5 + $0x47] sm:$0x1] %vm196, %v713
    %736 = vst.msk [vmem:[#allocation5 + $0x67] sm:$0x1] %vm196, %v715
    %737 = vst.msk [vmem:[#allocation5 + $0x87] sm:$0x1] %vm196, %v698
    %738 = vst.msk [vmem:[#allocation5 + $0xa7] sm:$0x1] %vm196, %v712
    %739 = vst.msk [vmem:[#allocation5 + $0xc7] sm:$0x1] %vm196, %v714
    %740 = vst.msk [vmem:[#allocation5 + $0xe7] sm:$0x1] %vm196, %v716
    %v741 = vld [vmem:[#allocation2 + $0x4] sm:$0x1]
    %v742 = vld [vmem:[#allocation2 + $0x14] sm:$0x1]
    %v743 = vld [vmem:[#allocation2 + $0x24] sm:$0x1]
    %v744 = vld [vmem:[#allocation2 + $0x34] sm:$0x1]
    %v745 = vld [vmem:[#allocation2 + $0x44] sm:$0x1]
    %v746 = vld [vmem:[#allocation2 + $0x54] sm:$0x1]
    %v747 = vld [vmem:[#allocation2 + $0x64] sm:$0x1]
    %v748 = vld [vmem:[#allocation2 + $0x74] sm:$0x1]
    %v757 = vrot.slane %v742, 7
    %v758 = vsel %vm45, %v757, %v741
    %v759 = vrot.slane %v743, 6
    %v760 = vsel %vm48, %v759, %v758
    %v761 = vrot.slane %v744, 5
    %v762 = vsel %vm51, %v761, %v760
    %v763 = vrot.slane %v745, 4
    %v764 = vsel %vm54, %v763, %v762
    %v765 = vrot.slane %v746, 3
    %v766 = vsel %vm57, %v765, %v764
    %v767 = vrot.slane %v747, 2
    %v768 = vsel %vm60, %v767, %v766
    %v769 = vrot.slane %v748, 1
    %v770 = vsel %vm63, %v769, %v768
    %v771 = vsel %vm65, %v770, 0
    %773 = vmatprep.subr.mxu0 0.0
    %774 = vmatpush1.msra.mxu0 %v26
    %775 = vmatprep.subr.mxu0 0.0
    %776 = vmatpush1.msra.mxu0 %v27
    %777 = vmatprep.subr.mxu0 0.0
    %778 = vmatpush1.msra.mxu0 0.0
    %779 = vmatprep.subr.mxu0 0.0
    %780 = vmatpush1.msra.mxu0 0.0
    %781 = vmatprep.subr.mxu0 0.0
    %782 = vmatpush1.msra.mxu0 0.0
    %783 = vmatprep.subr.mxu0 0.0
    %784 = vmatpush1.msra.mxu0 0.0
    %785 = vmatprep.subr.mxu0 0.0
    %786 = vmatpush1.msra.mxu0 0.0
    %787 = vmatprep.subr.mxu0 0.0
    %788 = vmatpush1.msra.mxu0 0.0
    %789 = vmatprep.subr.mxu0 0.0
    %790 = vmatpush1.msra.mxu0 0.0
    %791 = vmatprep.subr.mxu0 0.0
    %792 = vmatpush1.msra.mxu0 0.0
    %793 = vmatprep.subr.mxu0 0.0
    %794 = vmatpush1.msra.mxu0 0.0
    %795 = vmatprep.subr.mxu0 0.0
    %796 = vmatpush1.msra.mxu0 0.0
    %797 = vmatprep.subr.mxu0 0.0
    %798 = vmatpush1.msra.mxu0 0.0
    %799 = vmatprep.subr.mxu0 0.0
    %800 = vmatpush1.msra.mxu0 0.0
    %801 = vmatprep.subr.mxu0 0.0
    %802 = vmatpush1.msra.mxu0 0.0
    %803 = vmatprep.subr.mxu0 0.0
    %804 = vmatpush1.msra.mxu0 0.0
    %805 = vmatprep.subr.mxu0 0.0
    %806 = vmatpush1.msra.mxu0 0.0
    %807 = vmatprep.subr.mxu0 0.0
    %808 = vmatpush1.msra.mxu0 0.0
    %809 = vmatprep.subr.mxu0 0.0
    %810 = vmatpush1.msra.mxu0 0.0
    %811 = vmatprep.subr.mxu0 0.0
    %812 = vmatpush1.msra.mxu0 0.0
    %813 = vmatprep.subr.mxu0 0.0
    %814 = vmatpush1.msra.mxu0 0.0
    %815 = vmatprep.subr.mxu0 0.0
    %816 = vmatpush1.msra.mxu0 0.0
    %817 = vmatprep.subr.mxu0 0.0
    %818 = vmatpush1.msra.mxu0 0.0
    %819 = vmatprep.subr.mxu0 0.0
    %820 = vmatpush1.msra.mxu0 0.0
    %821 = vmatprep.subr.mxu0 0.0
    %822 = vmatpush1.msra.mxu0 0.0
    %823 = vmatprep.subr.mxu0 0.0
    %824 = vmatpush1.msra.mxu0 0.0
    %825 = vmatprep.subr.mxu0 0.0
    %826 = vmatpush1.msra.mxu0 0.0
    %827 = vmatprep.subr.mxu0 0.0
    %828 = vmatpush1.msra.mxu0 0.0
    %829 = vmatprep.subr.mxu0 0.0
    %830 = vmatpush1.msra.mxu0 0.0
    %831 = vmatprep.subr.mxu0 0.0
    %832 = vmatpush1.msra.mxu0 0.0
    %833 = vmatprep.subr.mxu0 0.0
    %834 = vmatpush1.msra.mxu0 0.0
    %835 = vmatprep.subr.mxu0 0.0
    %836 = vmatpush1.msra.mxu0 0.0
    %837 = vmatprep.mubr.f32.mxu0 0.0
    %838 = vmatmul.mubr.f32.gmra.mrb[0].mxu0 %v771
    %v839 = vpop.f32.mrb[0].mxu0
    %v840 = vadd.f32 0.0, %v839
    %v841 = vpop.f32.mrb[0].mxu0
    %842 = vdwg.mxu0
    %v844 = vcombine.high %v840, %v840
    %v846 = vunpack.c.l.s4 1966171168
    %v847 = vunpack.c.0.s8 %v846
    %v848 = vlaneseq
    %v849 = vshrl.u32 %v848, 7
    %v850 = vsub.s32 %v847, %v849
    %v851 = vrot.slane %v840, %v850
    %v853 = vunpack.c.l.s4 1966171168
    %v854 = vunpack.c.0.s8 %v853
    %v855 = vlaneseq
    %v856 = vshrl.u32 %v855, 7
    %v857 = vsub.s32 %v854, %v856
    %v858 = vrot.slane %v844, %v857
    %v859 = vcombine.high %v851, %v851
    %v860 = vcombine.high %v858, %v858
    %v862 = vunpack.c.l.s4 1966171168
    %v863 = vunpack.c.0.s8 %v862
    %v864 = vlaneseq
    %v865 = vshrl.u32 %v864, 7
    %v866 = vsub.s32 %v863, %v865
    %v867 = vrot.slane %v851, %v866
    %v869 = vunpack.c.l.s4 1966171168
    %v870 = vunpack.c.0.s8 %v869
    %v871 = vlaneseq
    %v872 = vshrl.u32 %v871, 7
    %v873 = vsub.s32 %v870, %v872
    %v874 = vrot.slane %v858, %v873
    %v876 = vunpack.c.l.s4 1966171168
    %v877 = vunpack.c.0.s8 %v876
    %v878 = vlaneseq
    %v879 = vshrl.u32 %v878, 7
    %v880 = vsub.s32 %v877, %v879
    %v881 = vrot.slane %v859, %v880
    %v883 = vunpack.c.l.s4 1966171168
    %v884 = vunpack.c.0.s8 %v883
    %v885 = vlaneseq
    %v886 = vshrl.u32 %v885, 7
    %v887 = vsub.s32 %v884, %v886
    %v888 = vrot.slane %v860, %v887
    %v889 = vcombine.high %v867, %v867
    %v890 = vcombine.high %v874, %v874
    %v891 = vcombine.high %v881, %v881
    %v892 = vcombine.high %v888, %v888
    %901 = vst.msk [vmem:[#allocation5 + $0x8] sm:$0x1] %vm196, %v867
    %902 = vst.msk [vmem:[#allocation5 + $0x28] sm:$0x1] %vm196, %v881
    %903 = vst.msk [vmem:[#allocation5 + $0x48] sm:$0x1] %vm196, %v889
    %904 = vst.msk [vmem:[#allocation5 + $0x68] sm:$0x1] %vm196, %v891
    %905 = vst.msk [vmem:[#allocation5 + $0x88] sm:$0x1] %vm196, %v874
    %906 = vst.msk [vmem:[#allocation5 + $0xa8] sm:$0x1] %vm196, %v888
    %907 = vst.msk [vmem:[#allocation5 + $0xc8] sm:$0x1] %vm196, %v890
    %908 = vst.msk [vmem:[#allocation5 + $0xe8] sm:$0x1] %vm196, %v892
    %909 = vst.msk [vmem:[#allocation5 + $0x9] sm:$0x1] %vm196, %v867
    %910 = vst.msk [vmem:[#allocation5 + $0x29] sm:$0x1] %vm196, %v881
    %911 = vst.msk [vmem:[#allocation5 + $0x49] sm:$0x1] %vm196, %v889
    %912 = vst.msk [vmem:[#allocation5 + $0x69] sm:$0x1] %vm196, %v891
    %913 = vst.msk [vmem:[#allocation5 + $0x89] sm:$0x1] %vm196, %v874
    %914 = vst.msk [vmem:[#allocation5 + $0xa9] sm:$0x1] %vm196, %v888
    %915 = vst.msk [vmem:[#allocation5 + $0xc9] sm:$0x1] %vm196, %v890
    %916 = vst.msk [vmem:[#allocation5 + $0xe9] sm:$0x1] %vm196, %v892
    %v917 = vld [vmem:[#allocation2 + $0x5] sm:$0x1]
    %v918 = vld [vmem:[#allocation2 + $0x15] sm:$0x1]
    %v919 = vld [vmem:[#allocation2 + $0x25] sm:$0x1]
    %v920 = vld [vmem:[#allocation2 + $0x35] sm:$0x1]
    %v921 = vld [vmem:[#allocation2 + $0x45] sm:$0x1]
    %v922 = vld [vmem:[#allocation2 + $0x55] sm:$0x1]
    %v923 = vld [vmem:[#allocation2 + $0x65] sm:$0x1]
    %v924 = vld [vmem:[#allocation2 + $0x75] sm:$0x1]
    %v933 = vrot.slane %v918, 7
    %v934 = vsel %vm45, %v933, %v917
    %v935 = vrot.slane %v919, 6
    %v936 = vsel %vm48, %v935, %v934
    %v937 = vrot.slane %v920, 5
    %v938 = vsel %vm51, %v937, %v936
    %v939 = vrot.slane %v921, 4
    %v940 = vsel %vm54, %v939, %v938
    %v941 = vrot.slane %v922, 3
    %v942 = vsel %vm57, %v941, %v940
    %v943 = vrot.slane %v923, 2
    %v944 = vsel %vm60, %v943, %v942
    %v945 = vrot.slane %v924, 1
    %v946 = vsel %vm63, %v945, %v944
    %v947 = vsel %vm65, %v946, 0
    %949 = vmatprep.subr.mxu0 0.0
    %950 = vmatpush1.msra.mxu0 %v26
    %951 = vmatprep.subr.mxu0 0.0
    %952 = vmatpush1.msra.mxu0 %v27
    %953 = vmatprep.subr.mxu0 0.0
    %954 = vmatpush1.msra.mxu0 0.0
    %955 = vmatprep.subr.mxu0 0.0
    %956 = vmatpush1.msra.mxu0 0.0
    %957 = vmatprep.subr.mxu0 0.0
    %958 = vmatpush1.msra.mxu0 0.0
    %959 = vmatprep.subr.mxu0 0.0
    %960 = vmatpush1.msra.mxu0 0.0
    %961 = vmatprep.subr.mxu0 0.0
    %962 = vmatpush1.msra.mxu0 0.0
    %963 = vmatprep.subr.mxu0 0.0
    %964 = vmatpush1.msra.mxu0 0.0
    %965 = vmatprep.subr.mxu0 0.0
    %966 = vmatpush1.msra.mxu0 0.0
    %967 = vmatprep.subr.mxu0 0.0
    %968 = vmatpush1.msra.mxu0 0.0
    %969 = vmatprep.subr.mxu0 0.0
    %970 = vmatpush1.msra.mxu0 0.0
    %971 = vmatprep.subr.mxu0 0.0
    %972 = vmatpush1.msra.mxu0 0.0
    %973 = vmatprep.subr.mxu0 0.0
    %974 = vmatpush1.msra.mxu0 0.0
    %975 = vmatprep.subr.mxu0 0.0
    %976 = vmatpush1.msra.mxu0 0.0
    %977 = vmatprep.subr.mxu0 0.0
    %978 = vmatpush1.msra.mxu0 0.0
    %979 = vmatprep.subr.mxu0 0.0
    %980 = vmatpush1.msra.mxu0 0.0
    %981 = vmatprep.subr.mxu0 0.0
    %982 = vmatpush1.msra.mxu0 0.0
    %983 = vmatprep.subr.mxu0 0.0
    %984 = vmatpush1.msra.mxu0 0.0
    %985 = vmatprep.subr.mxu0 0.0
    %986 = vmatpush1.msra.mxu0 0.0
    %987 = vmatprep.subr.mxu0 0.0
    %988 = vmatpush1.msra.mxu0 0.0
    %989 = vmatprep.subr.mxu0 0.0
    %990 = vmatpush1.msra.mxu0 0.0
    %991 = vmatprep.subr.mxu0 0.0
    %992 = vmatpush1.msra.mxu0 0.0
    %993 = vmatprep.subr.mxu0 0.0
    %994 = vmatpush1.msra.mxu0 0.0
    %995 = vmatprep.subr.mxu0 0.0
    %996 = vmatpush1.msra.mxu0 0.0
    %997 = vmatprep.subr.mxu0 0.0
    %998 = vmatpush1.msra.mxu0 0.0
    %999 = vmatprep.subr.mxu0 0.0
    %1000 = vmatpush1.msra.mxu0 0.0
    %1001 = vmatprep.subr.mxu0 0.0
    %1002 = vmatpush1.msra.mxu0 0.0
    %1003 = vmatprep.subr.mxu0 0.0
    %1004 = vmatpush1.msra.mxu0 0.0
    %1005 = vmatprep.subr.mxu0 0.0
    %1006 = vmatpush1.msra.mxu0 0.0
    %1007 = vmatprep.subr.mxu0 0.0
    %1008 = vmatpush1.msra.mxu0 0.0
    %1009 = vmatprep.subr.mxu0 0.0
    %1010 = vmatpush1.msra.mxu0 0.0
    %1011 = vmatprep.subr.mxu0 0.0
    %1012 = vmatpush1.msra.mxu0 0.0
    %1013 = vmatprep.mubr.f32.mxu0 0.0
    %1014 = vmatmul.mubr.f32.gmra.mrb[0].mxu0 %v947
    %v1015 = vpop.f32.mrb[0].mxu0
    %v1016 = vadd.f32 0.0, %v1015
    %v1017 = vpop.f32.mrb[0].mxu0
    %1018 = vdwg.mxu0
    %v1020 = vcombine.high %v1016, %v1016
    %v1022 = vunpack.c.l.s4 1966171168
    %v1023 = vunpack.c.0.s8 %v1022
    %v1024 = vlaneseq
    %v1025 = vshrl.u32 %v1024, 7
    %v1026 = vsub.s32 %v1023, %v1025
    %v1027 = vrot.slane %v1016, %v1026
    %v1029 = vunpack.c.l.s4 1966171168
    %v1030 = vunpack.c.0.s8 %v1029
    %v1031 = vlaneseq
    %v1032 = vshrl.u32 %v1031, 7
    %v1033 = vsub.s32 %v1030, %v1032
    %v1034 = vrot.slane %v1020, %v1033
    %v1035 = vcombine.high %v1027, %v1027
    %v1036 = vcombine.high %v1034, %v1034
    %v1038 = vunpack.c.l.s4 1966171168
    %v1039 = vunpack.c.0.s8 %v1038
    %v1040 = vlaneseq
    %v1041 = vshrl.u32 %v1040, 7
    %v1042 = vsub.s32 %v1039, %v1041
    %v1043 = vrot.slane %v1027, %v1042
    %v1045 = vunpack.c.l.s4 1966171168
    %v1046 = vunpack.c.0.s8 %v1045
    %v1047 = vlaneseq
    %v1048 = vshrl.u32 %v1047, 7
    %v1049 = vsub.s32 %v1046, %v1048
    %v1050 = vrot.slane %v1034, %v1049
    %v1052 = vunpack.c.l.s4 1966171168
    %v1053 = vunpack.c.0.s8 %v1052
    %v1054 = vlaneseq
    %v1055 = vshrl.u32 %v1054, 7
    %v1056 = vsub.s32 %v1053, %v1055
    %v1057 = vrot.slane %v1035, %v1056
    %v1059 = vunpack.c.l.s4 1966171168
    %v1060 = vunpack.c.0.s8 %v1059
    %v1061 = vlaneseq
    %v1062 = vshrl.u32 %v1061, 7
    %v1063 = vsub.s32 %v1060, %v1062
    %v1064 = vrot.slane %v1036, %v1063
    %v1065 = vcombine.high %v1043, %v1043
    %v1066 = vcombine.high %v1050, %v1050
    %v1067 = vcombine.high %v1057, %v1057
    %v1068 = vcombine.high %v1064, %v1064
    %1077 = vst.msk [vmem:[#allocation5 + $0xa] sm:$0x1] %vm196, %v1043
    %1078 = vst.msk [vmem:[#allocation5 + $0x2a] sm:$0x1] %vm196, %v1057
    %1079 = vst.msk [vmem:[#allocation5 + $0x4a] sm:$0x1] %vm196, %v1065
    %1080 = vst.msk [vmem:[#allocation5 + $0x6a] sm:$0x1] %vm196, %v1067
    %1081 = vst.msk [vmem:[#allocation5 + $0x8a] sm:$0x1] %vm196, %v1050
    %1082 = vst.msk [vmem:[#allocation5 + $0xaa] sm:$0x1] %vm196, %v1064
    %1083 = vst.msk [vmem:[#allocation5 + $0xca] sm:$0x1] %vm196, %v1066
    %1084 = vst.msk [vmem:[#allocation5 + $0xea] sm:$0x1] %vm196, %v1068
    %1085 = vst.msk [vmem:[#allocation5 + $0xb] sm:$0x1] %vm196, %v1043
    %1086 = vst.msk [vmem:[#allocation5 + $0x2b] sm:$0x1] %vm196, %v1057
    %1087 = vst.msk [vmem:[#allocation5 + $0x4b] sm:$0x1] %vm196, %v1065
    %1088 = vst.msk [vmem:[#allocation5 + $0x6b] sm:$0x1] %vm196, %v1067
    %1089 = vst.msk [vmem:[#allocation5 + $0x8b] sm:$0x1] %vm196, %v1050
    %1090 = vst.msk [vmem:[#allocation5 + $0xab] sm:$0x1] %vm196, %v1064
    %1091 = vst.msk [vmem:[#allocation5 + $0xcb] sm:$0x1] %vm196, %v1066
    %1092 = vst.msk [vmem:[#allocation5 + $0xeb] sm:$0x1] %vm196, %v1068
    %v1093 = vld [vmem:[#allocation2 + $0x6] sm:$0x1]
    %v1094 = vld [vmem:[#allocation2 + $0x16] sm:$0x1]
    %v1095 = vld [vmem:[#allocation2 + $0x26] sm:$0x1]
    %v1096 = vld [vmem:[#allocation2 + $0x36] sm:$0x1]
    %v1097 = vld [vmem:[#allocation2 + $0x46] sm:$0x1]
    %v1098 = vld [vmem:[#allocation2 + $0x56] sm:$0x1]
    %v1099 = vld [vmem:[#allocation2 + $0x66] sm:$0x1]
    %v1100 = vld [vmem:[#allocation2 + $0x76] sm:$0x1]
    %v1109 = vrot.slane %v1094, 7
    %v1110 = vsel %vm45, %v1109, %v1093
    %v1111 = vrot.slane %v1095, 6
    %v1112 = vsel %vm48, %v1111, %v1110
    %v1113 = vrot.slane %v1096, 5
    %v1114 = vsel %vm51, %v1113, %v1112
    %v1115 = vrot.slane %v1097, 4
    %v1116 = vsel %vm54, %v1115, %v1114
    %v1117 = vrot.slane %v1098, 3
    %v1118 = vsel %vm57, %v1117, %v1116
    %v1119 = vrot.slane %v1099, 2
    %v1120 = vsel %vm60, %v1119, %v1118
    %v1121 = vrot.slane %v1100, 1
    %v1122 = vsel %vm63, %v1121, %v1120
    %v1123 = vsel %vm65, %v1122, 0
    %1125 = vmatprep.subr.mxu0 0.0
    %1126 = vmatpush1.msra.mxu0 %v26
    %1127 = vmatprep.subr.mxu0 0.0
    %1128 = vmatpush1.msra.mxu0 %v27
    %1129 = vmatprep.subr.mxu0 0.0
    %1130 = vmatpush1.msra.mxu0 0.0
    %1131 = vmatprep.subr.mxu0 0.0
    %1132 = vmatpush1.msra.mxu0 0.0
    %1133 = vmatprep.subr.mxu0 0.0
    %1134 = vmatpush1.msra.mxu0 0.0
    %1135 = vmatprep.subr.mxu0 0.0
    %1136 = vmatpush1.msra.mxu0 0.0
    %1137 = vmatprep.subr.mxu0 0.0
    %1138 = vmatpush1.msra.mxu0 0.0
    %1139 = vmatprep.subr.mxu0 0.0
    %1140 = vmatpush1.msra.mxu0 0.0
    %1141 = vmatprep.subr.mxu0 0.0
    %1142 = vmatpush1.msra.mxu0 0.0
    %1143 = vmatprep.subr.mxu0 0.0
    %1144 = vmatpush1.msra.mxu0 0.0
    %1145 = vmatprep.subr.mxu0 0.0
    %1146 = vmatpush1.msra.mxu0 0.0
    %1147 = vmatprep.subr.mxu0 0.0
    %1148 = vmatpush1.msra.mxu0 0.0
    %1149 = vmatprep.subr.mxu0 0.0
    %1150 = vmatpush1.msra.mxu0 0.0
    %1151 = vmatprep.subr.mxu0 0.0
    %1152 = vmatpush1.msra.mxu0 0.0
    %1153 = vmatprep.subr.mxu0 0.0
    %1154 = vmatpush1.msra.mxu0 0.0
    %1155 = vmatprep.subr.mxu0 0.0
    %1156 = vmatpush1.msra.mxu0 0.0
    %1157 = vmatprep.subr.mxu0 0.0
    %1158 = vmatpush1.msra.mxu0 0.0
    %1159 = vmatprep.subr.mxu0 0.0
    %1160 = vmatpush1.msra.mxu0 0.0
    %1161 = vmatprep.subr.mxu0 0.0
    %1162 = vmatpush1.msra.mxu0 0.0
    %1163 = vmatprep.subr.mxu0 0.0
    %1164 = vmatpush1.msra.mxu0 0.0
    %1165 = vmatprep.subr.mxu0 0.0
    %1166 = vmatpush1.msra.mxu0 0.0
    %1167 = vmatprep.subr.mxu0 0.0
    %1168 = vmatpush1.msra.mxu0 0.0
    %1169 = vmatprep.subr.mxu0 0.0
    %1170 = vmatpush1.msra.mxu0 0.0
    %1171 = vmatprep.subr.mxu0 0.0
    %1172 = vmatpush1.msra.mxu0 0.0
    %1173 = vmatprep.subr.mxu0 0.0
    %1174 = vmatpush1.msra.mxu0 0.0
    %1175 = vmatprep.subr.mxu0 0.0
    %1176 = vmatpush1.msra.mxu0 0.0
    %1177 = vmatprep.subr.mxu0 0.0
    %1178 = vmatpush1.msra.mxu0 0.0
    %1179 = vmatprep.subr.mxu0 0.0
    %1180 = vmatpush1.msra.mxu0 0.0
    %1181 = vmatprep.subr.mxu0 0.0
    %1182 = vmatpush1.msra.mxu0 0.0
    %1183 = vmatprep.subr.mxu0 0.0
    %1184 = vmatpush1.msra.mxu0 0.0
    %1185 = vmatprep.subr.mxu0 0.0
    %1186 = vmatpush1.msra.mxu0 0.0
    %1187 = vmatprep.subr.mxu0 0.0
    %1188 = vmatpush1.msra.mxu0 0.0
    %1189 = vmatprep.mubr.f32.mxu0 0.0
    %1190 = vmatmul.mubr.f32.gmra.mrb[0].mxu0 %v1123
    %v1191 = vpop.f32.mrb[0].mxu0
    %v1192 = vadd.f32 0.0, %v1191
    %v1193 = vpop.f32.mrb[0].mxu0
    %1194 = vdwg.mxu0
    %v1196 = vcombine.high %v1192, %v1192
    %v1198 = vunpack.c.l.s4 1966171168
    %v1199 = vunpack.c.0.s8 %v1198
    %v1200 = vlaneseq
    %v1201 = vshrl.u32 %v1200, 7
    %v1202 = vsub.s32 %v1199, %v1201
    %v1203 = vrot.slane %v1192, %v1202
    %v1205 = vunpack.c.l.s4 1966171168
    %v1206 = vunpack.c.0.s8 %v1205
    %v1207 = vlaneseq
    %v1208 = vshrl.u32 %v1207, 7
    %v1209 = vsub.s32 %v1206, %v1208
    %v1210 = vrot.slane %v1196, %v1209
    %v1211 = vcombine.high %v1203, %v1203
    %v1212 = vcombine.high %v1210, %v1210
    %v1214 = vunpack.c.l.s4 1966171168
    %v1215 = vunpack.c.0.s8 %v1214
    %v1216 = vlaneseq
    %v1217 = vshrl.u32 %v1216, 7
    %v1218 = vsub.s32 %v1215, %v1217
    %v1219 = vrot.slane %v1203, %v1218
    %v1221 = vunpack.c.l.s4 1966171168
    %v1222 = vunpack.c.0.s8 %v1221
    %v1223 = vlaneseq
    %v1224 = vshrl.u32 %v1223, 7
    %v1225 = vsub.s32 %v1222, %v1224
    %v1226 = vrot.slane %v1210, %v1225
    %v1228 = vunpack.c.l.s4 1966171168
    %v1229 = vunpack.c.0.s8 %v1228
    %v1230 = vlaneseq
    %v1231 = vshrl.u32 %v1230, 7
    %v1232 = vsub.s32 %v1229, %v1231
    %v1233 = vrot.slane %v1211, %v1232
    %v1235 = vunpack.c.l.s4 1966171168
    %v1236 = vunpack.c.0.s8 %v1235
    %v1237 = vlaneseq
    %v1238 = vshrl.u32 %v1237, 7
    %v1239 = vsub.s32 %v1236, %v1238
    %v1240 = vrot.slane %v1212, %v1239
    %v1241 = vcombine.high %v1219, %v1219
    %v1242 = vcombine.high %v1226, %v1226
    %v1243 = vcombine.high %v1233, %v1233
    %v1244 = vcombine.high %v1240, %v1240
    %1253 = vst.msk [vmem:[#allocation5 + $0xc] sm:$0x1] %vm196, %v1219
    %1254 = vst.msk [vmem:[#allocation5 + $0x2c] sm:$0x1] %vm196, %v1233
    %1255 = vst.msk [vmem:[#allocation5 + $0x4c] sm:$0x1] %vm196, %v1241
    %1256 = vst.msk [vmem:[#allocation5 + $0x6c] sm:$0x1] %vm196, %v1243
    %1257 = vst.msk [vmem:[#allocation5 + $0x8c] sm:$0x1] %vm196, %v1226
    %1258 = vst.msk [vmem:[#allocation5 + $0xac] sm:$0x1] %vm196, %v1240
    %1259 = vst.msk [vmem:[#allocation5 + $0xcc] sm:$0x1] %vm196, %v1242
    %1260 = vst.msk [vmem:[#allocation5 + $0xec] sm:$0x1] %vm196, %v1244
    %1261 = vst.msk [vmem:[#allocation5 + $0xd] sm:$0x1] %vm196, %v1219
    %1262 = vst.msk [vmem:[#allocation5 + $0x2d] sm:$0x1] %vm196, %v1233
    %1263 = vst.msk [vmem:[#allocation5 + $0x4d] sm:$0x1] %vm196, %v1241
    %1264 = vst.msk [vmem:[#allocation5 + $0x6d] sm:$0x1] %vm196, %v1243
    %1265 = vst.msk [vmem:[#allocation5 + $0x8d] sm:$0x1] %vm196, %v1226
    %1266 = vst.msk [vmem:[#allocation5 + $0xad] sm:$0x1] %vm196, %v1240
    %1267 = vst.msk [vmem:[#allocation5 + $0xcd] sm:$0x1] %vm196, %v1242
    %1268 = vst.msk [vmem:[#allocation5 + $0xed] sm:$0x1] %vm196, %v1244
    %v1269 = vld [vmem:[#allocation2 + $0x7] sm:$0x1]
    %v1270 = vld [vmem:[#allocation2 + $0x17] sm:$0x1]
    %v1271 = vld [vmem:[#allocation2 + $0x27] sm:$0x1]
    %v1272 = vld [vmem:[#allocation2 + $0x37] sm:$0x1]
    %v1273 = vld [vmem:[#allocation2 + $0x47] sm:$0x1]
    %v1274 = vld [vmem:[#allocation2 + $0x57] sm:$0x1]
    %v1275 = vld [vmem:[#allocation2 + $0x67] sm:$0x1]
    %v1276 = vld [vmem:[#allocation2 + $0x77] sm:$0x1]
    %v1285 = vrot.slane %v1270, 7
    %v1286 = vsel %vm45, %v1285, %v1269
    %v1287 = vrot.slane %v1271, 6
    %v1288 = vsel %vm48, %v1287, %v1286
    %v1289 = vrot.slane %v1272, 5
    %v1290 = vsel %vm51, %v1289, %v1288
    %v1291 = vrot.slane %v1273, 4
    %v1292 = vsel %vm54, %v1291, %v1290
    %v1293 = vrot.slane %v1274, 3
    %v1294 = vsel %vm57, %v1293, %v1292
    %v1295 = vrot.slane %v1275, 2
    %v1296 = vsel %vm60, %v1295, %v1294
    %v1297 = vrot.slane %v1276, 1
    %v1298 = vsel %vm63, %v1297, %v1296
    %v1299 = vsel %vm65, %v1298, 0
    %1301 = vmatprep.subr.mxu0 0.0
    %1302 = vmatpush1.msra.mxu0 %v26
    %1303 = vmatprep.subr.mxu0 0.0
    %1304 = vmatpush1.msra.mxu0 %v27
    %1305 = vmatprep.subr.mxu0 0.0
    %1306 = vmatpush1.msra.mxu0 0.0
    %1307 = vmatprep.subr.mxu0 0.0
    %1308 = vmatpush1.msra.mxu0 0.0
    %1309 = vmatprep.subr.mxu0 0.0
    %1310 = vmatpush1.msra.mxu0 0.0
    %1311 = vmatprep.subr.mxu0 0.0
    %1312 = vmatpush1.msra.mxu0 0.0
    %1313 = vmatprep.subr.mxu0 0.0
    %1314 = vmatpush1.msra.mxu0 0.0
    %1315 = vmatprep.subr.mxu0 0.0
    %1316 = vmatpush1.msra.mxu0 0.0
    %1317 = vmatprep.subr.mxu0 0.0
    %1318 = vmatpush1.msra.mxu0 0.0
    %1319 = vmatprep.subr.mxu0 0.0
    %1320 = vmatpush1.msra.mxu0 0.0
    %1321 = vmatprep.subr.mxu0 0.0
    %1322 = vmatpush1.msra.mxu0 0.0
    %1323 = vmatprep.subr.mxu0 0.0
    %1324 = vmatpush1.msra.mxu0 0.0
    %1325 = vmatprep.subr.mxu0 0.0
    %1326 = vmatpush1.msra.mxu0 0.0
    %1327 = vmatprep.subr.mxu0 0.0
    %1328 = vmatpush1.msra.mxu0 0.0
    %1329 = vmatprep.subr.mxu0 0.0
    %1330 = vmatpush1.msra.mxu0 0.0
    %1331 = vmatprep.subr.mxu0 0.0
    %1332 = vmatpush1.msra.mxu0 0.0
    %1333 = vmatprep.subr.mxu0 0.0
    %1334 = vmatpush1.msra.mxu0 0.0
    %1335 = vmatprep.subr.mxu0 0.0
    %1336 = vmatpush1.msra.mxu0 0.0
    %1337 = vmatprep.subr.mxu0 0.0
    %1338 = vmatpush1.msra.mxu0 0.0
    %1339 = vmatprep.subr.mxu0 0.0
    %1340 = vmatpush1.msra.mxu0 0.0
    %1341 = vmatprep.subr.mxu0 0.0
    %1342 = vmatpush1.msra.mxu0 0.0
    %1343 = vmatprep.subr.mxu0 0.0
    %1344 = vmatpush1.msra.mxu0 0.0
    %1345 = vmatprep.subr.mxu0 0.0
    %1346 = vmatpush1.msra.mxu0 0.0
    %1347 = vmatprep.subr.mxu0 0.0
    %1348 = vmatpush1.msra.mxu0 0.0
    %1349 = vmatprep.subr.mxu0 0.0
    %1350 = vmatpush1.msra.mxu0 0.0
    %1351 = vmatprep.subr.mxu0 0.0
    %1352 = vmatpush1.msra.mxu0 0.0
    %1353 = vmatprep.subr.mxu0 0.0
    %1354 = vmatpush1.msra.mxu0 0.0
    %1355 = vmatprep.subr.mxu0 0.0
    %1356 = vmatpush1.msra.mxu0 0.0
    %1357 = vmatprep.subr.mxu0 0.0
    %1358 = vmatpush1.msra.mxu0 0.0
    %1359 = vmatprep.subr.mxu0 0.0
    %1360 = vmatpush1.msra.mxu0 0.0
    %1361 = vmatprep.subr.mxu0 0.0
    %1362 = vmatpush1.msra.mxu0 0.0
    %1363 = vmatprep.subr.mxu0 0.0
    %1364 = vmatpush1.msra.mxu0 0.0
    %1365 = vmatprep.mubr.f32.mxu0 0.0
    %1366 = vmatmul.mubr.f32.gmra.mrb[0].mxu0 %v1299
    %v1367 = vpop.f32.mrb[0].mxu0
    %v1368 = vadd.f32 0.0, %v1367
    %v1369 = vpop.f32.mrb[0].mxu0
    %1370 = vdwg.mxu0
    %v1372 = vcombine.high %v1368, %v1368
    %v1374 = vunpack.c.l.s4 1966171168
    %v1375 = vunpack.c.0.s8 %v1374
    %v1376 = vlaneseq
    %v1377 = vshrl.u32 %v1376, 7
    %v1378 = vsub.s32 %v1375, %v1377
    %v1379 = vrot.slane %v1368, %v1378
    %v1381 = vunpack.c.l.s4 1966171168
    %v1382 = vunpack.c.0.s8 %v1381
    %v1383 = vlaneseq
    %v1384 = vshrl.u32 %v1383, 7
    %v1385 = vsub.s32 %v1382, %v1384
    %v1386 = vrot.slane %v1372, %v1385
    %v1387 = vcombine.high %v1379, %v1379
    %v1388 = vcombine.high %v1386, %v1386
    %v1390 = vunpack.c.l.s4 1966171168
    %v1391 = vunpack.c.0.s8 %v1390
    %v1392 = vlaneseq
    %v1393 = vshrl.u32 %v1392, 7
    %v1394 = vsub.s32 %v1391, %v1393
    %v1395 = vrot.slane %v1379, %v1394
    %v1397 = vunpack.c.l.s4 1966171168
    %v1398 = vunpack.c.0.s8 %v1397
    %v1399 = vlaneseq
    %v1400 = vshrl.u32 %v1399, 7
    %v1401 = vsub.s32 %v1398, %v1400
    %v1402 = vrot.slane %v1386, %v1401
    %v1404 = vunpack.c.l.s4 1966171168
    %v1405 = vunpack.c.0.s8 %v1404
    %v1406 = vlaneseq
    %v1407 = vshrl.u32 %v1406, 7
    %v1408 = vsub.s32 %v1405, %v1407
    %v1409 = vrot.slane %v1387, %v1408
    %v1411 = vunpack.c.l.s4 1966171168
    %v1412 = vunpack.c.0.s8 %v1411
    %v1413 = vlaneseq
    %v1414 = vshrl.u32 %v1413, 7
    %v1415 = vsub.s32 %v1412, %v1414
    %v1416 = vrot.slane %v1388, %v1415
    %v1417 = vcombine.high %v1395, %v1395
    %v1418 = vcombine.high %v1402, %v1402
    %v1419 = vcombine.high %v1409, %v1409
    %v1420 = vcombine.high %v1416, %v1416
    %1429 = vst.msk [vmem:[#allocation5 + $0xe] sm:$0x1] %vm196, %v1395
    %1430 = vst.msk [vmem:[#allocation5 + $0x2e] sm:$0x1] %vm196, %v1409
    %1431 = vst.msk [vmem:[#allocation5 + $0x4e] sm:$0x1] %vm196, %v1417
    %1432 = vst.msk [vmem:[#allocation5 + $0x6e] sm:$0x1] %vm196, %v1419
    %1433 = vst.msk [vmem:[#allocation5 + $0x8e] sm:$0x1] %vm196, %v1402
    %1434 = vst.msk [vmem:[#allocation5 + $0xae] sm:$0x1] %vm196, %v1416
    %1435 = vst.msk [vmem:[#allocation5 + $0xce] sm:$0x1] %vm196, %v1418
    %1436 = vst.msk [vmem:[#allocation5 + $0xee] sm:$0x1] %vm196, %v1420
    %1437 = vst.msk [vmem:[#allocation5 + $0xf] sm:$0x1] %vm196, %v1395
    %1438 = vst.msk [vmem:[#allocation5 + $0x2f] sm:$0x1] %vm196, %v1409
    %1439 = vst.msk [vmem:[#allocation5 + $0x4f] sm:$0x1] %vm196, %v1417
    %1440 = vst.msk [vmem:[#allocation5 + $0x6f] sm:$0x1] %vm196, %v1419
    %1441 = vst.msk [vmem:[#allocation5 + $0x8f] sm:$0x1] %vm196, %v1402
    %1442 = vst.msk [vmem:[#allocation5 + $0xaf] sm:$0x1] %vm196, %v1416
    %1443 = vst.msk [vmem:[#allocation5 + $0xcf] sm:$0x1] %vm196, %v1418
    %1444 = vst.msk [vmem:[#allocation5 + $0xef] sm:$0x1] %vm196, %v1420
    %v1445 = vld [vmem:[#allocation2 + $0x8] sm:$0x1]
    %v1446 = vld [vmem:[#allocation2 + $0x18] sm:$0x1]
    %v1447 = vld [vmem:[#allocation2 + $0x28] sm:$0x1]
    %v1448 = vld [vmem:[#allocation2 + $0x38] sm:$0x1]
    %v1449 = vld [vmem:[#allocation2 + $0x48] sm:$0x1]
    %v1450 = vld [vmem:[#allocation2 + $0x58] sm:$0x1]
    %v1451 = vld [vmem:[#allocation2 + $0x68] sm:$0x1]
    %v1452 = vld [vmem:[#allocation2 + $0x78] sm:$0x1]
    %v1461 = vrot.slane %v1446, 7
    %v1462 = vsel %vm45, %v1461, %v1445
    %v1463 = vrot.slane %v1447, 6
    %v1464 = vsel %vm48, %v1463, %v1462
    %v1465 = vrot.slane %v1448, 5
    %v1466 = vsel %vm51, %v1465, %v1464
    %v1467 = vrot.slane %v1449, 4
    %v1468 = vsel %vm54, %v1467, %v1466
    %v1469 = vrot.slane %v1450, 3
    %v1470 = vsel %vm57, %v1469, %v1468
    %v1471 = vrot.slane %v1451, 2
    %v1472 = vsel %vm60, %v1471, %v1470
    %v1473 = vrot.slane %v1452, 1
    %v1474 = vsel %vm63, %v1473, %v1472
    %v1475 = vsel %vm65, %v1474, 0
    %1477 = vmatprep.subr.mxu0 0.0
    %1478 = vmatpush1.msra.mxu0 %v26
    %1479 = vmatprep.subr.mxu0 0.0
    %1480 = vmatpush1.msra.mxu0 %v27
    %1481 = vmatprep.subr.mxu0 0.0
    %1482 = vmatpush1.msra.mxu0 0.0
    %1483 = vmatprep.subr.mxu0 0.0
    %1484 = vmatpush1.msra.mxu0 0.0
    %1485 = vmatprep.subr.mxu0 0.0
    %1486 = vmatpush1.msra.mxu0 0.0
    %1487 = vmatprep.subr.mxu0 0.0
    %1488 = vmatpush1.msra.mxu0 0.0
    %1489 = vmatprep.subr.mxu0 0.0
    %1490 = vmatpush1.msra.mxu0 0.0
    %1491 = vmatprep.subr.mxu0 0.0
    %1492 = vmatpush1.msra.mxu0 0.0
    %1493 = vmatprep.subr.mxu0 0.0
    %1494 = vmatpush1.msra.mxu0 0.0
    %1495 = vmatprep.subr.mxu0 0.0
    %1496 = vmatpush1.msra.mxu0 0.0
    %1497 = vmatprep.subr.mxu0 0.0
    %1498 = vmatpush1.msra.mxu0 0.0
    %1499 = vmatprep.subr.mxu0 0.0
    %1500 = vmatpush1.msra.mxu0 0.0
    %1501 = vmatprep.subr.mxu0 0.0
    %1502 = vmatpush1.msra.mxu0 0.0
    %1503 = vmatprep.subr.mxu0 0.0
    %1504 = vmatpush1.msra.mxu0 0.0
    %1505 = vmatprep.subr.mxu0 0.0
    %1506 = vmatpush1.msra.mxu0 0.0
    %1507 = vmatprep.subr.mxu0 0.0
    %1508 = vmatpush1.msra.mxu0 0.0
    %1509 = vmatprep.subr.mxu0 0.0
    %1510 = vmatpush1.msra.mxu0 0.0
    %1511 = vmatprep.subr.mxu0 0.0
    %1512 = vmatpush1.msra.mxu0 0.0
    %1513 = vmatprep.subr.mxu0 0.0
    %1514 = vmatpush1.msra.mxu0 0.0
    %1515 = vmatprep.subr.mxu0 0.0
    %1516 = vmatpush1.msra.mxu0 0.0
    %1517 = vmatprep.subr.mxu0 0.0
    %1518 = vmatpush1.msra.mxu0 0.0
    %1519 = vmatprep.subr.mxu0 0.0
    %1520 = vmatpush1.msra.mxu0 0.0
    %1521 = vmatprep.subr.mxu0 0.0
    %1522 = vmatpush1.msra.mxu0 0.0
    %1523 = vmatprep.subr.mxu0 0.0
    %1524 = vmatpush1.msra.mxu0 0.0
    %1525 = vmatprep.subr.mxu0 0.0
    %1526 = vmatpush1.msra.mxu0 0.0
    %1527 = vmatprep.subr.mxu0 0.0
    %1528 = vmatpush1.msra.mxu0 0.0
    %1529 = vmatprep.subr.mxu0 0.0
    %1530 = vmatpush1.msra.mxu0 0.0
    %1531 = vmatprep.subr.mxu0 0.0
    %1532 = vmatpush1.msra.mxu0 0.0
    %1533 = vmatprep.subr.mxu0 0.0
    %1534 = vmatpush1.msra.mxu0 0.0
    %1535 = vmatprep.subr.mxu0 0.0
    %1536 = vmatpush1.msra.mxu0 0.0
    %1537 = vmatprep.subr.mxu0 0.0
    %1538 = vmatpush1.msra.mxu0 0.0
    %1539 = vmatprep.subr.mxu0 0.0
    %1540 = vmatpush1.msra.mxu0 0.0
    %1541 = vmatprep.mubr.f32.mxu0 0.0
    %1542 = vmatmul.mubr.f32.gmra.mrb[0].mxu0 %v1475
    %v1543 = vpop.f32.mrb[0].mxu0
    %v1544 = vadd.f32 0.0, %v1543
    %v1545 = vpop.f32.mrb[0].mxu0
    %1546 = vdwg.mxu0
    %v1548 = vcombine.high %v1544, %v1544
    %v1550 = vunpack.c.l.s4 1966171168
    %v1551 = vunpack.c.0.s8 %v1550
    %v1552 = vlaneseq
    %v1553 = vshrl.u32 %v1552, 7
    %v1554 = vsub.s32 %v1551, %v1553
    %v1555 = vrot.slane %v1544, %v1554
    %v1557 = vunpack.c.l.s4 1966171168
    %v1558 = vunpack.c.0.s8 %v1557
    %v1559 = vlaneseq
    %v1560 = vshrl.u32 %v1559, 7
    %v1561 = vsub.s32 %v1558, %v1560
    %v1562 = vrot.slane %v1548, %v1561
    %v1563 = vcombine.high %v1555, %v1555
    %v1564 = vcombine.high %v1562, %v1562
    %v1566 = vunpack.c.l.s4 1966171168
    %v1567 = vunpack.c.0.s8 %v1566
    %v1568 = vlaneseq
    %v1569 = vshrl.u32 %v1568, 7
    %v1570 = vsub.s32 %v1567, %v1569
    %v1571 = vrot.slane %v1555, %v1570
    %v1573 = vunpack.c.l.s4 1966171168
    %v1574 = vunpack.c.0.s8 %v1573
    %v1575 = vlaneseq
    %v1576 = vshrl.u32 %v1575, 7
    %v1577 = vsub.s32 %v1574, %v1576
    %v1578 = vrot.slane %v1562, %v1577
    %v1580 = vunpack.c.l.s4 1966171168
    %v1581 = vunpack.c.0.s8 %v1580
    %v1582 = vlaneseq
    %v1583 = vshrl.u32 %v1582, 7
    %v1584 = vsub.s32 %v1581, %v1583
    %v1585 = vrot.slane %v1563, %v1584
    %v1587 = vunpack.c.l.s4 1966171168
    %v1588 = vunpack.c.0.s8 %v1587
    %v1589 = vlaneseq
    %v1590 = vshrl.u32 %v1589, 7
    %v1591 = vsub.s32 %v1588, %v1590
    %v1592 = vrot.slane %v1564, %v1591
    %v1593 = vcombine.high %v1571, %v1571
    %v1594 = vcombine.high %v1578, %v1578
    %v1595 = vcombine.high %v1585, %v1585
    %v1596 = vcombine.high %v1592, %v1592
    %1605 = vst.msk [vmem:[#allocation5 + $0x10] sm:$0x1] %vm196, %v1571
    %1606 = vst.msk [vmem:[#allocation5 + $0x30] sm:$0x1] %vm196, %v1585
    %1607 = vst.msk [vmem:[#allocation5 + $0x50] sm:$0x1] %vm196, %v1593
    %1608 = vst.msk [vmem:[#allocation5 + $0x70] sm:$0x1] %vm196, %v1595
    %1609 = vst.msk [vmem:[#allocation5 + $0x90] sm:$0x1] %vm196, %v1578
    %1610 = vst.msk [vmem:[#allocation5 + $0xb0] sm:$0x1] %vm196, %v1592
    %1611 = vst.msk [vmem:[#allocation5 + $0xd0] sm:$0x1] %vm196, %v1594
    %1612 = vst.msk [vmem:[#allocation5 + $0xf0] sm:$0x1] %vm196, %v1596
    %1613 = vst.msk [vmem:[#allocation5 + $0x11] sm:$0x1] %vm196, %v1571
    %1614 = vst.msk [vmem:[#allocation5 + $0x31] sm:$0x1] %vm196, %v1585
    %1615 = vst.msk [vmem:[#allocation5 + $0x51] sm:$0x1] %vm196, %v1593
    %1616 = vst.msk [vmem:[#allocation5 + $0x71] sm:$0x1] %vm196, %v1595
    %1617 = vst.msk [vmem:[#allocation5 + $0x91] sm:$0x1] %vm196, %v1578
    %1618 = vst.msk [vmem:[#allocation5 + $0xb1] sm:$0x1] %vm196, %v1592
    %1619 = vst.msk [vmem:[#allocation5 + $0xd1] sm:$0x1] %vm196, %v1594
    %1620 = vst.msk [vmem:[#allocation5 + $0xf1] sm:$0x1] %vm196, %v1596
    %v1621 = vld [vmem:[#allocation2 + $0x9] sm:$0x1]
    %v1622 = vld [vmem:[#allocation2 + $0x19] sm:$0x1]
    %v1623 = vld [vmem:[#allocation2 + $0x29] sm:$0x1]
    %v1624 = vld [vmem:[#allocation2 + $0x39] sm:$0x1]
    %v1625 = vld [vmem:[#allocation2 + $0x49] sm:$0x1]
    %v1626 = vld [vmem:[#allocation2 + $0x59] sm:$0x1]
    %v1627 = vld [vmem:[#allocation2 + $0x69] sm:$0x1]
    %v1628 = vld [vmem:[#allocation2 + $0x79] sm:$0x1]
    %v1637 = vrot.slane %v1622, 7
    %v1638 = vsel %vm45, %v1637, %v1621
    %v1639 = vrot.slane %v1623, 6
    %v1640 = vsel %vm48, %v1639, %v1638
    %v1641 = vrot.slane %v1624, 5
    %v1642 = vsel %vm51, %v1641, %v1640
    %v1643 = vrot.slane %v1625, 4
    %v1644 = vsel %vm54, %v1643, %v1642
    %v1645 = vrot.slane %v1626, 3
    %v1646 = vsel %vm57, %v1645, %v1644
    %v1647 = vrot.slane %v1627, 2
    %v1648 = vsel %vm60, %v1647, %v1646
    %v1649 = vrot.slane %v1628, 1
    %v1650 = vsel %vm63, %v1649, %v1648
    %v1651 = vsel %vm65, %v1650, 0
    %1653 = vmatprep.subr.mxu0 0.0
    %1654 = vmatpush1.msra.mxu0 %v26
    %1655 = vmatprep.subr.mxu0 0.0
    %1656 = vmatpush1.msra.mxu0 %v27
    %1657 = vmatprep.subr.mxu0 0.0
    %1658 = vmatpush1.msra.mxu0 0.0
    %1659 = vmatprep.subr.mxu0 0.0
    %1660 = vmatpush1.msra.mxu0 0.0
    %1661 = vmatprep.subr.mxu0 0.0
    %1662 = vmatpush1.msra.mxu0 0.0
    %1663 = vmatprep.subr.mxu0 0.0
    %1664 = vmatpush1.msra.mxu0 0.0
    %1665 = vmatprep.subr.mxu0 0.0
    %1666 = vmatpush1.msra.mxu0 0.0
    %1667 = vmatprep.subr.mxu0 0.0
    %1668 = vmatpush1.msra.mxu0 0.0
    %1669 = vmatprep.subr.mxu0 0.0
    %1670 = vmatpush1.msra.mxu0 0.0
    %1671 = vmatprep.subr.mxu0 0.0
    %1672 = vmatpush1.msra.mxu0 0.0
    %1673 = vmatprep.subr.mxu0 0.0
    %1674 = vmatpush1.msra.mxu0 0.0
    %1675 = vmatprep.subr.mxu0 0.0
    %1676 = vmatpush1.msra.mxu0 0.0
    %1677 = vmatprep.subr.mxu0 0.0
    %1678 = vmatpush1.msra.mxu0 0.0
    %1679 = vmatprep.subr.mxu0 0.0
    %1680 = vmatpush1.msra.mxu0 0.0
    %1681 = vmatprep.subr.mxu0 0.0
    %1682 = vmatpush1.msra.mxu0 0.0
    %1683 = vmatprep.subr.mxu0 0.0
    %1684 = vmatpush1.msra.mxu0 0.0
    %1685 = vmatprep.subr.mxu0 0.0
    %1686 = vmatpush1.msra.mxu0 0.0
    %1687 = vmatprep.subr.mxu0 0.0
    %1688 = vmatpush1.msra.mxu0 0.0
    %1689 = vmatprep.subr.mxu0 0.0
    %1690 = vmatpush1.msra.mxu0 0.0
    %1691 = vmatprep.subr.mxu0 0.0
    %1692 = vmatpush1.msra.mxu0 0.0
    %1693 = vmatprep.subr.mxu0 0.0
    %1694 = vmatpush1.msra.mxu0 0.0
    %1695 = vmatprep.subr.mxu0 0.0
    %1696 = vmatpush1.msra.mxu0 0.0
    %1697 = vmatprep.subr.mxu0 0.0
    %1698 = vmatpush1.msra.mxu0 0.0
    %1699 = vmatprep.subr.mxu0 0.0
    %1700 = vmatpush1.msra.mxu0 0.0
    %1701 = vmatprep.subr.mxu0 0.0
    %1702 = vmatpush1.msra.mxu0 0.0
    %1703 = vmatprep.subr.mxu0 0.0
    %1704 = vmatpush1.msra.mxu0 0.0
    %1705 = vmatprep.subr.mxu0 0.0
    %1706 = vmatpush1.msra.mxu0 0.0
    %1707 = vmatprep.subr.mxu0 0.0
    %1708 = vmatpush1.msra.mxu0 0.0
    %1709 = vmatprep.subr.mxu0 0.0
    %1710 = vmatpush1.msra.mxu0 0.0
    %1711 = vmatprep.subr.mxu0 0.0
    %1712 = vmatpush1.msra.mxu0 0.0
    %1713 = vmatprep.subr.mxu0 0.0
    %1714 = vmatpush1.msra.mxu0 0.0
    %1715 = vmatprep.subr.mxu0 0.0
    %1716 = vmatpush1.msra.mxu0 0.0
    %1717 = vmatprep.mubr.f32.mxu0 0.0
    %1718 = vmatmul.mubr.f32.gmra.mrb[0].mxu0 %v1651
    %v1719 = vpop.f32.mrb[0].mxu0
    %v1720 = vadd.f32 0.0, %v1719
    %v1721 = vpop.f32.mrb[0].mxu0
    %1722 = vdwg.mxu0
    %v1724 = vcombine.high %v1720, %v1720
    %v1726 = vunpack.c.l.s4 1966171168
    %v1727 = vunpack.c.0.s8 %v1726
    %v1728 = vlaneseq
    %v1729 = vshrl.u32 %v1728, 7
    %v1730 = vsub.s32 %v1727, %v1729
    %v1731 = vrot.slane %v1720, %v1730
    %v1733 = vunpack.c.l.s4 1966171168
    %v1734 = vunpack.c.0.s8 %v1733
    %v1735 = vlaneseq
    %v1736 = vshrl.u32 %v1735, 7
    %v1737 = vsub.s32 %v1734, %v1736
    %v1738 = vrot.slane %v1724, %v1737
    %v1739 = vcombine.high %v1731, %v1731
    %v1740 = vcombine.high %v1738, %v1738
    %v1742 = vunpack.c.l.s4 1966171168
    %v1743 = vunpack.c.0.s8 %v1742
    %v1744 = vlaneseq
    %v1745 = vshrl.u32 %v1744, 7
    %v1746 = vsub.s32 %v1743, %v1745
    %v1747 = vrot.slane %v1731, %v1746
    %v1749 = vunpack.c.l.s4 1966171168
    %v1750 = vunpack.c.0.s8 %v1749
    %v1751 = vlaneseq
    %v1752 = vshrl.u32 %v1751, 7
    %v1753 = vsub.s32 %v1750, %v1752
    %v1754 = vrot.slane %v1738, %v1753
    %v1756 = vunpack.c.l.s4 1966171168
    %v1757 = vunpack.c.0.s8 %v1756
    %v1758 = vlaneseq
    %v1759 = vshrl.u32 %v1758, 7
    %v1760 = vsub.s32 %v1757, %v1759
    %v1761 = vrot.slane %v1739, %v1760
    %v1763 = vunpack.c.l.s4 1966171168
    %v1764 = vunpack.c.0.s8 %v1763
    %v1765 = vlaneseq
    %v1766 = vshrl.u32 %v1765, 7
    %v1767 = vsub.s32 %v1764, %v1766
    %v1768 = vrot.slane %v1740, %v1767
    %v1769 = vcombine.high %v1747, %v1747
    %v1770 = vcombine.high %v1754, %v1754
    %v1771 = vcombine.high %v1761, %v1761
    %v1772 = vcombine.high %v1768, %v1768
    %1781 = vst.msk [vmem:[#allocation5 + $0x12] sm:$0x1] %vm196, %v1747
    %1782 = vst.msk [vmem:[#allocation5 + $0x32] sm:$0x1] %vm196, %v1761
    %1783 = vst.msk [vmem:[#allocation5 + $0x52] sm:$0x1] %vm196, %v1769
    %1784 = vst.msk [vmem:[#allocation5 + $0x72] sm:$0x1] %vm196, %v1771
    %1785 = vst.msk [vmem:[#allocation5 + $0x92] sm:$0x1] %vm196, %v1754
    %1786 = vst.msk [vmem:[#allocation5 + $0xb2] sm:$0x1] %vm196, %v1768
    %1787 = vst.msk [vmem:[#allocation5 + $0xd2] sm:$0x1] %vm196, %v1770
    %1788 = vst.msk [vmem:[#allocation5 + $0xf2] sm:$0x1] %vm196, %v1772
    %1789 = vst.msk [vmem:[#allocation5 + $0x13] sm:$0x1] %vm196, %v1747
    %1790 = vst.msk [vmem:[#allocation5 + $0x33] sm:$0x1] %vm196, %v1761
    %1791 = vst.msk [vmem:[#allocation5 + $0x53] sm:$0x1] %vm196, %v1769
    %1792 = vst.msk [vmem:[#allocation5 + $0x73] sm:$0x1] %vm196, %v1771
    %1793 = vst.msk [vmem:[#allocation5 + $0x93] sm:$0x1] %vm196, %v1754
    %1794 = vst.msk [vmem:[#allocation5 + $0xb3] sm:$0x1] %vm196, %v1768
    %1795 = vst.msk [vmem:[#allocation5 + $0xd3] sm:$0x1] %vm196, %v1770
    %1796 = vst.msk [vmem:[#allocation5 + $0xf3] sm:$0x1] %vm196, %v1772
    %v1797 = vld [vmem:[#allocation2 + $0xa] sm:$0x1]
    %v1798 = vld [vmem:[#allocation2 + $0x1a] sm:$0x1]
    %v1799 = vld [vmem:[#allocation2 + $0x2a] sm:$0x1]
    %v1800 = vld [vmem:[#allocation2 + $0x3a] sm:$0x1]
    %v1801 = vld [vmem:[#allocation2 + $0x4a] sm:$0x1]
    %v1802 = vld [vmem:[#allocation2 + $0x5a] sm:$0x1]
    %v1803 = vld [vmem:[#allocation2 + $0x6a] sm:$0x1]
    %v1804 = vld [vmem:[#allocation2 + $0x7a] sm:$0x1]
    %v1813 = vrot.slane %v1798, 7
    %v1814 = vsel %vm45, %v1813, %v1797
    %v1815 = vrot.slane %v1799, 6
    %v1816 = vsel %vm48, %v1815, %v1814
    %v1817 = vrot.slane %v1800, 5
    %v1818 = vsel %vm51, %v1817, %v1816
    %v1819 = vrot.slane %v1801, 4
    %v1820 = vsel %vm54, %v1819, %v1818
    %v1821 = vrot.slane %v1802, 3
    %v1822 = vsel %vm57, %v1821, %v1820
    %v1823 = vrot.slane %v1803, 2
    %v1824 = vsel %vm60, %v1823, %v1822
    %v1825 = vrot.slane %v1804, 1
    %v1826 = vsel %vm63, %v1825, %v1824
    %v1827 = vsel %vm65, %v1826, 0
    %1829 = vmatprep.subr.mxu0 0.0
    %1830 = vmatpush1.msra.mxu0 %v26
    %1831 = vmatprep.subr.mxu0 0.0
    %1832 = vmatpush1.msra.mxu0 %v27
    %1833 = vmatprep.subr.mxu0 0.0
    %1834 = vmatpush1.msra.mxu0 0.0
    %1835 = vmatprep.subr.mxu0 0.0
    %1836 = vmatpush1.msra.mxu0 0.0
    %1837 = vmatprep.subr.mxu0 0.0
    %1838 = vmatpush1.msra.mxu0 0.0
    %1839 = vmatprep.subr.mxu0 0.0
    %1840 = vmatpush1.msra.mxu0 0.0
    %1841 = vmatprep.subr.mxu0 0.0
    %1842 = vmatpush1.msra.mxu0 0.0
    %1843 = vmatprep.subr.mxu0 0.0
    %1844 = vmatpush1.msra.mxu0 0.0
    %1845 = vmatprep.subr.mxu0 0.0
    %1846 = vmatpush1.msra.mxu0 0.0
    %1847 = vmatprep.subr.mxu0 0.0
    %1848 = vmatpush1.msra.mxu0 0.0
    %1849 = vmatprep.subr.mxu0 0.0
    %1850 = vmatpush1.msra.mxu0 0.0
    %1851 = vmatprep.subr.mxu0 0.0
    %1852 = vmatpush1.msra.mxu0 0.0
    %1853 = vmatprep.subr.mxu0 0.0
    %1854 = vmatpush1.msra.mxu0 0.0
    %1855 = vmatprep.subr.mxu0 0.0
    %1856 = vmatpush1.msra.mxu0 0.0
    %1857 = vmatprep.subr.mxu0 0.0
    %1858 = vmatpush1.msra.mxu0 0.0
    %1859 = vmatprep.subr.mxu0 0.0
    %1860 = vmatpush1.msra.mxu0 0.0
    %1861 = vmatprep.subr.mxu0 0.0
    %1862 = vmatpush1.msra.mxu0 0.0
    %1863 = vmatprep.subr.mxu0 0.0
    %1864 = vmatpush1.msra.mxu0 0.0
    %1865 = vmatprep.subr.mxu0 0.0
    %1866 = vmatpush1.msra.mxu0 0.0
    %1867 = vmatprep.subr.mxu0 0.0
    %1868 = vmatpush1.msra.mxu0 0.0
    %1869 = vmatprep.subr.mxu0 0.0
    %1870 = vmatpush1.msra.mxu0 0.0
    %1871 = vmatprep.subr.mxu0 0.0
    %1872 = vmatpush1.msra.mxu0 0.0
    %1873 = vmatprep.subr.mxu0 0.0
    %1874 = vmatpush1.msra.mxu0 0.0
    %1875 = vmatprep.subr.mxu0 0.0
    %1876 = vmatpush1.msra.mxu0 0.0
    %1877 = vmatprep.subr.mxu0 0.0
    %1878 = vmatpush1.msra.mxu0 0.0
    %1879 = vmatprep.subr.mxu0 0.0
    %1880 = vmatpush1.msra.mxu0 0.0
    %1881 = vmatprep.subr.mxu0 0.0
    %1882 = vmatpush1.msra.mxu0 0.0
    %1883 = vmatprep.subr.mxu0 0.0
    %1884 = vmatpush1.msra.mxu0 0.0
    %1885 = vmatprep.subr.mxu0 0.0
    %1886 = vmatpush1.msra.mxu0 0.0
    %1887 = vmatprep.subr.mxu0 0.0
    %1888 = vmatpush1.msra.mxu0 0.0
    %1889 = vmatprep.subr.mxu0 0.0
    %1890 = vmatpush1.msra.mxu0 0.0
    %1891 = vmatprep.subr.mxu0 0.0
    %1892 = vmatpush1.msra.mxu0 0.0
    %1893 = vmatprep.mubr.f32.mxu0 0.0
    %1894 = vmatmul.mubr.f32.gmra.mrb[0].mxu0 %v1827
    %v1895 = vpop.f32.mrb[0].mxu0
    %v1896 = vadd.f32 0.0, %v1895
    %v1897 = vpop.f32.mrb[0].mxu0
    %1898 = vdwg.mxu0
    %v1900 = vcombine.high %v1896, %v1896
    %v1902 = vunpack.c.l.s4 1966171168
    %v1903 = vunpack.c.0.s8 %v1902
    %v1904 = vlaneseq
    %v1905 = vshrl.u32 %v1904, 7
    %v1906 = vsub.s32 %v1903, %v1905
    %v1907 = vrot.slane %v1896, %v1906
    %v1909 = vunpack.c.l.s4 1966171168
    %v1910 = vunpack.c.0.s8 %v1909
    %v1911 = vlaneseq
    %v1912 = vshrl.u32 %v1911, 7
    %v1913 = vsub.s32 %v1910, %v1912
    %v1914 = vrot.slane %v1900, %v1913
    %v1915 = vcombine.high %v1907, %v1907
    %v1916 = vcombine.high %v1914, %v1914
    %v1918 = vunpack.c.l.s4 1966171168
    %v1919 = vunpack.c.0.s8 %v1918
    %v1920 = vlaneseq
    %v1921 = vshrl.u32 %v1920, 7
    %v1922 = vsub.s32 %v1919, %v1921
    %v1923 = vrot.slane %v1907, %v1922
    %v1925 = vunpack.c.l.s4 1966171168
    %v1926 = vunpack.c.0.s8 %v1925
    %v1927 = vlaneseq
    %v1928 = vshrl.u32 %v1927, 7
    %v1929 = vsub.s32 %v1926, %v1928
    %v1930 = vrot.slane %v1914, %v1929
    %v1932 = vunpack.c.l.s4 1966171168
    %v1933 = vunpack.c.0.s8 %v1932
    %v1934 = vlaneseq
    %v1935 = vshrl.u32 %v1934, 7
    %v1936 = vsub.s32 %v1933, %v1935
    %v1937 = vrot.slane %v1915, %v1936
    %v1939 = vunpack.c.l.s4 1966171168
    %v1940 = vunpack.c.0.s8 %v1939
    %v1941 = vlaneseq
    %v1942 = vshrl.u32 %v1941, 7
    %v1943 = vsub.s32 %v1940, %v1942
    %v1944 = vrot.slane %v1916, %v1943
    %v1945 = vcombine.high %v1923, %v1923
    %v1946 = vcombine.high %v1930, %v1930
    %v1947 = vcombine.high %v1937, %v1937
    %v1948 = vcombine.high %v1944, %v1944
    %1957 = vst.msk [vmem:[#allocation5 + $0x14] sm:$0x1] %vm196, %v1923
    %1958 = vst.msk [vmem:[#allocation5 + $0x34] sm:$0x1] %vm196, %v1937
    %1959 = vst.msk [vmem:[#allocation5 + $0x54] sm:$0x1] %vm196, %v1945
    %1960 = vst.msk [vmem:[#allocation5 + $0x74] sm:$0x1] %vm196, %v1947
    %1961 = vst.msk [vmem:[#allocation5 + $0x94] sm:$0x1] %vm196, %v1930
    %1962 = vst.msk [vmem:[#allocation5 + $0xb4] sm:$0x1] %vm196, %v1944
    %1963 = vst.msk [vmem:[#allocation5 + $0xd4] sm:$0x1] %vm196, %v1946
    %1964 = vst.msk [vmem:[#allocation5 + $0xf4] sm:$0x1] %vm196, %v1948
    %1965 = vst.msk [vmem:[#allocation5 + $0x15] sm:$0x1] %vm196, %v1923
    %1966 = vst.msk [vmem:[#allocation5 + $0x35] sm:$0x1] %vm196, %v1937
    %1967 = vst.msk [vmem:[#allocation5 + $0x55] sm:$0x1] %vm196, %v1945
    %1968 = vst.msk [vmem:[#allocation5 + $0x75] sm:$0x1] %vm196, %v1947
    %1969 = vst.msk [vmem:[#allocation5 + $0x95] sm:$0x1] %vm196, %v1930
    %1970 = vst.msk [vmem:[#allocation5 + $0xb5] sm:$0x1] %vm196, %v1944
    %1971 = vst.msk [vmem:[#allocation5 + $0xd5] sm:$0x1] %vm196, %v1946
    %1972 = vst.msk [vmem:[#allocation5 + $0xf5] sm:$0x1] %vm196, %v1948
    %v1973 = vld [vmem:[#allocation2 + $0xb] sm:$0x1]
    %v1974 = vld [vmem:[#allocation2 + $0x1b] sm:$0x1]
    %v1975 = vld [vmem:[#allocation2 + $0x2b] sm:$0x1]
    %v1976 = vld [vmem:[#allocation2 + $0x3b] sm:$0x1]
    %v1977 = vld [vmem:[#allocation2 + $0x4b] sm:$0x1]
    %v1978 = vld [vmem:[#allocation2 + $0x5b] sm:$0x1]
    %v1979 = vld [vmem:[#allocation2 + $0x6b] sm:$0x1]
    %v1980 = vld [vmem:[#allocation2 + $0x7b] sm:$0x1]
    %v1989 = vrot.slane %v1974, 7
    %v1990 = vsel %vm45, %v1989, %v1973
    %v1991 = vrot.slane %v1975, 6
    %v1992 = vsel %vm48, %v1991, %v1990
    %v1993 = vrot.slane %v1976, 5
    %v1994 = vsel %vm51, %v1993, %v1992
    %v1995 = vrot.slane %v1977, 4
    %v1996 = vsel %vm54, %v1995, %v1994
    %v1997 = vrot.slane %v1978, 3
    %v1998 = vsel %vm57, %v1997, %v1996
    %v1999 = vrot.slane %v1979, 2
    %v2000 = vsel %vm60, %v1999, %v1998
    %v2001 = vrot.slane %v1980, 1
    %v2002 = vsel %vm63, %v2001, %v2000
    %v2003 = vsel %vm65, %v2002, 0
    %2005 = vmatprep.subr.mxu0 0.0
    %2006 = vmatpush1.msra.mxu0 %v26
    %2007 = vmatprep.subr.mxu0 0.0
    %2008 = vmatpush1.msra.mxu0 %v27
    %2009 = vmatprep.subr.mxu0 0.0
    %2010 = vmatpush1.msra.mxu0 0.0
    %2011 = vmatprep.subr.mxu0 0.0
    %2012 = vmatpush1.msra.mxu0 0.0
    %2013 = vmatprep.subr.mxu0 0.0
    %2014 = vmatpush1.msra.mxu0 0.0
    %2015 = vmatprep.subr.mxu0 0.0
    %2016 = vmatpush1.msra.mxu0 0.0
    %2017 = vmatprep.subr.mxu0 0.0
    %2018 = vmatpush1.msra.mxu0 0.0
    %2019 = vmatprep.subr.mxu0 0.0
    %2020 = vmatpush1.msra.mxu0 0.0
    %2021 = vmatprep.subr.mxu0 0.0
    %2022 = vmatpush1.msra.mxu0 0.0
    %2023 = vmatprep.subr.mxu0 0.0
    %2024 = vmatpush1.msra.mxu0 0.0
    %2025 = vmatprep.subr.mxu0 0.0
    %2026 = vmatpush1.msra.mxu0 0.0
    %2027 = vmatprep.subr.mxu0 0.0
    %2028 = vmatpush1.msra.mxu0 0.0
    %2029 = vmatprep.subr.mxu0 0.0
    %2030 = vmatpush1.msra.mxu0 0.0
    %2031 = vmatprep.subr.mxu0 0.0
    %2032 = vmatpush1.msra.mxu0 0.0
    %2033 = vmatprep.subr.mxu0 0.0
    %2034 = vmatpush1.msra.mxu0 0.0
    %2035 = vmatprep.subr.mxu0 0.0
    %2036 = vmatpush1.msra.mxu0 0.0
    %2037 = vmatprep.subr.mxu0 0.0
    %2038 = vmatpush1.msra.mxu0 0.0
    %2039 = vmatprep.subr.mxu0 0.0
    %2040 = vmatpush1.msra.mxu0 0.0
    %2041 = vmatprep.subr.mxu0 0.0
    %2042 = vmatpush1.msra.mxu0 0.0
    %2043 = vmatprep.subr.mxu0 0.0
    %2044 = vmatpush1.msra.mxu0 0.0
    %2045 = vmatprep.subr.mxu0 0.0
    %2046 = vmatpush1.msra.mxu0 0.0
    %2047 = vmatprep.subr.mxu0 0.0
    %2048 = vmatpush1.msra.mxu0 0.0
    %2049 = vmatprep.subr.mxu0 0.0
    %2050 = vmatpush1.msra.mxu0 0.0
    %2051 = vmatprep.subr.mxu0 0.0
    %2052 = vmatpush1.msra.mxu0 0.0
    %2053 = vmatprep.subr.mxu0 0.0
    %2054 = vmatpush1.msra.mxu0 0.0
    %2055 = vmatprep.subr.mxu0 0.0
    %2056 = vmatpush1.msra.mxu0 0.0
    %2057 = vmatprep.subr.mxu0 0.0
    %2058 = vmatpush1.msra.mxu0 0.0
    %2059 = vmatprep.subr.mxu0 0.0
    %2060 = vmatpush1.msra.mxu0 0.0
    %2061 = vmatprep.subr.mxu0 0.0
    %2062 = vmatpush1.msra.mxu0 0.0
    %2063 = vmatprep.subr.mxu0 0.0
    %2064 = vmatpush1.msra.mxu0 0.0
    %2065 = vmatprep.subr.mxu0 0.0
    %2066 = vmatpush1.msra.mxu0 0.0
    %2067 = vmatprep.subr.mxu0 0.0
    %2068 = vmatpush1.msra.mxu0 0.0
    %2069 = vmatprep.mubr.f32.mxu0 0.0
    %2070 = vmatmul.mubr.f32.gmra.mrb[0].mxu0 %v2003
    %v2071 = vpop.f32.mrb[0].mxu0
    %v2072 = vadd.f32 0.0, %v2071
    %v2073 = vpop.f32.mrb[0].mxu0
    %2074 = vdwg.mxu0
    %v2076 = vcombine.high %v2072, %v2072
    %v2078 = vunpack.c.l.s4 1966171168
    %v2079 = vunpack.c.0.s8 %v2078
    %v2080 = vlaneseq
    %v2081 = vshrl.u32 %v2080, 7
    %v2082 = vsub.s32 %v2079, %v2081
    %v2083 = vrot.slane %v2072, %v2082
    %v2085 = vunpack.c.l.s4 1966171168
    %v2086 = vunpack.c.0.s8 %v2085
    %v2087 = vlaneseq
    %v2088 = vshrl.u32 %v2087, 7
    %v2089 = vsub.s32 %v2086, %v2088
    %v2090 = vrot.slane %v2076, %v2089
    %v2091 = vcombine.high %v2083, %v2083
    %v2092 = vcombine.high %v2090, %v2090
    %v2094 = vunpack.c.l.s4 1966171168
    %v2095 = vunpack.c.0.s8 %v2094
    %v2096 = vlaneseq
    %v2097 = vshrl.u32 %v2096, 7
    %v2098 = vsub.s32 %v2095, %v2097
    %v2099 = vrot.slane %v2083, %v2098
    %v2101 = vunpack.c.l.s4 1966171168
    %v2102 = vunpack.c.0.s8 %v2101
    %v2103 = vlaneseq
    %v2104 = vshrl.u32 %v2103, 7
    %v2105 = vsub.s32 %v2102, %v2104
    %v2106 = vrot.slane %v2090, %v2105
    %v2108 = vunpack.c.l.s4 1966171168
    %v2109 = vunpack.c.0.s8 %v2108
    %v2110 = vlaneseq
    %v2111 = vshrl.u32 %v2110, 7
    %v2112 = vsub.s32 %v2109, %v2111
    %v2113 = vrot.slane %v2091, %v2112
    %v2115 = vunpack.c.l.s4 1966171168
    %v2116 = vunpack.c.0.s8 %v2115
    %v2117 = vlaneseq
    %v2118 = vshrl.u32 %v2117, 7
    %v2119 = vsub.s32 %v2116, %v2118
    %v2120 = vrot.slane %v2092, %v2119
    %v2121 = vcombine.high %v2099, %v2099
    %v2122 = vcombine.high %v2106, %v2106
    %v2123 = vcombine.high %v2113, %v2113
    %v2124 = vcombine.high %v2120, %v2120
    %2133 = vst.msk [vmem:[#allocation5 + $0x16] sm:$0x1] %vm196, %v2099
    %2134 = vst.msk [vmem:[#allocation5 + $0x36] sm:$0x1] %vm196, %v2113
    %2135 = vst.msk [vmem:[#allocation5 + $0x56] sm:$0x1] %vm196, %v2121
    %2136 = vst.msk [vmem:[#allocation5 + $0x76] sm:$0x1] %vm196, %v2123
    %2137 = vst.msk [vmem:[#allocation5 + $0x96] sm:$0x1] %vm196, %v2106
    %2138 = vst.msk [vmem:[#allocation5 + $0xb6] sm:$0x1] %vm196, %v2120
    %2139 = vst.msk [vmem:[#allocation5 + $0xd6] sm:$0x1] %vm196, %v2122
    %2140 = vst.msk [vmem:[#allocation5 + $0xf6] sm:$0x1] %vm196, %v2124
    %2141 = vst.msk [vmem:[#allocation5 + $0x17] sm:$0x1] %vm196, %v2099
    %2142 = vst.msk [vmem:[#allocation5 + $0x37] sm:$0x1] %vm196, %v2113
    %2143 = vst.msk [vmem:[#allocation5 + $0x57] sm:$0x1] %vm196, %v2121
    %2144 = vst.msk [vmem:[#allocation5 + $0x77] sm:$0x1] %vm196, %v2123
    %2145 = vst.msk [vmem:[#allocation5 + $0x97] sm:$0x1] %vm196, %v2106
    %2146 = vst.msk [vmem:[#allocation5 + $0xb7] sm:$0x1] %vm196, %v2120
    %2147 = vst.msk [vmem:[#allocation5 + $0xd7] sm:$0x1] %vm196, %v2122
    %2148 = vst.msk [vmem:[#allocation5 + $0xf7] sm:$0x1] %vm196, %v2124
    %v2149 = vld [vmem:[#allocation2 + $0xc] sm:$0x1]
    %v2150 = vld [vmem:[#allocation2 + $0x1c] sm:$0x1]
    %v2151 = vld [vmem:[#allocation2 + $0x2c] sm:$0x1]
    %v2152 = vld [vmem:[#allocation2 + $0x3c] sm:$0x1]
    %v2153 = vld [vmem:[#allocation2 + $0x4c] sm:$0x1]
    %v2154 = vld [vmem:[#allocation2 + $0x5c] sm:$0x1]
    %v2155 = vld [vmem:[#allocation2 + $0x6c] sm:$0x1]
    %v2156 = vld [vmem:[#allocation2 + $0x7c] sm:$0x1]
    %v2165 = vrot.slane %v2150, 7
    %v2166 = vsel %vm45, %v2165, %v2149
    %v2167 = vrot.slane %v2151, 6
    %v2168 = vsel %vm48, %v2167, %v2166
    %v2169 = vrot.slane %v2152, 5
    %v2170 = vsel %vm51, %v2169, %v2168
    %v2171 = vrot.slane %v2153, 4
    %v2172 = vsel %vm54, %v2171, %v2170
    %v2173 = vrot.slane %v2154, 3
    %v2174 = vsel %vm57, %v2173, %v2172
    %v2175 = vrot.slane %v2155, 2
    %v2176 = vsel %vm60, %v2175, %v2174
    %v2177 = vrot.slane %v2156, 1
    %v2178 = vsel %vm63, %v2177, %v2176
    %v2179 = vsel %vm65, %v2178, 0
    %2181 = vmatprep.subr.mxu0 0.0
    %2182 = vmatpush1.msra.mxu0 %v26
    %2183 = vmatprep.subr.mxu0 0.0
    %2184 = vmatpush1.msra.mxu0 %v27
    %2185 = vmatprep.subr.mxu0 0.0
    %2186 = vmatpush1.msra.mxu0 0.0
    %2187 = vmatprep.subr.mxu0 0.0
    %2188 = vmatpush1.msra.mxu0 0.0
    %2189 = vmatprep.subr.mxu0 0.0
    %2190 = vmatpush1.msra.mxu0 0.0
    %2191 = vmatprep.subr.mxu0 0.0
    %2192 = vmatpush1.msra.mxu0 0.0
    %2193 = vmatprep.subr.mxu0 0.0
    %2194 = vmatpush1.msra.mxu0 0.0
    %2195 = vmatprep.subr.mxu0 0.0
    %2196 = vmatpush1.msra.mxu0 0.0
    %2197 = vmatprep.subr.mxu0 0.0
    %2198 = vmatpush1.msra.mxu0 0.0
    %2199 = vmatprep.subr.mxu0 0.0
    %2200 = vmatpush1.msra.mxu0 0.0
    %2201 = vmatprep.subr.mxu0 0.0
    %2202 = vmatpush1.msra.mxu0 0.0
    %2203 = vmatprep.subr.mxu0 0.0
    %2204 = vmatpush1.msra.mxu0 0.0
    %2205 = vmatprep.subr.mxu0 0.0
    %2206 = vmatpush1.msra.mxu0 0.0
    %2207 = vmatprep.subr.mxu0 0.0
    %2208 = vmatpush1.msra.mxu0 0.0
    %2209 = vmatprep.subr.mxu0 0.0
    %2210 = vmatpush1.msra.mxu0 0.0
    %2211 = vmatprep.subr.mxu0 0.0
    %2212 = vmatpush1.msra.mxu0 0.0
    %2213 = vmatprep.subr.mxu0 0.0
    %2214 = vmatpush1.msra.mxu0 0.0
    %2215 = vmatprep.subr.mxu0 0.0
    %2216 = vmatpush1.msra.mxu0 0.0
    %2217 = vmatprep.subr.mxu0 0.0
    %2218 = vmatpush1.msra.mxu0 0.0
    %2219 = vmatprep.subr.mxu0 0.0
    %2220 = vmatpush1.msra.mxu0 0.0
    %2221 = vmatprep.subr.mxu0 0.0
    %2222 = vmatpush1.msra.mxu0 0.0
    %2223 = vmatprep.subr.mxu0 0.0
    %2224 = vmatpush1.msra.mxu0 0.0
    %2225 = vmatprep.subr.mxu0 0.0
    %2226 = vmatpush1.msra.mxu0 0.0
    %2227 = vmatprep.subr.mxu0 0.0
    %2228 = vmatpush1.msra.mxu0 0.0
    %2229 = vmatprep.subr.mxu0 0.0
    %2230 = vmatpush1.msra.mxu0 0.0
    %2231 = vmatprep.subr.mxu0 0.0
    %2232 = vmatpush1.msra.mxu0 0.0
    %2233 = vmatprep.subr.mxu0 0.0
    %2234 = vmatpush1.msra.mxu0 0.0
    %2235 = vmatprep.subr.mxu0 0.0
    %2236 = vmatpush1.msra.mxu0 0.0
    %2237 = vmatprep.subr.mxu0 0.0
    %2238 = vmatpush1.msra.mxu0 0.0
    %2239 = vmatprep.subr.mxu0 0.0
    %2240 = vmatpush1.msra.mxu0 0.0
    %2241 = vmatprep.subr.mxu0 0.0
    %2242 = vmatpush1.msra.mxu0 0.0
    %2243 = vmatprep.subr.mxu0 0.0
    %2244 = vmatpush1.msra.mxu0 0.0
    %2245 = vmatprep.mubr.f32.mxu0 0.0
    %2246 = vmatmul.mubr.f32.gmra.mrb[0].mxu0 %v2179
    %v2247 = vpop.f32.mrb[0].mxu0
    %v2248 = vadd.f32 0.0, %v2247
    %v2249 = vpop.f32.mrb[0].mxu0
    %2250 = vdwg.mxu0
    %v2252 = vcombine.high %v2248, %v2248
    %v2254 = vunpack.c.l.s4 1966171168
    %v2255 = vunpack.c.0.s8 %v2254
    %v2256 = vlaneseq
    %v2257 = vshrl.u32 %v2256, 7
    %v2258 = vsub.s32 %v2255, %v2257
    %v2259 = vrot.slane %v2248, %v2258
    %v2261 = vunpack.c.l.s4 1966171168
    %v2262 = vunpack.c.0.s8 %v2261
    %v2263 = vlaneseq
    %v2264 = vshrl.u32 %v2263, 7
    %v2265 = vsub.s32 %v2262, %v2264
    %v2266 = vrot.slane %v2252, %v2265
    %v2267 = vcombine.high %v2259, %v2259
    %v2268 = vcombine.high %v2266, %v2266
    %v2270 = vunpack.c.l.s4 1966171168
    %v2271 = vunpack.c.0.s8 %v2270
    %v2272 = vlaneseq
    %v2273 = vshrl.u32 %v2272, 7
    %v2274 = vsub.s32 %v2271, %v2273
    %v2275 = vrot.slane %v2259, %v2274
    %v2277 = vunpack.c.l.s4 1966171168
    %v2278 = vunpack.c.0.s8 %v2277
    %v2279 = vlaneseq
    %v2280 = vshrl.u32 %v2279, 7
    %v2281 = vsub.s32 %v2278, %v2280
    %v2282 = vrot.slane %v2266, %v2281
    %v2284 = vunpack.c.l.s4 1966171168
    %v2285 = vunpack.c.0.s8 %v2284
    %v2286 = vlaneseq
    %v2287 = vshrl.u32 %v2286, 7
    %v2288 = vsub.s32 %v2285, %v2287
    %v2289 = vrot.slane %v2267, %v2288
    %v2291 = vunpack.c.l.s4 1966171168
    %v2292 = vunpack.c.0.s8 %v2291
    %v2293 = vlaneseq
    %v2294 = vshrl.u32 %v2293, 7
    %v2295 = vsub.s32 %v2292, %v2294
    %v2296 = vrot.slane %v2268, %v2295
    %v2297 = vcombine.high %v2275, %v2275
    %v2298 = vcombine.high %v2282, %v2282
    %v2299 = vcombine.high %v2289, %v2289
    %v2300 = vcombine.high %v2296, %v2296
    %2309 = vst.msk [vmem:[#allocation5 + $0x18] sm:$0x1] %vm196, %v2275
    %2310 = vst.msk [vmem:[#allocation5 + $0x38] sm:$0x1] %vm196, %v2289
    %2311 = vst.msk [vmem:[#allocation5 + $0x58] sm:$0x1] %vm196, %v2297
    %2312 = vst.msk [vmem:[#allocation5 + $0x78] sm:$0x1] %vm196, %v2299
    %2313 = vst.msk [vmem:[#allocation5 + $0x98] sm:$0x1] %vm196, %v2282
    %2314 = vst.msk [vmem:[#allocation5 + $0xb8] sm:$0x1] %vm196, %v2296
    %2315 = vst.msk [vmem:[#allocation5 + $0xd8] sm:$0x1] %vm196, %v2298
    %2316 = vst.msk [vmem:[#allocation5 + $0xf8] sm:$0x1] %vm196, %v2300
    %2317 = vst.msk [vmem:[#allocation5 + $0x19] sm:$0x1] %vm196, %v2275
    %2318 = vst.msk [vmem:[#allocation5 + $0x39] sm:$0x1] %vm196, %v2289
    %2319 = vst.msk [vmem:[#allocation5 + $0x59] sm:$0x1] %vm196, %v2297
    %2320 = vst.msk [vmem:[#allocation5 + $0x79] sm:$0x1] %vm196, %v2299
    %2321 = vst.msk [vmem:[#allocation5 + $0x99] sm:$0x1] %vm196, %v2282
    %2322 = vst.msk [vmem:[#allocation5 + $0xb9] sm:$0x1] %vm196, %v2296
    %2323 = vst.msk [vmem:[#allocation5 + $0xd9] sm:$0x1] %vm196, %v2298
    %2324 = vst.msk [vmem:[#allocation5 + $0xf9] sm:$0x1] %vm196, %v2300
    %v2325 = vld [vmem:[#allocation2 + $0xd] sm:$0x1]
    %v2326 = vld [vmem:[#allocation2 + $0x1d] sm:$0x1]
    %v2327 = vld [vmem:[#allocation2 + $0x2d] sm:$0x1]
    %v2328 = vld [vmem:[#allocation2 + $0x3d] sm:$0x1]
    %v2329 = vld [vmem:[#allocation2 + $0x4d] sm:$0x1]
    %v2330 = vld [vmem:[#allocation2 + $0x5d] sm:$0x1]
    %v2331 = vld [vmem:[#allocation2 + $0x6d] sm:$0x1]
    %v2332 = vld [vmem:[#allocation2 + $0x7d] sm:$0x1]
    %v2341 = vrot.slane %v2326, 7
    %v2342 = vsel %vm45, %v2341, %v2325
    %v2343 = vrot.slane %v2327, 6
    %v2344 = vsel %vm48, %v2343, %v2342
    %v2345 = vrot.slane %v2328, 5
    %v2346 = vsel %vm51, %v2345, %v2344
    %v2347 = vrot.slane %v2329, 4
    %v2348 = vsel %vm54, %v2347, %v2346
    %v2349 = vrot.slane %v2330, 3
    %v2350 = vsel %vm57, %v2349, %v2348
    %v2351 = vrot.slane %v2331, 2
    %v2352 = vsel %vm60, %v2351, %v2350
    %v2353 = vrot.slane %v2332, 1
    %v2354 = vsel %vm63, %v2353, %v2352
    %v2355 = vsel %vm65, %v2354, 0
    %2357 = vmatprep.subr.mxu0 0.0
    %2358 = vmatpush1.msra.mxu0 %v26
    %2359 = vmatprep.subr.mxu0 0.0
    %2360 = vmatpush1.msra.mxu0 %v27
    %2361 = vmatprep.subr.mxu0 0.0
    %2362 = vmatpush1.msra.mxu0 0.0
    %2363 = vmatprep.subr.mxu0 0.0
    %2364 = vmatpush1.msra.mxu0 0.0
    %2365 = vmatprep.subr.mxu0 0.0
    %2366 = vmatpush1.msra.mxu0 0.0
    %2367 = vmatprep.subr.mxu0 0.0
    %2368 = vmatpush1.msra.mxu0 0.0
    %2369 = vmatprep.subr.mxu0 0.0
    %2370 = vmatpush1.msra.mxu0 0.0
    %2371 = vmatprep.subr.mxu0 0.0
    %2372 = vmatpush1.msra.mxu0 0.0
    %2373 = vmatprep.subr.mxu0 0.0
    %2374 = vmatpush1.msra.mxu0 0.0
    %2375 = vmatprep.subr.mxu0 0.0
    %2376 = vmatpush1.msra.mxu0 0.0
    %2377 = vmatprep.subr.mxu0 0.0
    %2378 = vmatpush1.msra.mxu0 0.0
    %2379 = vmatprep.subr.mxu0 0.0
    %2380 = vmatpush1.msra.mxu0 0.0
    %2381 = vmatprep.subr.mxu0 0.0
    %2382 = vmatpush1.msra.mxu0 0.0
    %2383 = vmatprep.subr.mxu0 0.0
    %2384 = vmatpush1.msra.mxu0 0.0
    %2385 = vmatprep.subr.mxu0 0.0
    %2386 = vmatpush1.msra.mxu0 0.0
    %2387 = vmatprep.subr.mxu0 0.0
    %2388 = vmatpush1.msra.mxu0 0.0
    %2389 = vmatprep.subr.mxu0 0.0
    %2390 = vmatpush1.msra.mxu0 0.0
    %2391 = vmatprep.subr.mxu0 0.0
    %2392 = vmatpush1.msra.mxu0 0.0
    %2393 = vmatprep.subr.mxu0 0.0
    %2394 = vmatpush1.msra.mxu0 0.0
    %2395 = vmatprep.subr.mxu0 0.0
    %2396 = vmatpush1.msra.mxu0 0.0
    %2397 = vmatprep.subr.mxu0 0.0
    %2398 = vmatpush1.msra.mxu0 0.0
    %2399 = vmatprep.subr.mxu0 0.0
    %2400 = vmatpush1.msra.mxu0 0.0
    %2401 = vmatprep.subr.mxu0 0.0
    %2402 = vmatpush1.msra.mxu0 0.0
    %2403 = vmatprep.subr.mxu0 0.0
    %2404 = vmatpush1.msra.mxu0 0.0
    %2405 = vmatprep.subr.mxu0 0.0
    %2406 = vmatpush1.msra.mxu0 0.0
    %2407 = vmatprep.subr.mxu0 0.0
    %2408 = vmatpush1.msra.mxu0 0.0
    %2409 = vmatprep.subr.mxu0 0.0
    %2410 = vmatpush1.msra.mxu0 0.0
    %2411 = vmatprep.subr.mxu0 0.0
    %2412 = vmatpush1.msra.mxu0 0.0
    %2413 = vmatprep.subr.mxu0 0.0
    %2414 = vmatpush1.msra.mxu0 0.0
    %2415 = vmatprep.subr.mxu0 0.0
    %2416 = vmatpush1.msra.mxu0 0.0
    %2417 = vmatprep.subr.mxu0 0.0
    %2418 = vmatpush1.msra.mxu0 0.0
    %2419 = vmatprep.subr.mxu0 0.0
    %2420 = vmatpush1.msra.mxu0 0.0
    %2421 = vmatprep.mubr.f32.mxu0 0.0
    %2422 = vmatmul.mubr.f32.gmra.mrb[0].mxu0 %v2355
    %v2423 = vpop.f32.mrb[0].mxu0
    %v2424 = vadd.f32 0.0, %v2423
    %v2425 = vpop.f32.mrb[0].mxu0
    %2426 = vdwg.mxu0
    %v2428 = vcombine.high %v2424, %v2424
    %v2430 = vunpack.c.l.s4 1966171168
    %v2431 = vunpack.c.0.s8 %v2430
    %v2432 = vlaneseq
    %v2433 = vshrl.u32 %v2432, 7
    %v2434 = vsub.s32 %v2431, %v2433
    %v2435 = vrot.slane %v2424, %v2434
    %v2437 = vunpack.c.l.s4 1966171168
    %v2438 = vunpack.c.0.s8 %v2437
    %v2439 = vlaneseq
    %v2440 = vshrl.u32 %v2439, 7
    %v2441 = vsub.s32 %v2438, %v2440
    %v2442 = vrot.slane %v2428, %v2441
    %v2443 = vcombine.high %v2435, %v2435
    %v2444 = vcombine.high %v2442, %v2442
    %v2446 = vunpack.c.l.s4 1966171168
    %v2447 = vunpack.c.0.s8 %v2446
    %v2448 = vlaneseq
    %v2449 = vshrl.u32 %v2448, 7
    %v2450 = vsub.s32 %v2447, %v2449
    %v2451 = vrot.slane %v2435, %v2450
    %v2453 = vunpack.c.l.s4 1966171168
    %v2454 = vunpack.c.0.s8 %v2453
    %v2455 = vlaneseq
    %v2456 = vshrl.u32 %v2455, 7
    %v2457 = vsub.s32 %v2454, %v2456
    %v2458 = vrot.slane %v2442, %v2457
    %v2460 = vunpack.c.l.s4 1966171168
    %v2461 = vunpack.c.0.s8 %v2460
    %v2462 = vlaneseq
    %v2463 = vshrl.u32 %v2462, 7
    %v2464 = vsub.s32 %v2461, %v2463
    %v2465 = vrot.slane %v2443, %v2464
    %v2467 = vunpack.c.l.s4 1966171168
    %v2468 = vunpack.c.0.s8 %v2467
    %v2469 = vlaneseq
    %v2470 = vshrl.u32 %v2469, 7
    %v2471 = vsub.s32 %v2468, %v2470
    %v2472 = vrot.slane %v2444, %v2471
    %v2473 = vcombine.high %v2451, %v2451
    %v2474 = vcombine.high %v2458, %v2458
    %v2475 = vcombine.high %v2465, %v2465
    %v2476 = vcombine.high %v2472, %v2472
    %2485 = vst.msk [vmem:[#allocation5 + $0x1a] sm:$0x1] %vm196, %v2451
    %2486 = vst.msk [vmem:[#allocation5 + $0x3a] sm:$0x1] %vm196, %v2465
    %2487 = vst.msk [vmem:[#allocation5 + $0x5a] sm:$0x1] %vm196, %v2473
    %2488 = vst.msk [vmem:[#allocation5 + $0x7a] sm:$0x1] %vm196, %v2475
    %2489 = vst.msk [vmem:[#allocation5 + $0x9a] sm:$0x1] %vm196, %v2458
    %2490 = vst.msk [vmem:[#allocation5 + $0xba] sm:$0x1] %vm196, %v2472
    %2491 = vst.msk [vmem:[#allocation5 + $0xda] sm:$0x1] %vm196, %v2474
    %2492 = vst.msk [vmem:[#allocation5 + $0xfa] sm:$0x1] %vm196, %v2476
    %2493 = vst.msk [vmem:[#allocation5 + $0x1b] sm:$0x1] %vm196, %v2451
    %2494 = vst.msk [vmem:[#allocation5 + $0x3b] sm:$0x1] %vm196, %v2465
    %2495 = vst.msk [vmem:[#allocation5 + $0x5b] sm:$0x1] %vm196, %v2473
    %2496 = vst.msk [vmem:[#allocation5 + $0x7b] sm:$0x1] %vm196, %v2475
    %2497 = vst.msk [vmem:[#allocation5 + $0x9b] sm:$0x1] %vm196, %v2458
    %2498 = vst.msk [vmem:[#allocation5 + $0xbb] sm:$0x1] %vm196, %v2472
    %2499 = vst.msk [vmem:[#allocation5 + $0xdb] sm:$0x1] %vm196, %v2474
    %2500 = vst.msk [vmem:[#allocation5 + $0xfb] sm:$0x1] %vm196, %v2476
    %v2501 = vld [vmem:[#allocation2 + $0xe] sm:$0x1]
    %v2502 = vld [vmem:[#allocation2 + $0x1e] sm:$0x1]
    %v2503 = vld [vmem:[#allocation2 + $0x2e] sm:$0x1]
    %v2504 = vld [vmem:[#allocation2 + $0x3e] sm:$0x1]
    %v2505 = vld [vmem:[#allocation2 + $0x4e] sm:$0x1]
    %v2506 = vld [vmem:[#allocation2 + $0x5e] sm:$0x1]
    %v2507 = vld [vmem:[#allocation2 + $0x6e] sm:$0x1]
    %v2508 = vld [vmem:[#allocation2 + $0x7e] sm:$0x1]
    %v2517 = vrot.slane %v2502, 7
    %v2518 = vsel %vm45, %v2517, %v2501
    %v2519 = vrot.slane %v2503, 6
    %v2520 = vsel %vm48, %v2519, %v2518
    %v2521 = vrot.slane %v2504, 5
    %v2522 = vsel %vm51, %v2521, %v2520
    %v2523 = vrot.slane %v2505, 4
    %v2524 = vsel %vm54, %v2523, %v2522
    %v2525 = vrot.slane %v2506, 3
    %v2526 = vsel %vm57, %v2525, %v2524
    %v2527 = vrot.slane %v2507, 2
    %v2528 = vsel %vm60, %v2527, %v2526
    %v2529 = vrot.slane %v2508, 1
    %v2530 = vsel %vm63, %v2529, %v2528
    %v2531 = vsel %vm65, %v2530, 0
    %2533 = vmatprep.subr.mxu0 0.0
    %2534 = vmatpush1.msra.mxu0 %v26
    %2535 = vmatprep.subr.mxu0 0.0
    %2536 = vmatpush1.msra.mxu0 %v27
    %2537 = vmatprep.subr.mxu0 0.0
    %2538 = vmatpush1.msra.mxu0 0.0
    %2539 = vmatprep.subr.mxu0 0.0
    %2540 = vmatpush1.msra.mxu0 0.0
    %2541 = vmatprep.subr.mxu0 0.0
    %2542 = vmatpush1.msra.mxu0 0.0
    %2543 = vmatprep.subr.mxu0 0.0
    %2544 = vmatpush1.msra.mxu0 0.0
    %2545 = vmatprep.subr.mxu0 0.0
    %2546 = vmatpush1.msra.mxu0 0.0
    %2547 = vmatprep.subr.mxu0 0.0
    %2548 = vmatpush1.msra.mxu0 0.0
    %2549 = vmatprep.subr.mxu0 0.0
    %2550 = vmatpush1.msra.mxu0 0.0
    %2551 = vmatprep.subr.mxu0 0.0
    %2552 = vmatpush1.msra.mxu0 0.0
    %2553 = vmatprep.subr.mxu0 0.0
    %2554 = vmatpush1.msra.mxu0 0.0
    %2555 = vmatprep.subr.mxu0 0.0
    %2556 = vmatpush1.msra.mxu0 0.0
    %2557 = vmatprep.subr.mxu0 0.0
    %2558 = vmatpush1.msra.mxu0 0.0
    %2559 = vmatprep.subr.mxu0 0.0
    %2560 = vmatpush1.msra.mxu0 0.0
    %2561 = vmatprep.subr.mxu0 0.0
    %2562 = vmatpush1.msra.mxu0 0.0
    %2563 = vmatprep.subr.mxu0 0.0
    %2564 = vmatpush1.msra.mxu0 0.0
    %2565 = vmatprep.subr.mxu0 0.0
    %2566 = vmatpush1.msra.mxu0 0.0
    %2567 = vmatprep.subr.mxu0 0.0
    %2568 = vmatpush1.msra.mxu0 0.0
    %2569 = vmatprep.subr.mxu0 0.0
    %2570 = vmatpush1.msra.mxu0 0.0
    %2571 = vmatprep.subr.mxu0 0.0
    %2572 = vmatpush1.msra.mxu0 0.0
    %2573 = vmatprep.subr.mxu0 0.0
    %2574 = vmatpush1.msra.mxu0 0.0
    %2575 = vmatprep.subr.mxu0 0.0
    %2576 = vmatpush1.msra.mxu0 0.0
    %2577 = vmatprep.subr.mxu0 0.0
    %2578 = vmatpush1.msra.mxu0 0.0
    %2579 = vmatprep.subr.mxu0 0.0
    %2580 = vmatpush1.msra.mxu0 0.0
    %2581 = vmatprep.subr.mxu0 0.0
    %2582 = vmatpush1.msra.mxu0 0.0
    %2583 = vmatprep.subr.mxu0 0.0
    %2584 = vmatpush1.msra.mxu0 0.0
    %2585 = vmatprep.subr.mxu0 0.0
    %2586 = vmatpush1.msra.mxu0 0.0
    %2587 = vmatprep.subr.mxu0 0.0
    %2588 = vmatpush1.msra.mxu0 0.0
    %2589 = vmatprep.subr.mxu0 0.0
    %2590 = vmatpush1.msra.mxu0 0.0
    %2591 = vmatprep.subr.mxu0 0.0
    %2592 = vmatpush1.msra.mxu0 0.0
    %2593 = vmatprep.subr.mxu0 0.0
    %2594 = vmatpush1.msra.mxu0 0.0
    %2595 = vmatprep.subr.mxu0 0.0
    %2596 = vmatpush1.msra.mxu0 0.0
    %2597 = vmatprep.mubr.f32.mxu0 0.0
    %2598 = vmatmul.mubr.f32.gmra.mrb[0].mxu0 %v2531
    %v2599 = vpop.f32.mrb[0].mxu0
    %v2600 = vadd.f32 0.0, %v2599
    %v2601 = vpop.f32.mrb[0].mxu0
    %2602 = vdwg.mxu0
    %v2604 = vcombine.high %v2600, %v2600
    %v2606 = vunpack.c.l.s4 1966171168
    %v2607 = vunpack.c.0.s8 %v2606
    %v2608 = vlaneseq
    %v2609 = vshrl.u32 %v2608, 7
    %v2610 = vsub.s32 %v2607, %v2609
    %v2611 = vrot.slane %v2600, %v2610
    %v2613 = vunpack.c.l.s4 1966171168
    %v2614 = vunpack.c.0.s8 %v2613
    %v2615 = vlaneseq
    %v2616 = vshrl.u32 %v2615, 7
    %v2617 = vsub.s32 %v2614, %v2616
    %v2618 = vrot.slane %v2604, %v2617
    %v2619 = vcombine.high %v2611, %v2611
    %v2620 = vcombine.high %v2618, %v2618
    %v2622 = vunpack.c.l.s4 1966171168
    %v2623 = vunpack.c.0.s8 %v2622
    %v2624 = vlaneseq
    %v2625 = vshrl.u32 %v2624, 7
    %v2626 = vsub.s32 %v2623, %v2625
    %v2627 = vrot.slane %v2611, %v2626
    %v2629 = vunpack.c.l.s4 1966171168
    %v2630 = vunpack.c.0.s8 %v2629
    %v2631 = vlaneseq
    %v2632 = vshrl.u32 %v2631, 7
    %v2633 = vsub.s32 %v2630, %v2632
    %v2634 = vrot.slane %v2618, %v2633
    %v2636 = vunpack.c.l.s4 1966171168
    %v2637 = vunpack.c.0.s8 %v2636
    %v2638 = vlaneseq
    %v2639 = vshrl.u32 %v2638, 7
    %v2640 = vsub.s32 %v2637, %v2639
    %v2641 = vrot.slane %v2619, %v2640
    %v2643 = vunpack.c.l.s4 1966171168
    %v2644 = vunpack.c.0.s8 %v2643
    %v2645 = vlaneseq
    %v2646 = vshrl.u32 %v2645, 7
    %v2647 = vsub.s32 %v2644, %v2646
    %v2648 = vrot.slane %v2620, %v2647
    %v2649 = vcombine.high %v2627, %v2627
    %v2650 = vcombine.high %v2634, %v2634
    %v2651 = vcombine.high %v2641, %v2641
    %v2652 = vcombine.high %v2648, %v2648
    %2661 = vst.msk [vmem:[#allocation5 + $0x1c] sm:$0x1] %vm196, %v2627
    %2662 = vst.msk [vmem:[#allocation5 + $0x3c] sm:$0x1] %vm196, %v2641
    %2663 = vst.msk [vmem:[#allocation5 + $0x5c] sm:$0x1] %vm196, %v2649
    %2664 = vst.msk [vmem:[#allocation5 + $0x7c] sm:$0x1] %vm196, %v2651
    %2665 = vst.msk [vmem:[#allocation5 + $0x9c] sm:$0x1] %vm196, %v2634
    %2666 = vst.msk [vmem:[#allocation5 + $0xbc] sm:$0x1] %vm196, %v2648
    %2667 = vst.msk [vmem:[#allocation5 + $0xdc] sm:$0x1] %vm196, %v2650
    %2668 = vst.msk [vmem:[#allocation5 + $0xfc] sm:$0x1] %vm196, %v2652
    %2669 = vst.msk [vmem:[#allocation5 + $0x1d] sm:$0x1] %vm196, %v2627
    %2670 = vst.msk [vmem:[#allocation5 + $0x3d] sm:$0x1] %vm196, %v2641
    %2671 = vst.msk [vmem:[#allocation5 + $0x5d] sm:$0x1] %vm196, %v2649
    %2672 = vst.msk [vmem:[#allocation5 + $0x7d] sm:$0x1] %vm196, %v2651
    %2673 = vst.msk [vmem:[#allocation5 + $0x9d] sm:$0x1] %vm196, %v2634
    %2674 = vst.msk [vmem:[#allocation5 + $0xbd] sm:$0x1] %vm196, %v2648
    %2675 = vst.msk [vmem:[#allocation5 + $0xdd] sm:$0x1] %vm196, %v2650
    %2676 = vst.msk [vmem:[#allocation5 + $0xfd] sm:$0x1] %vm196, %v2652
    %v2677 = vld [vmem:[#allocation2 + $0xf] sm:$0x1]
    %v2678 = vld [vmem:[#allocation2 + $0x1f] sm:$0x1]
    %v2679 = vld [vmem:[#allocation2 + $0x2f] sm:$0x1]
    %v2680 = vld [vmem:[#allocation2 + $0x3f] sm:$0x1]
    %v2681 = vld [vmem:[#allocation2 + $0x4f] sm:$0x1]
    %v2682 = vld [vmem:[#allocation2 + $0x5f] sm:$0x1]
    %v2683 = vld [vmem:[#allocation2 + $0x6f] sm:$0x1]
    %v2684 = vld [vmem:[#allocation2 + $0x7f] sm:$0x1]
    %v2693 = vrot.slane %v2678, 7
    %v2694 = vsel %vm45, %v2693, %v2677
    %v2695 = vrot.slane %v2679, 6
    %v2696 = vsel %vm48, %v2695, %v2694
    %v2697 = vrot.slane %v2680, 5
    %v2698 = vsel %vm51, %v2697, %v2696
    %v2699 = vrot.slane %v2681, 4
    %v2700 = vsel %vm54, %v2699, %v2698
    %v2701 = vrot.slane %v2682, 3
    %v2702 = vsel %vm57, %v2701, %v2700
    %v2703 = vrot.slane %v2683, 2
    %v2704 = vsel %vm60, %v2703, %v2702
    %v2705 = vrot.slane %v2684, 1
    %v2706 = vsel %vm63, %v2705, %v2704
    %v2707 = vsel %vm65, %v2706, 0
    %2709 = vmatprep.subr.mxu0 0.0
    %2710 = vmatpush1.msra.mxu0 %v26
    %2711 = vmatprep.subr.mxu0 0.0
    %2712 = vmatpush1.msra.mxu0 %v27
    %2713 = vmatprep.subr.mxu0 0.0
    %2714 = vmatpush1.msra.mxu0 0.0
    %2715 = vmatprep.subr.mxu0 0.0
    %2716 = vmatpush1.msra.mxu0 0.0
    %2717 = vmatprep.subr.mxu0 0.0
    %2718 = vmatpush1.msra.mxu0 0.0
    %2719 = vmatprep.subr.mxu0 0.0
    %2720 = vmatpush1.msra.mxu0 0.0
    %2721 = vmatprep.subr.mxu0 0.0
    %2722 = vmatpush1.msra.mxu0 0.0
    %2723 = vmatprep.subr.mxu0 0.0
    %2724 = vmatpush1.msra.mxu0 0.0
    %2725 = vmatprep.subr.mxu0 0.0
    %2726 = vmatpush1.msra.mxu0 0.0
    %2727 = vmatprep.subr.mxu0 0.0
    %2728 = vmatpush1.msra.mxu0 0.0
    %2729 = vmatprep.subr.mxu0 0.0
    %2730 = vmatpush1.msra.mxu0 0.0
    %2731 = vmatprep.subr.mxu0 0.0
    %2732 = vmatpush1.msra.mxu0 0.0
    %2733 = vmatprep.subr.mxu0 0.0
    %2734 = vmatpush1.msra.mxu0 0.0
    %2735 = vmatprep.subr.mxu0 0.0
    %2736 = vmatpush1.msra.mxu0 0.0
    %2737 = vmatprep.subr.mxu0 0.0
    %2738 = vmatpush1.msra.mxu0 0.0
    %2739 = vmatprep.subr.mxu0 0.0
    %2740 = vmatpush1.msra.mxu0 0.0
    %2741 = vmatprep.subr.mxu0 0.0
    %2742 = vmatpush1.msra.mxu0 0.0
    %2743 = vmatprep.subr.mxu0 0.0
    %2744 = vmatpush1.msra.mxu0 0.0
    %2745 = vmatprep.subr.mxu0 0.0
    %2746 = vmatpush1.msra.mxu0 0.0
    %2747 = vmatprep.subr.mxu0 0.0
    %2748 = vmatpush1.msra.mxu0 0.0
    %2749 = vmatprep.subr.mxu0 0.0
    %2750 = vmatpush1.msra.mxu0 0.0
    %2751 = vmatprep.subr.mxu0 0.0
    %2752 = vmatpush1.msra.mxu0 0.0
    %2753 = vmatprep.subr.mxu0 0.0
    %2754 = vmatpush1.msra.mxu0 0.0
    %2755 = vmatprep.subr.mxu0 0.0
    %2756 = vmatpush1.msra.mxu0 0.0
    %2757 = vmatprep.subr.mxu0 0.0
    %2758 = vmatpush1.msra.mxu0 0.0
    %2759 = vmatprep.subr.mxu0 0.0
    %2760 = vmatpush1.msra.mxu0 0.0
    %2761 = vmatprep.subr.mxu0 0.0
    %2762 = vmatpush1.msra.mxu0 0.0
    %2763 = vmatprep.subr.mxu0 0.0
    %2764 = vmatpush1.msra.mxu0 0.0
    %2765 = vmatprep.subr.mxu0 0.0
    %2766 = vmatpush1.msra.mxu0 0.0
    %2767 = vmatprep.subr.mxu0 0.0
    %2768 = vmatpush1.msra.mxu0 0.0
    %2769 = vmatprep.subr.mxu0 0.0
    %2770 = vmatpush1.msra.mxu0 0.0
    %2771 = vmatprep.subr.mxu0 0.0
    %2772 = vmatpush1.msra.mxu0 0.0
    %2773 = vmatprep.mubr.f32.mxu0 0.0
    %2774 = vmatmul.mubr.f32.gmra.mrb[0].mxu0 %v2707
    %v2775 = vpop.f32.mrb[0].mxu0
    %v2776 = vadd.f32 0.0, %v2775
    %v2777 = vpop.f32.mrb[0].mxu0
    %2778 = vdwg.mxu0
    %v2780 = vcombine.high %v2776, %v2776
    %v2782 = vunpack.c.l.s4 1966171168
    %v2783 = vunpack.c.0.s8 %v2782
    %v2784 = vlaneseq
    %v2785 = vshrl.u32 %v2784, 7
    %v2786 = vsub.s32 %v2783, %v2785
    %v2787 = vrot.slane %v2776, %v2786
    %v2789 = vunpack.c.l.s4 1966171168
    %v2790 = vunpack.c.0.s8 %v2789
    %v2791 = vlaneseq
    %v2792 = vshrl.u32 %v2791, 7
    %v2793 = vsub.s32 %v2790, %v2792
    %v2794 = vrot.slane %v2780, %v2793
    %v2795 = vcombine.high %v2787, %v2787
    %v2796 = vcombine.high %v2794, %v2794
    %v2798 = vunpack.c.l.s4 1966171168
    %v2799 = vunpack.c.0.s8 %v2798
    %v2800 = vlaneseq
    %v2801 = vshrl.u32 %v2800, 7
    %v2802 = vsub.s32 %v2799, %v2801
    %v2803 = vrot.slane %v2787, %v2802
    %v2805 = vunpack.c.l.s4 1966171168
    %v2806 = vunpack.c.0.s8 %v2805
    %v2807 = vlaneseq
    %v2808 = vshrl.u32 %v2807, 7
    %v2809 = vsub.s32 %v2806, %v2808
    %v2810 = vrot.slane %v2794, %v2809
    %v2812 = vunpack.c.l.s4 1966171168
    %v2813 = vunpack.c.0.s8 %v2812
    %v2814 = vlaneseq
    %v2815 = vshrl.u32 %v2814, 7
    %v2816 = vsub.s32 %v2813, %v2815
    %v2817 = vrot.slane %v2795, %v2816
    %v2819 = vunpack.c.l.s4 1966171168
    %v2820 = vunpack.c.0.s8 %v2819
    %v2821 = vlaneseq
    %v2822 = vshrl.u32 %v2821, 7
    %v2823 = vsub.s32 %v2820, %v2822
    %v2824 = vrot.slane %v2796, %v2823
    %v2825 = vcombine.high %v2803, %v2803
    %v2826 = vcombine.high %v2810, %v2810
    %v2827 = vcombine.high %v2817, %v2817
    %v2828 = vcombine.high %v2824, %v2824
    %2837 = vst.msk [vmem:[#allocation5 + $0x1e] sm:$0x1] %vm196, %v2803
    %2838 = vst.msk [vmem:[#allocation5 + $0x3e] sm:$0x1] %vm196, %v2817
    %2839 = vst.msk [vmem:[#allocation5 + $0x5e] sm:$0x1] %vm196, %v2825
    %2840 = vst.msk [vmem:[#allocation5 + $0x7e] sm:$0x1] %vm196, %v2827
    %2841 = vst.msk [vmem:[#allocation5 + $0x9e] sm:$0x1] %vm196, %v2810
    %2842 = vst.msk [vmem:[#allocation5 + $0xbe] sm:$0x1] %vm196, %v2824
    %2843 = vst.msk [vmem:[#allocation5 + $0xde] sm:$0x1] %vm196, %v2826
    %2844 = vst.msk [vmem:[#allocation5 + $0xfe] sm:$0x1] %vm196, %v2828
    %2845 = vst.msk [vmem:[#allocation5 + $0x1f] sm:$0x1] %vm196, %v2803
    %2846 = vst.msk [vmem:[#allocation5 + $0x3f] sm:$0x1] %vm196, %v2817
    %2847 = vst.msk [vmem:[#allocation5 + $0x5f] sm:$0x1] %vm196, %v2825
    %2848 = vst.msk [vmem:[#allocation5 + $0x7f] sm:$0x1] %vm196, %v2827
    %2849 = vst.msk [vmem:[#allocation5 + $0x9f] sm:$0x1] %vm196, %v2810
    %2850 = vst.msk [vmem:[#allocation5 + $0xbf] sm:$0x1] %vm196, %v2824
    %2851 = vst.msk [vmem:[#allocation5 + $0xdf] sm:$0x1] %vm196, %v2826
    %2852 = vst.msk [vmem:[#allocation5 + $0xff] sm:$0x1] %vm196, %v2828
    // Predicated region
    $region14: #{interpolate.1} parent=1 // pred_check
      _
    $region15: #{interpolate.1} parent=1 // pred_check_branch
      %2854 = sbr.rel (0) target = $region17
    $region16: #{interpolate.1} parent=1 // pred_region
      %s2856 = ssub.s32 4096, 4096
      %2857 = vsyncadd [#allocation4], %s2856
      %s2858 = sshll.u32 [#allocation5], 4
      %s2859 = int_to_ptr.vmem [resolvable:$true] %s2858
      %2864 = dma.vmem_to_hbm [thread:$0]  %s2859, 4096, %s2, [#allocation4], 128, 128, 8
    $region17: #{interpolate.1} parent=1 // pred_fallthru
      _
    // Predicated region
    $region18: #{interpolate.1} parent=1 // pred_check
      _
    $region19: #{interpolate.1} parent=1 // pred_check_branch
      %2866 = sbr.rel (0) target = $region21
    $region20: #{interpolate.1} parent=1 // pred_region
      %2867 = dma.done [#allocation4], 4096
    $region21: #{interpolate.1} parent=1 // pred_fallthru
      _
    %2868 = vsyncpa [#allocation3], 1
    %2869 = vsyncpa [#allocation4], 1

</llo_original>
